<compile_context>
chip_gen: v7x
topology: tpu7x:2x2x1
jax: 0.10.0
libtpu: 0.0.40
codegen_flags: <defaults>
</compile_context>

<pallas_src>
import jax
import jax.numpy as jnp
import numpy as np
from jax import lax
from jax.experimental import pallas as pl
from jax.experimental.pallas import tpu as pltpu

_MAX_BLOCK_N = 8  # samples processed per grid step (statically unrolled)


# ---------------------------------------------------------------------------
# Single fused Pallas kernel
# ---------------------------------------------------------------------------
def _lenet_kernel(x_ref, t1_ref, b1_ref, t2_ref, b2_ref,
                  ph1_ref, pw1_ref, sel_ref,
                  wf1_ref, bf1_ref, wf2_ref, bf2_ref, wf3_ref, bf3_ref,
                  out_ref, p1_scr, a2_scr):
    nb = x_ref.shape[0]

    def dot(a, b):
        return jnp.dot(a, b, preferred_element_type=jnp.float32)

    # ---- per-sample convolutional front end (spatially structured) ---------
    for n in range(nb):  # static unroll over the batch tile
        # conv1 (padding=2 folded into the pre-padded 32x32 image) + tanh.
        # Output packed as (28, 28*6): lane index = ow*6 + co.
        acc = dot(x_ref[n, 0:28, :], t1_ref[0])
        for kh in range(1, 5):
            acc = acc + dot(x_ref[n, kh:kh + 28, :], t1_ref[kh])
        a1 = jnp.tanh(acc + b1_ref[...])                              # (28, 168)

        # fused 2x2 average pool (constant 0.5 pooling matmuls)
        p1_scr[...] = dot(dot(ph1_ref[...], a1), pw1_ref[...])        # (14, 84)

        # conv2 (valid); bias + tanh deferred to the batched epilogue
        acc2 = dot(p1_scr[0:10, :], t2_ref[0])
        for kh in range(1, 5):
            acc2 = acc2 + dot(p1_scr[kh:kh + 10, :], t2_ref[kh])
        a2_scr[n * 10:(n + 1) * 10, :] = acc2                         # (10, 160)

    # ---- batched epilogue: tanh, pool2 + flatten + fc1, fc2, fc3, softmax --
    a2 = jnp.tanh(a2_scr[...] + b2_ref[...])                          # (nb*10, 160)

    # 2x2 row-pool folded into the 0.5-valued selection matrices (also gathers
    # each sample's rows); the column-pool is folded into the fc1 blocks.
    h = dot(dot(sel_ref[0], a2), wf1_ref[0])
    for r in range(1, 5):
        h = h + dot(dot(sel_ref[r], a2), wf1_ref[r])
    h1 = jnp.tanh(h + bf1_ref[...])                                   # (nb, 120)
    h2 = jnp.tanh(dot(h1, wf2_ref[...]) + bf2_ref[...])               # (nb, 84)
    logits = dot(h2, wf3_ref[...]) + bf3_ref[...]                     # (nb, 10)

    # log_softmax over classes (batched over the whole tile)
    m = jnp.max(logits, axis=-1, keepdims=True)
    z = logits - m
    lse = jnp.log(jnp.sum(jnp.exp(z), axis=-1, keepdims=True))
    out_ref[...] = z - lse


# ---------------------------------------------------------------------------
# One-time parameter preprocessing (plain-JAX / numpy glue on weights only)
# ---------------------------------------------------------------------------
def _pool_rows(n):
    m = np.zeros((n // 2, n), np.float32)
    i = np.arange(n // 2)
    m[i, 2 * i] = 0.5
    m[i, 2 * i + 1] = 0.5
    return m


def _pool_cols(nw, nc):
    m = np.zeros((nw * nc, (nw // 2) * nc), np.float32)
    w = np.repeat(np.arange(nw), nc)
    c = np.tile(np.arange(nc), nw)
    m[w * nc + c, (w // 2) * nc + c] = 0.5
    return m


def _row_pool_select(nb):
    """(5, nb, nb*10): block r picks rows 2r and 2r+1 of each sample's 10
    staged conv2 rows with weight 0.5 (row-avg-pool fused with the gather)."""
    s = np.zeros((5, nb, nb * 10), np.float32)
    r = np.repeat(np.arange(5), nb)
    n = np.tile(np.arange(nb), 5)
    s[r, n, n * 10 + 2 * r] = 0.5
    s[r, n, n * 10 + 2 * r + 1] = 0.5
    return s


def _conv_toeplitz(w, out_w, in_w):
    """w: (Cout, Cin, 5, 5) -> (5, in_w*Cin, out_w*Cout) block-Toeplitz per kernel row.

    t[kh, (ow+kw)*Cin + ci, ow*Cout + co] = w[co, ci, kh, kw], so that
    input_row(oh+kh) @ t[kh], summed over kh, equals the conv output row oh."""
    cout, cin = int(w.shape[0]), int(w.shape[1])
    kh, kw, ow, ci, co = np.meshgrid(np.arange(5), np.arange(5), np.arange(out_w),
                                     np.arange(cin), np.arange(cout), indexing="ij")
    kh, kw, ow, ci, co = [a.ravel() for a in (kh, kw, ow, ci, co)]
    vals = w[co, ci, kh, kw]
    t = jnp.zeros((5, in_w * cin, out_w * cout), jnp.float32)
    return t.at[kh, (ow + kw) * cin + ci, ow * cout + co].set(vals)


def _fc1_blocks(fc1_w):
    """fc1_w: (120, 400) in PyTorch flatten order (c*25 + h*5 + w) ->
    (5, 80, 120): block h has rows packed as w*16 + c, matching the kernel's
    pooled-conv2 layout."""
    h, w, c = np.meshgrid(np.arange(5), np.arange(5), np.arange(16), indexing="ij")
    idx = (c * 25 + h * 5 + w).ravel()
    return fc1_w[:, idx].T.reshape(5, 80, 120)


# ---------------------------------------------------------------------------
# Forward pass
# ---------------------------------------------------------------------------
@jax.jit
def lenet_forward(x_nchw, p):
    n = x_nchw.shape[0]
    x = x_nchw.astype(jnp.float32).reshape(n, 28, 28)          # Cin == 1
    x = jnp.pad(x, ((0, 0), (2, 2), (2, 2)))                   # conv1 padding=2
    nb = min(_MAX_BLOCK_N, n)
    n_pad = ((n + nb - 1) // nb) * nb
    if n_pad != n:
        x = jnp.pad(x, ((0, n_pad - n), (0, 0), (0, 0)))

    t1 = _conv_toeplitz(p["conv1_w"], 28, 32)                  # (5, 32, 168)
    t2 = _conv_toeplitz(p["conv2_w"], 10, 14)                  # (5, 84, 160)
    b1 = jnp.tile(p["conv1_b"], 28).reshape(1, -1)             # (1, 168)
    b2 = jnp.tile(p["conv2_b"], 10).reshape(1, -1)             # (1, 160)
    ph1 = jnp.asarray(_pool_rows(28))                          # (14, 28)
    pw1 = jnp.asarray(_pool_cols(28, 6))                       # (168, 84)
    pw2 = jnp.asarray(_pool_cols(10, 16))                      # (160, 80)
    sel = jnp.asarray(_row_pool_select(nb))                    # (5, nb, nb*10)
    # column-pool folded into fc1 weight blocks: (5, 160, 120)
    wf1 = jnp.einsum("kf,rfo->rko", pw2, _fc1_blocks(p["fc1_w"]))
    bf1 = p["fc1_b"].reshape(1, -1)
    wf2, bf2 = p["fc2_w"].T, p["fc2_b"].reshape(1, -1)
    wf3, bf3 = p["fc3_w"].T, p["fc3_b"].reshape(1, -1)

    consts = (t1, b1, t2, b2, ph1, pw1, sel,
              wf1, bf1, wf2, bf2, wf3, bf3)

    def resident(a):
        nd = a.ndim
        return pl.BlockSpec(a.shape, lambda b, _nd=nd: (0,) * _nd)

    out = pl.pallas_call(
        _lenet_kernel,
        out_shape=jax.ShapeDtypeStruct((n_pad, 10), jnp.float32),
        grid=(n_pad // nb,),
        in_specs=[pl.BlockSpec((nb, 32, 32), lambda b: (b, 0, 0))]
                 + [resident(a) for a in consts],
        out_specs=pl.BlockSpec((nb, 10), lambda b: (b, 0)),
        scratch_shapes=[pltpu.VMEM((14, 84), jnp.float32),
                        pltpu.VMEM((nb * 10, 160), jnp.float32)],
        compiler_params=pltpu.CompilerParams(
            dimension_semantics=("parallel",)),
    )(x, *consts)
    return out[:n]


# ---------------------------------------------------------------------------
# Pure-JAX reference (matches the PyTorch module)
# ---------------------------------------------------------------------------
def reference_forward(x_nchw, p):
    hp = lax.Precision.HIGHEST
    dn = ("NCHW", "OIHW", "NCHW")

    def pool(y):
        nb, c, h, w = y.shape
        return y.reshape(nb, c, h // 2, 2, w // 2, 2).mean((3, 5))

    x = x_nchw.astype(jnp.float32)
    y = lax.conv_general_dilated(x, p["conv1_w"], (1, 1), [(2, 2), (2, 2)],
                                 dimension_numbers=dn, precision=hp)
    y = pool(jnp.tanh(y + p["conv1_b"].reshape(1, -1, 1, 1)))
    y = lax.conv_general_dilated(y, p["conv2_w"], (1, 1), [(0, 0), (0, 0)],
                                 dimension_numbers=dn, precision=hp)
    y = pool(jnp.tanh(y + p["conv2_b"].reshape(1, -1, 1, 1)))
    y = y.reshape(y.shape[0], 16 * 5 * 5)
    y = jnp.tanh(jnp.dot(y, p["fc1_w"].T, precision=hp) + p["fc1_b"])
    y = jnp.tanh(jnp.dot(y, p["fc2_w"].T, precision=hp) + p["fc2_b"])
    y = jnp.dot(y, p["fc3_w"].T, precision=hp) + p["fc3_b"]
    return jax.nn.log_softmax(y, axis=1)


# ---------------------------------------------------------------------------
# Deterministic synthetic parameters
# ---------------------------------------------------------------------------
def init_params(key):
    ks = jax.random.split(key, 10)

    def nrm(k, shape, s=0.1):
        return (s * jax.random.normal(k, shape)).astype(jnp.float32)

    return {
        "conv1_w": nrm(ks[0], (6, 1, 5, 5)),
        "conv1_b": nrm(ks[1], (6,), 0.05),
        "conv2_w": nrm(ks[2], (16, 6, 5, 5)),
        "conv2_b": nrm(ks[3], (16,), 0.05),
        "fc1_w": nrm(ks[4], (120, 400)),
        "fc1_b": nrm(ks[5], (120,), 0.05),
        "fc2_w": nrm(ks[6], (84, 120)),
        "fc2_b": nrm(ks[7], (84,), 0.05),
        "fc3_w": nrm(ks[8], (10, 84)),
        "fc3_b": nrm(ks[9], (10,), 0.05),
    }


if __name__ == "__main__":
    key = jax.random.PRNGKey(0)
    kx, kp = jax.random.split(key)
    x = jax.random.normal(kx, (2, 1, 28, 28), dtype=jnp.float32)   # NCHW, MNIST-sized
    params = init_params(kp)

    out = jax.block_until_ready(lenet_forward(x, params))
    ref = jax.block_until_ready(reference_forward(x, params))

    assert out.shape == (2, 10), out.shape
    np.testing.assert_allclose(np.asarray(out), np.asarray(ref), atol=1e-2, rtol=1e-2)
    print("KERNEL_OK")
</pallas_src>

<mosaic_0001>
module attributes {stable_mosaic.version = 11 : i64} {
  func.func @_lenet_kernel(%arg0: i32, %arg1: memref<2x32x32xf32, #tpu.memory_space<vmem>>, %arg2: memref<5x32x168xf32, #tpu.memory_space<vmem>>, %arg3: memref<1x168xf32, #tpu.memory_space<vmem>>, %arg4: memref<5x84x160xf32, #tpu.memory_space<vmem>>, %arg5: memref<1x160xf32, #tpu.memory_space<vmem>>, %arg6: memref<14x28xf32, #tpu.memory_space<vmem>>, %arg7: memref<168x84xf32, #tpu.memory_space<vmem>>, %arg8: memref<5x2x20xf32, #tpu.memory_space<vmem>>, %arg9: memref<5x160x120xf32, #tpu.memory_space<vmem>>, %arg10: memref<1x120xf32, #tpu.memory_space<vmem>>, %arg11: memref<120x84xf32, #tpu.memory_space<vmem>>, %arg12: memref<1x84xf32, #tpu.memory_space<vmem>>, %arg13: memref<84x10xf32, #tpu.memory_space<vmem>>, %arg14: memref<1x10xf32, #tpu.memory_space<vmem>>, %arg15: memref<2x10xf32, #tpu.memory_space<vmem>>, %arg16: memref<14x84xf32, #tpu.memory_space<vmem>>, %arg17: memref<20x160xf32, #tpu.memory_space<vmem>>) attributes {dimension_semantics = [#tpu.dimension_semantics<parallel>], iteration_bounds = array<i64: 1>, scalar_prefetch = 0 : i64, scratch_operands = 2 : i64, tpu.core_type = #tpu.core_type<tc>, window_params = [{transform_indices = @transform_0, window_bounds = array<i64: 2, 32, 32>}, {pipeline_mode = #tpu.pipeline_mode<synchronous>, transform_indices = @transform_1, window_bounds = array<i64: 5, 32, 168>}, {pipeline_mode = #tpu.pipeline_mode<synchronous>, transform_indices = @transform_2, window_bounds = array<i64: 1, 168>}, {pipeline_mode = #tpu.pipeline_mode<synchronous>, transform_indices = @transform_3, window_bounds = array<i64: 5, 84, 160>}, {pipeline_mode = #tpu.pipeline_mode<synchronous>, transform_indices = @transform_4, window_bounds = array<i64: 1, 160>}, {pipeline_mode = #tpu.pipeline_mode<synchronous>, transform_indices = @transform_5, window_bounds = array<i64: 14, 28>}, {pipeline_mode = #tpu.pipeline_mode<synchronous>, transform_indices = @transform_6, window_bounds = array<i64: 168, 84>}, {pipeline_mode = #tpu.pipeline_mode<synchronous>, transform_indices = @transform_7, window_bounds = array<i64: 5, 2, 20>}, {pipeline_mode = #tpu.pipeline_mode<synchronous>, transform_indices = @transform_8, window_bounds = array<i64: 5, 160, 120>}, {pipeline_mode = #tpu.pipeline_mode<synchronous>, transform_indices = @transform_9, window_bounds = array<i64: 1, 120>}, {pipeline_mode = #tpu.pipeline_mode<synchronous>, transform_indices = @transform_10, window_bounds = array<i64: 120, 84>}, {pipeline_mode = #tpu.pipeline_mode<synchronous>, transform_indices = @transform_11, window_bounds = array<i64: 1, 84>}, {pipeline_mode = #tpu.pipeline_mode<synchronous>, transform_indices = @transform_12, window_bounds = array<i64: 84, 10>}, {pipeline_mode = #tpu.pipeline_mode<synchronous>, transform_indices = @transform_13, window_bounds = array<i64: 1, 10>}, {transform_indices = @transform_14, window_bounds = array<i64: 2, 10>}]} {
    %c0 = arith.constant 0 : index
    %c0_0 = arith.constant 0 : index
    %c0_1 = arith.constant 0 : index
    %0 = vector.load %arg1[%c0, %c0_0, %c0_1] : memref<2x32x32xf32, #tpu.memory_space<vmem>>, vector<1x28x32xf32>
    %1 = vector.shape_cast %0 : vector<1x28x32xf32> to vector<28x32xf32>
    %c0_2 = arith.constant 0 : index
    %c0_3 = arith.constant 0 : index
    %c0_4 = arith.constant 0 : index
    %2 = vector.load %arg2[%c0_2, %c0_3, %c0_4] : memref<5x32x168xf32, #tpu.memory_space<vmem>>, vector<1x32x168xf32>
    %3 = vector.shape_cast %2 : vector<1x32x168xf32> to vector<32x168xf32>
    %cst = arith.constant dense<0.000000e+00> : vector<28x168xf32>
    %4 = tpu.matmul %1, %3, %cst {dimension_numbers = #tpu.dot_dimension_numbers<[1], [0], [0], [1], [0, 0, 1, 1], [], []>} : vector<28x32xf32>, vector<32x168xf32>, vector<28x168xf32> -> vector<28x168xf32>
    %c0_5 = arith.constant 0 : index
    %c1 = arith.constant 1 : index
    %c0_6 = arith.constant 0 : index
    %5 = vector.load %arg1[%c0_5, %c1, %c0_6] : memref<2x32x32xf32, #tpu.memory_space<vmem>>, vector<1x28x32xf32>
    %6 = vector.shape_cast %5 : vector<1x28x32xf32> to vector<28x32xf32>
    %c1_7 = arith.constant 1 : index
    %c0_8 = arith.constant 0 : index
    %c0_9 = arith.constant 0 : index
    %7 = vector.load %arg2[%c1_7, %c0_8, %c0_9] : memref<5x32x168xf32, #tpu.memory_space<vmem>>, vector<1x32x168xf32>
    %8 = vector.shape_cast %7 : vector<1x32x168xf32> to vector<32x168xf32>
    %cst_10 = arith.constant dense<0.000000e+00> : vector<28x168xf32>
    %9 = tpu.matmul %6, %8, %cst_10 {dimension_numbers = #tpu.dot_dimension_numbers<[1], [0], [0], [1], [0, 0, 1, 1], [], []>} : vector<28x32xf32>, vector<32x168xf32>, vector<28x168xf32> -> vector<28x168xf32>
    %10 = arith.addf %4, %9 : vector<28x168xf32>
    %c0_11 = arith.constant 0 : index
    %c2 = arith.constant 2 : index
    %c0_12 = arith.constant 0 : index
    %11 = vector.load %arg1[%c0_11, %c2, %c0_12] : memref<2x32x32xf32, #tpu.memory_space<vmem>>, vector<1x28x32xf32>
    %12 = vector.shape_cast %11 : vector<1x28x32xf32> to vector<28x32xf32>
    %c2_13 = arith.constant 2 : index
    %c0_14 = arith.constant 0 : index
    %c0_15 = arith.constant 0 : index
    %13 = vector.load %arg2[%c2_13, %c0_14, %c0_15] : memref<5x32x168xf32, #tpu.memory_space<vmem>>, vector<1x32x168xf32>
    %14 = vector.shape_cast %13 : vector<1x32x168xf32> to vector<32x168xf32>
    %cst_16 = arith.constant dense<0.000000e+00> : vector<28x168xf32>
    %15 = tpu.matmul %12, %14, %cst_16 {dimension_numbers = #tpu.dot_dimension_numbers<[1], [0], [0], [1], [0, 0, 1, 1], [], []>} : vector<28x32xf32>, vector<32x168xf32>, vector<28x168xf32> -> vector<28x168xf32>
    %16 = arith.addf %10, %15 : vector<28x168xf32>
    %c0_17 = arith.constant 0 : index
    %c3 = arith.constant 3 : index
    %c0_18 = arith.constant 0 : index
    %17 = vector.load %arg1[%c0_17, %c3, %c0_18] : memref<2x32x32xf32, #tpu.memory_space<vmem>>, vector<1x28x32xf32>
    %18 = vector.shape_cast %17 : vector<1x28x32xf32> to vector<28x32xf32>
    %c3_19 = arith.constant 3 : index
    %c0_20 = arith.constant 0 : index
    %c0_21 = arith.constant 0 : index
    %19 = vector.load %arg2[%c3_19, %c0_20, %c0_21] : memref<5x32x168xf32, #tpu.memory_space<vmem>>, vector<1x32x168xf32>
    %20 = vector.shape_cast %19 : vector<1x32x168xf32> to vector<32x168xf32>
    %cst_22 = arith.constant dense<0.000000e+00> : vector<28x168xf32>
    %21 = tpu.matmul %18, %20, %cst_22 {dimension_numbers = #tpu.dot_dimension_numbers<[1], [0], [0], [1], [0, 0, 1, 1], [], []>} : vector<28x32xf32>, vector<32x168xf32>, vector<28x168xf32> -> vector<28x168xf32>
    %22 = arith.addf %16, %21 : vector<28x168xf32>
    %c0_23 = arith.constant 0 : index
    %c4 = arith.constant 4 : index
    %c0_24 = arith.constant 0 : index
    %23 = vector.load %arg1[%c0_23, %c4, %c0_24] : memref<2x32x32xf32, #tpu.memory_space<vmem>>, vector<1x28x32xf32>
    %24 = vector.shape_cast %23 : vector<1x28x32xf32> to vector<28x32xf32>
    %c4_25 = arith.constant 4 : index
    %c0_26 = arith.constant 0 : index
    %c0_27 = arith.constant 0 : index
    %25 = vector.load %arg2[%c4_25, %c0_26, %c0_27] : memref<5x32x168xf32, #tpu.memory_space<vmem>>, vector<1x32x168xf32>
    %26 = vector.shape_cast %25 : vector<1x32x168xf32> to vector<32x168xf32>
    %cst_28 = arith.constant dense<0.000000e+00> : vector<28x168xf32>
    %27 = tpu.matmul %24, %26, %cst_28 {dimension_numbers = #tpu.dot_dimension_numbers<[1], [0], [0], [1], [0, 0, 1, 1], [], []>} : vector<28x32xf32>, vector<32x168xf32>, vector<28x168xf32> -> vector<28x168xf32>
    %28 = arith.addf %22, %27 : vector<28x168xf32>
    %c0_29 = arith.constant 0 : index
    %c0_30 = arith.constant 0 : index
    %29 = vector.load %arg3[%c0_29, %c0_30] : memref<1x168xf32, #tpu.memory_space<vmem>>, vector<1x168xf32>
    %30 = vector.broadcast %29 : vector<1x168xf32> to vector<28x168xf32>
    %31 = arith.addf %28, %30 : vector<28x168xf32>
    %32 = math.tanh %31 : vector<28x168xf32>
    %c0_31 = arith.constant 0 : index
    %c0_32 = arith.constant 0 : index
    %33 = vector.load %arg6[%c0_31, %c0_32] : memref<14x28xf32, #tpu.memory_space<vmem>>, vector<14x28xf32>
    %cst_33 = arith.constant dense<0.000000e+00> : vector<14x168xf32>
    %34 = tpu.matmul %33, %32, %cst_33 {dimension_numbers = #tpu.dot_dimension_numbers<[1], [0], [0], [1], [0, 0, 1, 1], [], []>} : vector<14x28xf32>, vector<28x168xf32>, vector<14x168xf32> -> vector<14x168xf32>
    %c0_34 = arith.constant 0 : index
    %c0_35 = arith.constant 0 : index
    %35 = vector.load %arg7[%c0_34, %c0_35] : memref<168x84xf32, #tpu.memory_space<vmem>>, vector<168x84xf32>
    %cst_36 = arith.constant dense<0.000000e+00> : vector<14x84xf32>
    %36 = tpu.matmul %34, %35, %cst_36 {dimension_numbers = #tpu.dot_dimension_numbers<[1], [0], [0], [1], [0, 0, 1, 1], [], []>} : vector<14x168xf32>, vector<168x84xf32>, vector<14x84xf32> -> vector<14x84xf32>
    %c0_37 = arith.constant 0 : index
    %c0_38 = arith.constant 0 : index
    %37 = vector.load %arg16[%c0_37, %c0_38] : memref<14x84xf32, #tpu.memory_space<vmem>>, vector<14x84xf32>
    tpu.vector_store %arg16[%c0_37, %c0_38], %36 {strides = array<i32>} : memref<14x84xf32, #tpu.memory_space<vmem>>, vector<14x84xf32>,
    %c0_39 = arith.constant 0 : index
    %c0_40 = arith.constant 0 : index
    %38 = vector.load %arg16[%c0_39, %c0_40] : memref<14x84xf32, #tpu.memory_space<vmem>>, vector<10x84xf32>
    %c0_41 = arith.constant 0 : index
    %c0_42 = arith.constant 0 : index
    %c0_43 = arith.constant 0 : index
    %39 = vector.load %arg4[%c0_41, %c0_42, %c0_43] : memref<5x84x160xf32, #tpu.memory_space<vmem>>, vector<1x84x160xf32>
    %40 = vector.shape_cast %39 : vector<1x84x160xf32> to vector<84x160xf32>
    %cst_44 = arith.constant dense<0.000000e+00> : vector<10x160xf32>
    %41 = tpu.matmul %38, %40, %cst_44 {dimension_numbers = #tpu.dot_dimension_numbers<[1], [0], [0], [1], [0, 0, 1, 1], [], []>} : vector<10x84xf32>, vector<84x160xf32>, vector<10x160xf32> -> vector<10x160xf32>
    %c1_45 = arith.constant 1 : index
    %c0_46 = arith.constant 0 : index
    %42 = vector.load %arg16[%c1_45, %c0_46] : memref<14x84xf32, #tpu.memory_space<vmem>>, vector<10x84xf32>
    %c1_47 = arith.constant 1 : index
    %c0_48 = arith.constant 0 : index
    %c0_49 = arith.constant 0 : index
    %43 = vector.load %arg4[%c1_47, %c0_48, %c0_49] : memref<5x84x160xf32, #tpu.memory_space<vmem>>, vector<1x84x160xf32>
    %44 = vector.shape_cast %43 : vector<1x84x160xf32> to vector<84x160xf32>
    %cst_50 = arith.constant dense<0.000000e+00> : vector<10x160xf32>
    %45 = tpu.matmul %42, %44, %cst_50 {dimension_numbers = #tpu.dot_dimension_numbers<[1], [0], [0], [1], [0, 0, 1, 1], [], []>} : vector<10x84xf32>, vector<84x160xf32>, vector<10x160xf32> -> vector<10x160xf32>
    %46 = arith.addf %41, %45 : vector<10x160xf32>
    %c2_51 = arith.constant 2 : index
    %c0_52 = arith.constant 0 : index
    %47 = vector.load %arg16[%c2_51, %c0_52] : memref<14x84xf32, #tpu.memory_space<vmem>>, vector<10x84xf32>
    %c2_53 = arith.constant 2 : index
    %c0_54 = arith.constant 0 : index
    %c0_55 = arith.constant 0 : index
    %48 = vector.load %arg4[%c2_53, %c0_54, %c0_55] : memref<5x84x160xf32, #tpu.memory_space<vmem>>, vector<1x84x160xf32>
    %49 = vector.shape_cast %48 : vector<1x84x160xf32> to vector<84x160xf32>
    %cst_56 = arith.constant dense<0.000000e+00> : vector<10x160xf32>
    %50 = tpu.matmul %47, %49, %cst_56 {dimension_numbers = #tpu.dot_dimension_numbers<[1], [0], [0], [1], [0, 0, 1, 1], [], []>} : vector<10x84xf32>, vector<84x160xf32>, vector<10x160xf32> -> vector<10x160xf32>
    %51 = arith.addf %46, %50 : vector<10x160xf32>
    %c3_57 = arith.constant 3 : index
    %c0_58 = arith.constant 0 : index
    %52 = vector.load %arg16[%c3_57, %c0_58] : memref<14x84xf32, #tpu.memory_space<vmem>>, vector<10x84xf32>
    %c3_59 = arith.constant 3 : index
    %c0_60 = arith.constant 0 : index
    %c0_61 = arith.constant 0 : index
    %53 = vector.load %arg4[%c3_59, %c0_60, %c0_61] : memref<5x84x160xf32, #tpu.memory_space<vmem>>, vector<1x84x160xf32>
    %54 = vector.shape_cast %53 : vector<1x84x160xf32> to vector<84x160xf32>
    %cst_62 = arith.constant dense<0.000000e+00> : vector<10x160xf32>
    %55 = tpu.matmul %52, %54, %cst_62 {dimension_numbers = #tpu.dot_dimension_numbers<[1], [0], [0], [1], [0, 0, 1, 1], [], []>} : vector<10x84xf32>, vector<84x160xf32>, vector<10x160xf32> -> vector<10x160xf32>
    %56 = arith.addf %51, %55 : vector<10x160xf32>
    %c4_63 = arith.constant 4 : index
    %c0_64 = arith.constant 0 : index
    %57 = vector.load %arg16[%c4_63, %c0_64] : memref<14x84xf32, #tpu.memory_space<vmem>>, vector<10x84xf32>
    %c4_65 = arith.constant 4 : index
    %c0_66 = arith.constant 0 : index
    %c0_67 = arith.constant 0 : index
    %58 = vector.load %arg4[%c4_65, %c0_66, %c0_67] : memref<5x84x160xf32, #tpu.memory_space<vmem>>, vector<1x84x160xf32>
    %59 = vector.shape_cast %58 : vector<1x84x160xf32> to vector<84x160xf32>
    %cst_68 = arith.constant dense<0.000000e+00> : vector<10x160xf32>
    %60 = tpu.matmul %57, %59, %cst_68 {dimension_numbers = #tpu.dot_dimension_numbers<[1], [0], [0], [1], [0, 0, 1, 1], [], []>} : vector<10x84xf32>, vector<84x160xf32>, vector<10x160xf32> -> vector<10x160xf32>
    %61 = arith.addf %56, %60 : vector<10x160xf32>
    %c0_69 = arith.constant 0 : index
    %c0_70 = arith.constant 0 : index
    %62 = vector.load %arg17[%c0_69, %c0_70] : memref<20x160xf32, #tpu.memory_space<vmem>>, vector<10x160xf32>
    tpu.vector_store %arg17[%c0_69, %c0_70], %61 {strides = array<i32>} : memref<20x160xf32, #tpu.memory_space<vmem>>, vector<10x160xf32>,
    %c1_71 = arith.constant 1 : index
    %c0_72 = arith.constant 0 : index
    %c0_73 = arith.constant 0 : index
    %63 = vector.load %arg1[%c1_71, %c0_72, %c0_73] : memref<2x32x32xf32, #tpu.memory_space<vmem>>, vector<1x28x32xf32>
    %64 = vector.shape_cast %63 : vector<1x28x32xf32> to vector<28x32xf32>
    %c0_74 = arith.constant 0 : index
    %c0_75 = arith.constant 0 : index
    %c0_76 = arith.constant 0 : index
    %65 = vector.load %arg2[%c0_74, %c0_75, %c0_76] : memref<5x32x168xf32, #tpu.memory_space<vmem>>, vector<1x32x168xf32>
    %66 = vector.shape_cast %65 : vector<1x32x168xf32> to vector<32x168xf32>
    %cst_77 = arith.constant dense<0.000000e+00> : vector<28x168xf32>
    %67 = tpu.matmul %64, %66, %cst_77 {dimension_numbers = #tpu.dot_dimension_numbers<[1], [0], [0], [1], [0, 0, 1, 1], [], []>} : vector<28x32xf32>, vector<32x168xf32>, vector<28x168xf32> -> vector<28x168xf32>
    %c1_78 = arith.constant 1 : index
    %c1_79 = arith.constant 1 : index
    %c0_80 = arith.constant 0 : index
    %68 = vector.load %arg1[%c1_78, %c1_79, %c0_80] : memref<2x32x32xf32, #tpu.memory_space<vmem>>, vector<1x28x32xf32>
    %69 = vector.shape_cast %68 : vector<1x28x32xf32> to vector<28x32xf32>
    %c1_81 = arith.constant 1 : index
    %c0_82 = arith.constant 0 : index
    %c0_83 = arith.constant 0 : index
    %70 = vector.load %arg2[%c1_81, %c0_82, %c0_83] : memref<5x32x168xf32, #tpu.memory_space<vmem>>, vector<1x32x168xf32>
    %71 = vector.shape_cast %70 : vector<1x32x168xf32> to vector<32x168xf32>
    %cst_84 = arith.constant dense<0.000000e+00> : vector<28x168xf32>
    %72 = tpu.matmul %69, %71, %cst_84 {dimension_numbers = #tpu.dot_dimension_numbers<[1], [0], [0], [1], [0, 0, 1, 1], [], []>} : vector<28x32xf32>, vector<32x168xf32>, vector<28x168xf32> -> vector<28x168xf32>
    %73 = arith.addf %67, %72 : vector<28x168xf32>
    %c1_85 = arith.constant 1 : index
    %c2_86 = arith.constant 2 : index
    %c0_87 = arith.constant 0 : index
    %74 = vector.load %arg1[%c1_85, %c2_86, %c0_87] : memref<2x32x32xf32, #tpu.memory_space<vmem>>, vector<1x28x32xf32>
    %75 = vector.shape_cast %74 : vector<1x28x32xf32> to vector<28x32xf32>
    %c2_88 = arith.constant 2 : index
    %c0_89 = arith.constant 0 : index
    %c0_90 = arith.constant 0 : index
    %76 = vector.load %arg2[%c2_88, %c0_89, %c0_90] : memref<5x32x168xf32, #tpu.memory_space<vmem>>, vector<1x32x168xf32>
    %77 = vector.shape_cast %76 : vector<1x32x168xf32> to vector<32x168xf32>
    %cst_91 = arith.constant dense<0.000000e+00> : vector<28x168xf32>
    %78 = tpu.matmul %75, %77, %cst_91 {dimension_numbers = #tpu.dot_dimension_numbers<[1], [0], [0], [1], [0, 0, 1, 1], [], []>} : vector<28x32xf32>, vector<32x168xf32>, vector<28x168xf32> -> vector<28x168xf32>
    %79 = arith.addf %73, %78 : vector<28x168xf32>
    %c1_92 = arith.constant 1 : index
    %c3_93 = arith.constant 3 : index
    %c0_94 = arith.constant 0 : index
    %80 = vector.load %arg1[%c1_92, %c3_93, %c0_94] : memref<2x32x32xf32, #tpu.memory_space<vmem>>, vector<1x28x32xf32>
    %81 = vector.shape_cast %80 : vector<1x28x32xf32> to vector<28x32xf32>
    %c3_95 = arith.constant 3 : index
    %c0_96 = arith.constant 0 : index
    %c0_97 = arith.constant 0 : index
    %82 = vector.load %arg2[%c3_95, %c0_96, %c0_97] : memref<5x32x168xf32, #tpu.memory_space<vmem>>, vector<1x32x168xf32>
    %83 = vector.shape_cast %82 : vector<1x32x168xf32> to vector<32x168xf32>
    %cst_98 = arith.constant dense<0.000000e+00> : vector<28x168xf32>
    %84 = tpu.matmul %81, %83, %cst_98 {dimension_numbers = #tpu.dot_dimension_numbers<[1], [0], [0], [1], [0, 0, 1, 1], [], []>} : vector<28x32xf32>, vector<32x168xf32>, vector<28x168xf32> -> vector<28x168xf32>
    %85 = arith.addf %79, %84 : vector<28x168xf32>
    %c1_99 = arith.constant 1 : index
    %c4_100 = arith.constant 4 : index
    %c0_101 = arith.constant 0 : index
    %86 = vector.load %arg1[%c1_99, %c4_100, %c0_101] : memref<2x32x32xf32, #tpu.memory_space<vmem>>, vector<1x28x32xf32>
    %87 = vector.shape_cast %86 : vector<1x28x32xf32> to vector<28x32xf32>
    %c4_102 = arith.constant 4 : index
    %c0_103 = arith.constant 0 : index
    %c0_104 = arith.constant 0 : index
    %88 = vector.load %arg2[%c4_102, %c0_103, %c0_104] : memref<5x32x168xf32, #tpu.memory_space<vmem>>, vector<1x32x168xf32>
    %89 = vector.shape_cast %88 : vector<1x32x168xf32> to vector<32x168xf32>
    %cst_105 = arith.constant dense<0.000000e+00> : vector<28x168xf32>
    %90 = tpu.matmul %87, %89, %cst_105 {dimension_numbers = #tpu.dot_dimension_numbers<[1], [0], [0], [1], [0, 0, 1, 1], [], []>} : vector<28x32xf32>, vector<32x168xf32>, vector<28x168xf32> -> vector<28x168xf32>
    %91 = arith.addf %85, %90 : vector<28x168xf32>
    %c0_106 = arith.constant 0 : index
    %c0_107 = arith.constant 0 : index
    %92 = vector.load %arg3[%c0_106, %c0_107] : memref<1x168xf32, #tpu.memory_space<vmem>>, vector<1x168xf32>
    %93 = vector.broadcast %92 : vector<1x168xf32> to vector<28x168xf32>
    %94 = arith.addf %91, %93 : vector<28x168xf32>
    %95 = math.tanh %94 : vector<28x168xf32>
    %c0_108 = arith.constant 0 : index
    %c0_109 = arith.constant 0 : index
    %96 = vector.load %arg6[%c0_108, %c0_109] : memref<14x28xf32, #tpu.memory_space<vmem>>, vector<14x28xf32>
    %cst_110 = arith.constant dense<0.000000e+00> : vector<14x168xf32>
    %97 = tpu.matmul %96, %95, %cst_110 {dimension_numbers = #tpu.dot_dimension_numbers<[1], [0], [0], [1], [0, 0, 1, 1], [], []>} : vector<14x28xf32>, vector<28x168xf32>, vector<14x168xf32> -> vector<14x168xf32>
    %c0_111 = arith.constant 0 : index
    %c0_112 = arith.constant 0 : index
    %98 = vector.load %arg7[%c0_111, %c0_112] : memref<168x84xf32, #tpu.memory_space<vmem>>, vector<168x84xf32>
    %cst_113 = arith.constant dense<0.000000e+00> : vector<14x84xf32>
    %99 = tpu.matmul %97, %98, %cst_113 {dimension_numbers = #tpu.dot_dimension_numbers<[1], [0], [0], [1], [0, 0, 1, 1], [], []>} : vector<14x168xf32>, vector<168x84xf32>, vector<14x84xf32> -> vector<14x84xf32>
    %c0_114 = arith.constant 0 : index
    %c0_115 = arith.constant 0 : index
    %100 = vector.load %arg16[%c0_114, %c0_115] : memref<14x84xf32, #tpu.memory_space<vmem>>, vector<14x84xf32>
    tpu.vector_store %arg16[%c0_114, %c0_115], %99 {strides = array<i32>} : memref<14x84xf32, #tpu.memory_space<vmem>>, vector<14x84xf32>,
    %c0_116 = arith.constant 0 : index
    %c0_117 = arith.constant 0 : index
    %101 = vector.load %arg16[%c0_116, %c0_117] : memref<14x84xf32, #tpu.memory_space<vmem>>, vector<10x84xf32>
    %c0_118 = arith.constant 0 : index
    %c0_119 = arith.constant 0 : index
    %c0_120 = arith.constant 0 : index
    %102 = vector.load %arg4[%c0_118, %c0_119, %c0_120] : memref<5x84x160xf32, #tpu.memory_space<vmem>>, vector<1x84x160xf32>
    %103 = vector.shape_cast %102 : vector<1x84x160xf32> to vector<84x160xf32>
    %cst_121 = arith.constant dense<0.000000e+00> : vector<10x160xf32>
    %104 = tpu.matmul %101, %103, %cst_121 {dimension_numbers = #tpu.dot_dimension_numbers<[1], [0], [0], [1], [0, 0, 1, 1], [], []>} : vector<10x84xf32>, vector<84x160xf32>, vector<10x160xf32> -> vector<10x160xf32>
    %c1_122 = arith.constant 1 : index
    %c0_123 = arith.constant 0 : index
    %105 = vector.load %arg16[%c1_122, %c0_123] : memref<14x84xf32, #tpu.memory_space<vmem>>, vector<10x84xf32>
    %c1_124 = arith.constant 1 : index
    %c0_125 = arith.constant 0 : index
    %c0_126 = arith.constant 0 : index
    %106 = vector.load %arg4[%c1_124, %c0_125, %c0_126] : memref<5x84x160xf32, #tpu.memory_space<vmem>>, vector<1x84x160xf32>
    %107 = vector.shape_cast %106 : vector<1x84x160xf32> to vector<84x160xf32>
    %cst_127 = arith.constant dense<0.000000e+00> : vector<10x160xf32>
    %108 = tpu.matmul %105, %107, %cst_127 {dimension_numbers = #tpu.dot_dimension_numbers<[1], [0], [0], [1], [0, 0, 1, 1], [], []>} : vector<10x84xf32>, vector<84x160xf32>, vector<10x160xf32> -> vector<10x160xf32>
    %109 = arith.addf %104, %108 : vector<10x160xf32>
    %c2_128 = arith.constant 2 : index
    %c0_129 = arith.constant 0 : index
    %110 = vector.load %arg16[%c2_128, %c0_129] : memref<14x84xf32, #tpu.memory_space<vmem>>, vector<10x84xf32>
    %c2_130 = arith.constant 2 : index
    %c0_131 = arith.constant 0 : index
    %c0_132 = arith.constant 0 : index
    %111 = vector.load %arg4[%c2_130, %c0_131, %c0_132] : memref<5x84x160xf32, #tpu.memory_space<vmem>>, vector<1x84x160xf32>
    %112 = vector.shape_cast %111 : vector<1x84x160xf32> to vector<84x160xf32>
    %cst_133 = arith.constant dense<0.000000e+00> : vector<10x160xf32>
    %113 = tpu.matmul %110, %112, %cst_133 {dimension_numbers = #tpu.dot_dimension_numbers<[1], [0], [0], [1], [0, 0, 1, 1], [], []>} : vector<10x84xf32>, vector<84x160xf32>, vector<10x160xf32> -> vector<10x160xf32>
    %114 = arith.addf %109, %113 : vector<10x160xf32>
    %c3_134 = arith.constant 3 : index
    %c0_135 = arith.constant 0 : index
    %115 = vector.load %arg16[%c3_134, %c0_135] : memref<14x84xf32, #tpu.memory_space<vmem>>, vector<10x84xf32>
    %c3_136 = arith.constant 3 : index
    %c0_137 = arith.constant 0 : index
    %c0_138 = arith.constant 0 : index
    %116 = vector.load %arg4[%c3_136, %c0_137, %c0_138] : memref<5x84x160xf32, #tpu.memory_space<vmem>>, vector<1x84x160xf32>
    %117 = vector.shape_cast %116 : vector<1x84x160xf32> to vector<84x160xf32>
    %cst_139 = arith.constant dense<0.000000e+00> : vector<10x160xf32>
    %118 = tpu.matmul %115, %117, %cst_139 {dimension_numbers = #tpu.dot_dimension_numbers<[1], [0], [0], [1], [0, 0, 1, 1], [], []>} : vector<10x84xf32>, vector<84x160xf32>, vector<10x160xf32> -> vector<10x160xf32>
    %119 = arith.addf %114, %118 : vector<10x160xf32>
    %c4_140 = arith.constant 4 : index
    %c0_141 = arith.constant 0 : index
    %120 = vector.load %arg16[%c4_140, %c0_141] : memref<14x84xf32, #tpu.memory_space<vmem>>, vector<10x84xf32>
    %c4_142 = arith.constant 4 : index
    %c0_143 = arith.constant 0 : index
    %c0_144 = arith.constant 0 : index
    %121 = vector.load %arg4[%c4_142, %c0_143, %c0_144] : memref<5x84x160xf32, #tpu.memory_space<vmem>>, vector<1x84x160xf32>
    %122 = vector.shape_cast %121 : vector<1x84x160xf32> to vector<84x160xf32>
    %cst_145 = arith.constant dense<0.000000e+00> : vector<10x160xf32>
    %123 = tpu.matmul %120, %122, %cst_145 {dimension_numbers = #tpu.dot_dimension_numbers<[1], [0], [0], [1], [0, 0, 1, 1], [], []>} : vector<10x84xf32>, vector<84x160xf32>, vector<10x160xf32> -> vector<10x160xf32>
    %124 = arith.addf %119, %123 : vector<10x160xf32>
    %c10 = arith.constant 10 : index
    %c0_146 = arith.constant 0 : index
    %125 = vector.load %arg17[%c10, %c0_146] : memref<20x160xf32, #tpu.memory_space<vmem>>, vector<10x160xf32>
    tpu.vector_store %arg17[%c10, %c0_146], %124 {strides = array<i32>} : memref<20x160xf32, #tpu.memory_space<vmem>>, vector<10x160xf32>,
    %c0_147 = arith.constant 0 : index
    %c0_148 = arith.constant 0 : index
    %126 = vector.load %arg17[%c0_147, %c0_148] : memref<20x160xf32, #tpu.memory_space<vmem>>, vector<20x160xf32>
    %c0_149 = arith.constant 0 : index
    %c0_150 = arith.constant 0 : index
    %127 = vector.load %arg5[%c0_149, %c0_150] : memref<1x160xf32, #tpu.memory_space<vmem>>, vector<1x160xf32>
    %128 = vector.broadcast %127 : vector<1x160xf32> to vector<20x160xf32>
    %129 = arith.addf %126, %128 : vector<20x160xf32>
    %130 = math.tanh %129 : vector<20x160xf32>
    %c0_151 = arith.constant 0 : index
    %c0_152 = arith.constant 0 : index
    %c0_153 = arith.constant 0 : index
    %131 = vector.load %arg8[%c0_151, %c0_152, %c0_153] : memref<5x2x20xf32, #tpu.memory_space<vmem>>, vector<1x2x20xf32>
    %132 = vector.shape_cast %131 : vector<1x2x20xf32> to vector<2x20xf32>
    %cst_154 = arith.constant dense<0.000000e+00> : vector<2x160xf32>
    %133 = tpu.matmul %132, %130, %cst_154 {dimension_numbers = #tpu.dot_dimension_numbers<[1], [0], [0], [1], [0, 0, 1, 1], [], []>} : vector<2x20xf32>, vector<20x160xf32>, vector<2x160xf32> -> vector<2x160xf32>
    %c0_155 = arith.constant 0 : index
    %c0_156 = arith.constant 0 : index
    %c0_157 = arith.constant 0 : index
    %134 = vector.load %arg9[%c0_155, %c0_156, %c0_157] : memref<5x160x120xf32, #tpu.memory_space<vmem>>, vector<1x160x120xf32>
    %135 = vector.shape_cast %134 : vector<1x160x120xf32> to vector<160x120xf32>
    %cst_158 = arith.constant dense<0.000000e+00> : vector<2x120xf32>
    %136 = tpu.matmul %133, %135, %cst_158 {dimension_numbers = #tpu.dot_dimension_numbers<[1], [0], [0], [1], [0, 0, 1, 1], [], []>} : vector<2x160xf32>, vector<160x120xf32>, vector<2x120xf32> -> vector<2x120xf32>
    %c1_159 = arith.constant 1 : index
    %c0_160 = arith.constant 0 : index
    %c0_161 = arith.constant 0 : index
    %137 = vector.load %arg8[%c1_159, %c0_160, %c0_161] : memref<5x2x20xf32, #tpu.memory_space<vmem>>, vector<1x2x20xf32>
    %138 = vector.shape_cast %137 : vector<1x2x20xf32> to vector<2x20xf32>
    %cst_162 = arith.constant dense<0.000000e+00> : vector<2x160xf32>
    %139 = tpu.matmul %138, %130, %cst_162 {dimension_numbers = #tpu.dot_dimension_numbers<[1], [0], [0], [1], [0, 0, 1, 1], [], []>} : vector<2x20xf32>, vector<20x160xf32>, vector<2x160xf32> -> vector<2x160xf32>
    %c1_163 = arith.constant 1 : index
    %c0_164 = arith.constant 0 : index
    %c0_165 = arith.constant 0 : index
    %140 = vector.load %arg9[%c1_163, %c0_164, %c0_165] : memref<5x160x120xf32, #tpu.memory_space<vmem>>, vector<1x160x120xf32>
    %141 = vector.shape_cast %140 : vector<1x160x120xf32> to vector<160x120xf32>
    %cst_166 = arith.constant dense<0.000000e+00> : vector<2x120xf32>
    %142 = tpu.matmul %139, %141, %cst_166 {dimension_numbers = #tpu.dot_dimension_numbers<[1], [0], [0], [1], [0, 0, 1, 1], [], []>} : vector<2x160xf32>, vector<160x120xf32>, vector<2x120xf32> -> vector<2x120xf32>
    %143 = arith.addf %136, %142 : vector<2x120xf32>
    %c2_167 = arith.constant 2 : index
    %c0_168 = arith.constant 0 : index
    %c0_169 = arith.constant 0 : index
    %144 = vector.load %arg8[%c2_167, %c0_168, %c0_169] : memref<5x2x20xf32, #tpu.memory_space<vmem>>, vector<1x2x20xf32>
    %145 = vector.shape_cast %144 : vector<1x2x20xf32> to vector<2x20xf32>
    %cst_170 = arith.constant dense<0.000000e+00> : vector<2x160xf32>
    %146 = tpu.matmul %145, %130, %cst_170 {dimension_numbers = #tpu.dot_dimension_numbers<[1], [0], [0], [1], [0, 0, 1, 1], [], []>} : vector<2x20xf32>, vector<20x160xf32>, vector<2x160xf32> -> vector<2x160xf32>
    %c2_171 = arith.constant 2 : index
    %c0_172 = arith.constant 0 : index
    %c0_173 = arith.constant 0 : index
    %147 = vector.load %arg9[%c2_171, %c0_172, %c0_173] : memref<5x160x120xf32, #tpu.memory_space<vmem>>, vector<1x160x120xf32>
    %148 = vector.shape_cast %147 : vector<1x160x120xf32> to vector<160x120xf32>
    %cst_174 = arith.constant dense<0.000000e+00> : vector<2x120xf32>
    %149 = tpu.matmul %146, %148, %cst_174 {dimension_numbers = #tpu.dot_dimension_numbers<[1], [0], [0], [1], [0, 0, 1, 1], [], []>} : vector<2x160xf32>, vector<160x120xf32>, vector<2x120xf32> -> vector<2x120xf32>
    %150 = arith.addf %143, %149 : vector<2x120xf32>
    %c3_175 = arith.constant 3 : index
    %c0_176 = arith.constant 0 : index
    %c0_177 = arith.constant 0 : index
    %151 = vector.load %arg8[%c3_175, %c0_176, %c0_177] : memref<5x2x20xf32, #tpu.memory_space<vmem>>, vector<1x2x20xf32>
    %152 = vector.shape_cast %151 : vector<1x2x20xf32> to vector<2x20xf32>
    %cst_178 = arith.constant dense<0.000000e+00> : vector<2x160xf32>
    %153 = tpu.matmul %152, %130, %cst_178 {dimension_numbers = #tpu.dot_dimension_numbers<[1], [0], [0], [1], [0, 0, 1, 1], [], []>} : vector<2x20xf32>, vector<20x160xf32>, vector<2x160xf32> -> vector<2x160xf32>
    %c3_179 = arith.constant 3 : index
    %c0_180 = arith.constant 0 : index
    %c0_181 = arith.constant 0 : index
    %154 = vector.load %arg9[%c3_179, %c0_180, %c0_181] : memref<5x160x120xf32, #tpu.memory_space<vmem>>, vector<1x160x120xf32>
    %155 = vector.shape_cast %154 : vector<1x160x120xf32> to vector<160x120xf32>
    %cst_182 = arith.constant dense<0.000000e+00> : vector<2x120xf32>
    %156 = tpu.matmul %153, %155, %cst_182 {dimension_numbers = #tpu.dot_dimension_numbers<[1], [0], [0], [1], [0, 0, 1, 1], [], []>} : vector<2x160xf32>, vector<160x120xf32>, vector<2x120xf32> -> vector<2x120xf32>
    %157 = arith.addf %150, %156 : vector<2x120xf32>
    %c4_183 = arith.constant 4 : index
    %c0_184 = arith.constant 0 : index
    %c0_185 = arith.constant 0 : index
    %158 = vector.load %arg8[%c4_183, %c0_184, %c0_185] : memref<5x2x20xf32, #tpu.memory_space<vmem>>, vector<1x2x20xf32>
    %159 = vector.shape_cast %158 : vector<1x2x20xf32> to vector<2x20xf32>
    %cst_186 = arith.constant dense<0.000000e+00> : vector<2x160xf32>
    %160 = tpu.matmul %159, %130, %cst_186 {dimension_numbers = #tpu.dot_dimension_numbers<[1], [0], [0], [1], [0, 0, 1, 1], [], []>} : vector<2x20xf32>, vector<20x160xf32>, vector<2x160xf32> -> vector<2x160xf32>
    %c4_187 = arith.constant 4 : index
    %c0_188 = arith.constant 0 : index
    %c0_189 = arith.constant 0 : index
    %161 = vector.load %arg9[%c4_187, %c0_188, %c0_189] : memref<5x160x120xf32, #tpu.memory_space<vmem>>, vector<1x160x120xf32>
    %162 = vector.shape_cast %161 : vector<1x160x120xf32> to vector<160x120xf32>
    %cst_190 = arith.constant dense<0.000000e+00> : vector<2x120xf32>
    %163 = tpu.matmul %160, %162, %cst_190 {dimension_numbers = #tpu.dot_dimension_numbers<[1], [0], [0], [1], [0, 0, 1, 1], [], []>} : vector<2x160xf32>, vector<160x120xf32>, vector<2x120xf32> -> vector<2x120xf32>
    %164 = arith.addf %157, %163 : vector<2x120xf32>
    %c0_191 = arith.constant 0 : index
    %c0_192 = arith.constant 0 : index
    %165 = vector.load %arg10[%c0_191, %c0_192] : memref<1x120xf32, #tpu.memory_space<vmem>>, vector<1x120xf32>
    %166 = vector.broadcast %165 : vector<1x120xf32> to vector<2x120xf32>
    %167 = arith.addf %164, %166 : vector<2x120xf32>
    %168 = math.tanh %167 : vector<2x120xf32>
    %c0_193 = arith.constant 0 : index
    %c0_194 = arith.constant 0 : index
    %169 = vector.load %arg11[%c0_193, %c0_194] : memref<120x84xf32, #tpu.memory_space<vmem>>, vector<120x84xf32>
    %cst_195 = arith.constant dense<0.000000e+00> : vector<2x84xf32>
    %170 = tpu.matmul %168, %169, %cst_195 {dimension_numbers = #tpu.dot_dimension_numbers<[1], [0], [0], [1], [0, 0, 1, 1], [], []>} : vector<2x120xf32>, vector<120x84xf32>, vector<2x84xf32> -> vector<2x84xf32>
    %c0_196 = arith.constant 0 : index
    %c0_197 = arith.constant 0 : index
    %171 = vector.load %arg12[%c0_196, %c0_197] : memref<1x84xf32, #tpu.memory_space<vmem>>, vector<1x84xf32>
    %172 = vector.broadcast %171 : vector<1x84xf32> to vector<2x84xf32>
    %173 = arith.addf %170, %172 : vector<2x84xf32>
    %174 = math.tanh %173 : vector<2x84xf32>
    %c0_198 = arith.constant 0 : index
    %c0_199 = arith.constant 0 : index
    %175 = vector.load %arg13[%c0_198, %c0_199] : memref<84x10xf32, #tpu.memory_space<vmem>>, vector<84x10xf32>
    %cst_200 = arith.constant dense<0.000000e+00> : vector<2x10xf32>
    %176 = tpu.matmul %174, %175, %cst_200 {dimension_numbers = #tpu.dot_dimension_numbers<[1], [0], [0], [1], [0, 0, 1, 1], [], []>} : vector<2x84xf32>, vector<84x10xf32>, vector<2x10xf32> -> vector<2x10xf32>
    %c0_201 = arith.constant 0 : index
    %c0_202 = arith.constant 0 : index
    %177 = vector.load %arg14[%c0_201, %c0_202] : memref<1x10xf32, #tpu.memory_space<vmem>>, vector<1x10xf32>
    %178 = vector.broadcast %177 : vector<1x10xf32> to vector<2x10xf32>
    %179 = arith.addf %176, %178 : vector<2x10xf32>
    %cst_203 = arith.constant dense<0xFF800000> : vector<2xf32>
    %180 = vector.multi_reduction <maximumf>, %179, %cst_203 [1] : vector<2x10xf32> to vector<2xf32>
    %181 = vector.shape_cast %180 : vector<2xf32> to vector<2x1xf32>
    %182 = vector.broadcast %181 : vector<2x1xf32> to vector<2x10xf32>
    %183 = arith.subf %179, %182 : vector<2x10xf32>
    %184 = math.exp %183 : vector<2x10xf32>
    %cst_204 = arith.constant dense<0.000000e+00> : vector<2xf32>
    %185 = vector.multi_reduction <add>, %184, %cst_204 [1] : vector<2x10xf32> to vector<2xf32>
    %186 = vector.shape_cast %185 : vector<2xf32> to vector<2x1xf32>
    %187 = math.log %186 : vector<2x1xf32>
    %188 = vector.broadcast %187 : vector<2x1xf32> to vector<2x10xf32>
    %189 = arith.subf %183, %188 : vector<2x10xf32>
    %c0_205 = arith.constant 0 : index
    %c0_206 = arith.constant 0 : index
    %190 = vector.load %arg15[%c0_205, %c0_206] : memref<2x10xf32, #tpu.memory_space<vmem>>, vector<2x10xf32>
    tpu.vector_store %arg15[%c0_205, %c0_206], %189 {strides = array<i32>} : memref<2x10xf32, #tpu.memory_space<vmem>>, vector<2x10xf32>,
    return
  }
  func.func @transform_0(%arg0: i32) -> (i32, i32, i32) {
    %c0_i32 = arith.constant 0 : i32
    %c0_i32_0 = arith.constant 0 : i32
    %c0_i32_1 = arith.constant 0 : i32
    return %arg0, %c0_i32, %c0_i32_0 : i32, i32, i32
  }
  func.func @transform_1(%arg0: i32) -> (i32, i32, i32) {
    %c0_i32 = arith.constant 0 : i32
    %c0_i32_0 = arith.constant 0 : i32
    %c0_i32_1 = arith.constant 0 : i32
    %c0_i32_2 = arith.constant 0 : i32
    return %c0_i32, %c0_i32_0, %c0_i32_1 : i32, i32, i32
  }
  func.func @transform_2(%arg0: i32) -> (i32, i32) {
    %c0_i32 = arith.constant 0 : i32
    %c0_i32_0 = arith.constant 0 : i32
    %c0_i32_1 = arith.constant 0 : i32
    return %c0_i32, %c0_i32_0 : i32, i32
  }
  func.func @transform_3(%arg0: i32) -> (i32, i32, i32) {
    %c0_i32 = arith.constant 0 : i32
    %c0_i32_0 = arith.constant 0 : i32
    %c0_i32_1 = arith.constant 0 : i32
    %c0_i32_2 = arith.constant 0 : i32
    return %c0_i32, %c0_i32_0, %c0_i32_1 : i32, i32, i32
  }
  func.func @transform_4(%arg0: i32) -> (i32, i32) {
    %c0_i32 = arith.constant 0 : i32
    %c0_i32_0 = arith.constant 0 : i32
    %c0_i32_1 = arith.constant 0 : i32
    return %c0_i32, %c0_i32_0 : i32, i32
  }
  func.func @transform_5(%arg0: i32) -> (i32, i32) {
    %c0_i32 = arith.constant 0 : i32
    %c0_i32_0 = arith.constant 0 : i32
    %c0_i32_1 = arith.constant 0 : i32
    return %c0_i32, %c0_i32_0 : i32, i32
  }
  func.func @transform_6(%arg0: i32) -> (i32, i32) {
    %c0_i32 = arith.constant 0 : i32
    %c0_i32_0 = arith.constant 0 : i32
    %c0_i32_1 = arith.constant 0 : i32
    return %c0_i32, %c0_i32_0 : i32, i32
  }
  func.func @transform_7(%arg0: i32) -> (i32, i32, i32) {
    %c0_i32 = arith.constant 0 : i32
    %c0_i32_0 = arith.constant 0 : i32
    %c0_i32_1 = arith.constant 0 : i32
    %c0_i32_2 = arith.constant 0 : i32
    return %c0_i32, %c0_i32_0, %c0_i32_1 : i32, i32, i32
  }
  func.func @transform_8(%arg0: i32) -> (i32, i32, i32) {
    %c0_i32 = arith.constant 0 : i32
    %c0_i32_0 = arith.constant 0 : i32
    %c0_i32_1 = arith.constant 0 : i32
    %c0_i32_2 = arith.constant 0 : i32
    return %c0_i32, %c0_i32_0, %c0_i32_1 : i32, i32, i32
  }
  func.func @transform_9(%arg0: i32) -> (i32, i32) {
    %c0_i32 = arith.constant 0 : i32
    %c0_i32_0 = arith.constant 0 : i32
    %c0_i32_1 = arith.constant 0 : i32
    return %c0_i32, %c0_i32_0 : i32, i32
  }
  func.func @transform_10(%arg0: i32) -> (i32, i32) {
    %c0_i32 = arith.constant 0 : i32
    %c0_i32_0 = arith.constant 0 : i32
    %c0_i32_1 = arith.constant 0 : i32
    return %c0_i32, %c0_i32_0 : i32, i32
  }
  func.func @transform_11(%arg0: i32) -> (i32, i32) {
    %c0_i32 = arith.constant 0 : i32
    %c0_i32_0 = arith.constant 0 : i32
    %c0_i32_1 = arith.constant 0 : i32
    return %c0_i32, %c0_i32_0 : i32, i32
  }
  func.func @transform_12(%arg0: i32) -> (i32, i32) {
    %c0_i32 = arith.constant 0 : i32
    %c0_i32_0 = arith.constant 0 : i32
    %c0_i32_1 = arith.constant 0 : i32
    return %c0_i32, %c0_i32_0 : i32, i32
  }
  func.func @transform_13(%arg0: i32) -> (i32, i32) {
    %c0_i32 = arith.constant 0 : i32
    %c0_i32_0 = arith.constant 0 : i32
    %c0_i32_1 = arith.constant 0 : i32
    return %c0_i32, %c0_i32_0 : i32, i32
  }
  func.func @transform_14(%arg0: i32) -> (i32, i32) {
    %c0_i32 = arith.constant 0 : i32
    %c0_i32_0 = arith.constant 0 : i32
    return %arg0, %c0_i32 : i32, i32
  }
}

</mosaic_0001>

<llo_original>
// kernel: tile.13
$region0: #{tile.13}
  #allocation0 [shape = 's32[1]{0}', space=sflag, size = 0x4, scoped, tag = 'scoped memory for tile.13']
  %s0 = inlined_call_operand.vmem [shape: f32[6], index: 0, kind: input, shape index: {}]
  %s1 = inlined_call_operand.vmem [shape: f32[28,6], index: 1, kind: output, shape index: {}]
  // Predicated region
  $region2: #{tile.13} parent=0 // pred_check
    _
  $region3: #{tile.13} parent=0 // pred_check_branch
    %3 = sbr.rel (0) target = $region5
  $region4: #{tile.13} parent=0 // pred_region
    _
  $region5: #{tile.13} parent=0 // pred_fallthru
    _
  %v4 = vld [vmem:[%s0] ss:$0 sm:$0xff]
  %5 = vst [vmem:[%s1] sm:$0xff] %v4
  %s6 = scalar_lea.vmem %s1, 8
  %7 = vst [vmem:[%s6] sm:$0xff] %v4
  %s8 = scalar_lea.vmem %s1, 16
  %9 = vst [vmem:[%s8] sm:$0xff] %v4
  %s10 = scalar_lea.vmem %s1, 24
  %11 = vst [vmem:[%s10] sm:$0xff] %v4

// kernel: tile.14
$region0: #{tile.14}
  %s0 = inlined_call_operand.vmem [shape: f32[28,6], index: 0, kind: input, shape index: {}]
  %s1 = inlined_call_operand.vmem [shape: f32[1,168], index: 1, kind: output, shape index: {}]
  $region1: #{tile.14} parent=0
    #allocation0 [shape = 'u8[8192]{0}', space=vmem, size = 0x2000, scoped, tag = 'scoped mem for output reshape']
    %v2 = vld [vmem:[%s0] sm:$0x1]
    %vm3 = vcmask 48128
    %4 = vst.msk [vmem:[#allocation0] sm:$0x1] %vm3, %v2
    %s5 = scalar_lea.vmem %s0, 21
    %v6 = vld [vmem:[%s5] sm:$0x1]
    %s7 = scalar_lea.vmem %s0, 21
    %v8 = vld [vmem:[%s7] sm:$0x1]
    %vm9 = vcmask 15360
    %v10 = vsel %vm9, %v8, %v6
    %11 = vrot.lane.b32.xlu0 %v10, 126
    %v12 = vpop.permute.xlu0 %11
    %vm13 = vcmask 31744
    %s14 = scalar_lea.vmem [#allocation0], 8
    %15 = vst.msk [vmem:[%s14] sm:$0x1] %vm13, %v12
    %vm16 = vcmask 1048560
    %17 = vst.msk [vmem:[#allocation0] sm:$0x1] %vm16, %v12
    %s18 = scalar_lea.vmem %s0, 20
    %v19 = vld [vmem:[%s18] sm:$0x1]
    %20 = vrot.lane.b32.xlu0 %v19, 120
    %v21 = vpop.permute.xlu0 %20
    %vm22 = vcmask 1032128
    %23 = vst.msk [vmem:[#allocation0] sm:$0x1] %vm22, %v21
    %s24 = scalar_lea.vmem %s0, 19
    %v25 = vld [vmem:[%s24] sm:$0x1]
    %26 = vrot.lane.b32.xlu0 %v25, 114
    %v27 = vpop.permute.xlu0 %26
    %vm28 = vcmask 982928
    %29 = vst.msk [vmem:[#allocation0] sm:$0x1] %vm28, %v27
    %s30 = scalar_lea.vmem %s0, 18
    %v31 = vld [vmem:[%s30] sm:$0x1]
    %32 = vrot.lane.b32.xlu0 %v31, 108
    %v33 = vpop.permute.xlu0 %32
    %vm34 = vcmask 933728
    %35 = vst.msk [vmem:[#allocation0] sm:$0x1] %vm34, %v33
    %s36 = scalar_lea.vmem %s0, 17
    %v37 = vld [vmem:[%s36] sm:$0x1]
    %38 = vrot.lane.b32.xlu0 %v37, 102
    %v39 = vpop.permute.xlu0 %38
    %vm40 = vcmask 884528
    %41 = vst.msk [vmem:[#allocation0] sm:$0x1] %vm40, %v39
    %s42 = scalar_lea.vmem %s0, 16
    %v43 = vld [vmem:[%s42] sm:$0x1]
    %44 = vrot.lane.b32.xlu0 %v43, 96
    %v45 = vpop.permute.xlu0 %44
    %vm46 = vcmask 835328
    %47 = vst.msk [vmem:[#allocation0] sm:$0x1] %vm46, %v45
    %s48 = scalar_lea.vmem %s0, 15
    %v49 = vld [vmem:[%s48] sm:$0x1]
    %50 = vrot.lane.b32.xlu0 %v49, 90
    %v51 = vpop.permute.xlu0 %50
    %vm52 = vcmask 786128
    %53 = vst.msk [vmem:[#allocation0] sm:$0x1] %vm52, %v51
    %s54 = scalar_lea.vmem %s0, 14
    %v55 = vld [vmem:[%s54] sm:$0x1]
    %56 = vrot.lane.b32.xlu0 %v55, 84
    %v57 = vpop.permute.xlu0 %56
    %vm58 = vcmask 736928
    %59 = vst.msk [vmem:[#allocation0] sm:$0x1] %vm58, %v57
    %s60 = scalar_lea.vmem %s0, 13
    %v61 = vld [vmem:[%s60] sm:$0x1]
    %62 = vrot.lane.b32.xlu0 %v61, 78
    %v63 = vpop.permute.xlu0 %62
    %vm64 = vcmask 687728
    %65 = vst.msk [vmem:[#allocation0] sm:$0x1] %vm64, %v63
    %s66 = scalar_lea.vmem %s0, 12
    %v67 = vld [vmem:[%s66] sm:$0x1]
    %68 = vrot.lane.b32.xlu0 %v67, 72
    %v69 = vpop.permute.xlu0 %68
    %vm70 = vcmask 638528
    %71 = vst.msk [vmem:[#allocation0] sm:$0x1] %vm70, %v69
    %s72 = scalar_lea.vmem %s0, 11
    %v73 = vld [vmem:[%s72] sm:$0x1]
    %74 = vrot.lane.b32.xlu0 %v73, 66
    %v75 = vpop.permute.xlu0 %74
    %vm76 = vcmask 589328
    %77 = vst.msk [vmem:[#allocation0] sm:$0x1] %vm76, %v75
    %s78 = scalar_lea.vmem %s0, 10
    %v79 = vld [vmem:[%s78] sm:$0x1]
    %80 = vrot.lane.b32.xlu0 %v79, 60
    %v81 = vpop.permute.xlu0 %80
    %vm82 = vcmask 540128
    %83 = vst.msk [vmem:[#allocation0] sm:$0x1] %vm82, %v81
    %s84 = scalar_lea.vmem %s0, 9
    %v85 = vld [vmem:[%s84] sm:$0x1]
    %86 = vrot.lane.b32.xlu0 %v85, 54
    %v87 = vpop.permute.xlu0 %86
    %vm88 = vcmask 490928
    %89 = vst.msk [vmem:[#allocation0] sm:$0x1] %vm88, %v87
    %s90 = scalar_lea.vmem %s0, 8
    %v91 = vld [vmem:[%s90] sm:$0x1]
    %92 = vrot.lane.b32.xlu0 %v91, 48
    %v93 = vpop.permute.xlu0 %92
    %vm94 = vcmask 441728
    %95 = vst.msk [vmem:[#allocation0] sm:$0x1] %vm94, %v93
    %s96 = scalar_lea.vmem %s0, 7
    %v97 = vld [vmem:[%s96] sm:$0x1]
    %98 = vrot.lane.b32.xlu0 %v97, 42
    %v99 = vpop.permute.xlu0 %98
    %vm100 = vcmask 392528
    %101 = vst.msk [vmem:[#allocation0] sm:$0x1] %vm100, %v99
    %s102 = scalar_lea.vmem %s0, 6
    %v103 = vld [vmem:[%s102] sm:$0x1]
    %104 = vrot.lane.b32.xlu0 %v103, 36
    %v105 = vpop.permute.xlu0 %104
    %vm106 = vcmask 343328
    %107 = vst.msk [vmem:[#allocation0] sm:$0x1] %vm106, %v105
    %s108 = scalar_lea.vmem %s0, 27
    %v109 = vld [vmem:[%s108] sm:$0x1]
    %110 = vrot.lane.b32.xlu0 %v109, 34
    %v111 = vpop.permute.xlu0 %110
    %vm112 = vcmask 326928
    %s113 = scalar_lea.vmem [#allocation0], 8
    %114 = vst.msk [vmem:[%s113] sm:$0x1] %vm112, %v111
    %s115 = scalar_lea.vmem %s0, 5
    %v116 = vld [vmem:[%s115] sm:$0x1]
    %117 = vrot.lane.b32.xlu0 %v116, 30
    %v118 = vpop.permute.xlu0 %117
    %vm119 = vcmask 294128
    %120 = vst.msk [vmem:[#allocation0] sm:$0x1] %vm119, %v118
    %s121 = scalar_lea.vmem %s0, 26
    %v122 = vld [vmem:[%s121] sm:$0x1]
    %123 = vrot.lane.b32.xlu0 %v122, 28
    %v124 = vpop.permute.xlu0 %123
    %vm125 = vcmask 277728
    %s126 = scalar_lea.vmem [#allocation0], 8
    %127 = vst.msk [vmem:[%s126] sm:$0x1] %vm125, %v124
    %s128 = scalar_lea.vmem %s0, 4
    %v129 = vld [vmem:[%s128] sm:$0x1]
    %130 = vrot.lane.b32.xlu0 %v129, 24
    %v131 = vpop.permute.xlu0 %130
    %vm132 = vcmask 244928
    %133 = vst.msk [vmem:[#allocation0] sm:$0x1] %vm132, %v131
    %s134 = scalar_lea.vmem %s0, 25
    %v135 = vld [vmem:[%s134] sm:$0x1]
    %136 = vrot.lane.b32.xlu0 %v135, 22
    %v137 = vpop.permute.xlu0 %136
    %vm138 = vcmask 228528
    %s139 = scalar_lea.vmem [#allocation0], 8
    %140 = vst.msk [vmem:[%s139] sm:$0x1] %vm138, %v137
    %s141 = scalar_lea.vmem %s0, 3
    %v142 = vld [vmem:[%s141] sm:$0x1]
    %143 = vrot.lane.b32.xlu0 %v142, 18
    %v144 = vpop.permute.xlu0 %143
    %vm145 = vcmask 195728
    %146 = vst.msk [vmem:[#allocation0] sm:$0x1] %vm145, %v144
    %s147 = scalar_lea.vmem %s0, 24
    %v148 = vld [vmem:[%s147] sm:$0x1]
    %149 = vrot.lane.b32.xlu0 %v148, 16
    %v150 = vpop.permute.xlu0 %149
    %vm151 = vcmask 179328
    %s152 = scalar_lea.vmem [#allocation0], 8
    %153 = vst.msk [vmem:[%s152] sm:$0x1] %vm151, %v150
    %s154 = scalar_lea.vmem %s0, 2
    %v155 = vld [vmem:[%s154] sm:$0x1]
    %156 = vrot.lane.b32.xlu0 %v155, 12
    %v157 = vpop.permute.xlu0 %156
    %vm158 = vcmask 146528
    %159 = vst.msk [vmem:[#allocation0] sm:$0x1] %vm158, %v157
    %s160 = scalar_lea.vmem %s0, 23
    %v161 = vld [vmem:[%s160] sm:$0x1]
    %162 = vrot.lane.b32.xlu0 %v161, 10
    %v163 = vpop.permute.xlu0 %162
    %vm164 = vcmask 130128
    %s165 = scalar_lea.vmem [#allocation0], 8
    %166 = vst.msk [vmem:[%s165] sm:$0x1] %vm164, %v163
    %s167 = scalar_lea.vmem %s0, 1
    %v168 = vld [vmem:[%s167] sm:$0x1]
    %169 = vrot.lane.b32.xlu0 %v168, 6
    %v170 = vpop.permute.xlu0 %169
    %vm171 = vcmask 97328
    %172 = vst.msk [vmem:[#allocation0] sm:$0x1] %vm171, %v170
    %s173 = scalar_lea.vmem %s0, 22
    %v174 = vld [vmem:[%s173] sm:$0x1]
    %175 = vrot.lane.b32.xlu0 %v174, 4
    %v176 = vpop.permute.xlu0 %175
    %vm177 = vcmask 80928
    %s178 = scalar_lea.vmem [#allocation0], 8
    %179 = vst.msk [vmem:[%s178] sm:$0x1] %vm177, %v176
    %s181 = sshllo.u32 0, 1
    %v183 = vld [vmem:[#allocation0] sm:%s181]
    %s184 = sshllo.u32 0, 1
    %185 = vst [vmem:[%s1] sm:%s184] %v183
    %s186 = scalar_lea.vmem [#allocation0], 8
    %v187 = vld [vmem:[%s186] sm:%s181]
    %s188 = sshllo.u32 0, 1
    %s189 = scalar_lea.vmem %s1, 1
    %190 = vst [vmem:[%s189] sm:%s188] %v187

// kernel: tile.18
$region0: #{tile.18}
  #allocation0 [shape = 's32[1]{0}', space=sflag, size = 0x4, scoped, tag = 'scoped memory for tile.18']
  %s0 = inlined_call_operand.vmem [shape: f32[16], index: 0, kind: input, shape index: {}]
  %s1 = inlined_call_operand.vmem [shape: f32[10,16], index: 1, kind: output, shape index: {}]
  // Predicated region
  $region2: #{tile.18} parent=0 // pred_check
    _
  $region3: #{tile.18} parent=0 // pred_check_branch
    %3 = sbr.rel (0) target = $region5
  $region4: #{tile.18} parent=0 // pred_region
    _
  $region5: #{tile.18} parent=0 // pred_fallthru
    _
  %v4 = vld [vmem:[%s0] ss:$0 sm:$0xff]
  %5 = vst [vmem:[%s1] sm:$0xff] %v4
  %s6 = scalar_lea.vmem %s1, 8
  %7 = vst [vmem:[%s6] sm:$0xff] %v4

// kernel: tile.19
$region0: #{tile.19}
  %s0 = inlined_call_operand.vmem [shape: f32[10,16], index: 0, kind: input, shape index: {}]
  %s1 = inlined_call_operand.vmem [shape: f32[1,160], index: 1, kind: output, shape index: {}]
  $region1: #{tile.19} parent=0
    #allocation0 [shape = 'u8[8192]{0}', space=vmem, size = 0x2000, scoped, tag = 'scoped mem for output reshape']
    %s2 = smov 3
    %v3 = vld [vmem:[%s0] ss:$8 sm:%s2]
    %vm4 = vcmask 130048
    %5 = vst.msk [vmem:[#allocation0] ss:$8 sm:$0x3] %vm4, %v3
    %s6 = scalar_lea.vmem %s0, 7
    %v7 = vld [vmem:[%s6] sm:$0x1]
    %8 = vrot.lane.b32.xlu0 %v7, 112
    %v9 = vpop.permute.xlu0 %8
    %vm10 = vcmask 1048448
    %11 = vst.msk [vmem:[#allocation0] sm:$0x1] %vm10, %v9
    %s12 = scalar_lea.vmem %s0, 6
    %v13 = vld [vmem:[%s12] sm:$0x1]
    %14 = vrot.lane.b32.xlu0 %v13, 96
    %v15 = vpop.permute.xlu0 %14
    %vm16 = vcmask 917248
    %17 = vst.msk [vmem:[#allocation0] sm:$0x1] %vm16, %v15
    %s18 = scalar_lea.vmem %s0, 5
    %v19 = vld [vmem:[%s18] sm:$0x1]
    %20 = vrot.lane.b32.xlu0 %v19, 80
    %v21 = vpop.permute.xlu0 %20
    %vm22 = vcmask 786048
    %23 = vst.msk [vmem:[#allocation0] sm:$0x1] %vm22, %v21
    %s24 = scalar_lea.vmem %s0, 4
    %v25 = vld [vmem:[%s24] sm:$0x1]
    %26 = vrot.lane.b32.xlu0 %v25, 64
    %v27 = vpop.permute.xlu0 %26
    %vm28 = vcmask 654848
    %29 = vst.msk [vmem:[#allocation0] sm:$0x1] %vm28, %v27
    %s30 = scalar_lea.vmem %s0, 3
    %v31 = vld [vmem:[%s30] sm:$0x1]
    %32 = vrot.lane.b32.xlu0 %v31, 48
    %v33 = vpop.permute.xlu0 %32
    %vm34 = vcmask 523648
    %35 = vst.msk [vmem:[#allocation0] sm:$0x1] %vm34, %v33
    %s36 = scalar_lea.vmem %s0, 2
    %v37 = vld [vmem:[%s36] sm:$0x1]
    %38 = vrot.lane.b32.xlu0 %v37, 32
    %v39 = vpop.permute.xlu0 %38
    %vm40 = vcmask 392448
    %41 = vst.msk [vmem:[#allocation0] sm:$0x1] %vm40, %v39
    %s42 = scalar_lea.vmem %s0, 1
    %s43 = smov 3
    %v44 = vld [vmem:[%s42] ss:$8 sm:%s43]
    %45 = vrot.lane.b32.xlu0 %v44, 16
    %v46 = vpop.permute.xlu0 %45
    %vm47 = vcmask 261248
    %48 = vst.msk [vmem:[#allocation0] ss:$8 sm:$0x3] %vm47, %v46
    %s50 = sshllo.u32 0, 1
    %v52 = vld [vmem:[#allocation0] sm:%s50]
    %s53 = sshllo.u32 0, 1
    %54 = vst [vmem:[%s1] sm:%s53] %v52
    %s55 = scalar_lea.vmem [#allocation0], 8
    %v56 = vld [vmem:[%s55] sm:%s50]
    %s57 = sshllo.u32 0, 1
    %s58 = scalar_lea.vmem %s1, 1
    %59 = vst [vmem:[%s58] sm:%s57] %v56

// kernel: lenet_forward.1
$region0: #{lenet_forward.1}
  #allocation0 [shape = 'u32[]', space=smem, size = 0x4, offset = 0x4, fixed_abs, tag = 'smem constant byte address 0x4 - core index']
  #allocation1 [shape = 'u32[144,128]{1,0:T(1,128)}', space=vmem, size = 0x12000, scoped, tag = 'internal scratch']
  #allocation2 [shape = 'f32[14,84]{1,0:T(8,128)}', space=vmem, size = 0x2000, scoped, tag = 'scratch operand']
  #allocation3 [shape = 'f32[20,160]{1,0:T(8,128)}', space=vmem, size = 0x6000, scoped, tag = 'scratch operand']
  %s0 = inlined_call_operand.vmem [shape: f32[2,32,32], index: 0, kind: input, shape index: {}]
  %s1 = inlined_call_operand.vmem [shape: f32[5,32,168], index: 1, kind: input, shape index: {}]
  %s2 = inlined_call_operand.vmem [shape: f32[1,168], index: 2, kind: input, shape index: {}]
  %s3 = inlined_call_operand.vmem [shape: f32[5,84,160], index: 3, kind: input, shape index: {}]
  %s4 = inlined_call_operand.vmem [shape: f32[1,160], index: 4, kind: input, shape index: {}]
  %s5 = inlined_call_operand.vmem [shape: f32[14,28], index: 5, kind: input, shape index: {}]
  %s6 = inlined_call_operand.vmem [shape: f32[168,84], index: 6, kind: input, shape index: {}]
  %s7 = inlined_call_operand.vmem [shape: f32[5,2,20], index: 7, kind: input, shape index: {}]
  %s8 = inlined_call_operand.vmem [shape: f32[5,160,120], index: 8, kind: input, shape index: {}]
  %s9 = inlined_call_operand.vmem [shape: f32[1,120], index: 9, kind: input, shape index: {}]
  %s10 = inlined_call_operand.vmem [shape: f32[120,84], index: 10, kind: input, shape index: {}]
  %s11 = inlined_call_operand.vmem [shape: f32[1,84], index: 11, kind: input, shape index: {}]
  %s12 = inlined_call_operand.vmem [shape: f32[84,10], index: 12, kind: input, shape index: {}]
  %s13 = inlined_call_operand.vmem [shape: f32[1,10], index: 13, kind: input, shape index: {}]
  %s14 = inlined_call_operand.hbm [shape: f32[2,10], index: 14, kind: output, shape index: {}]
  %s15 = sld [smem:[#allocation0]]
  $region66: #{lenet_forward.1} parent=0
    _
  %s17 = ssub.s32 1, %s15
  %s18 = scalar_select 0, %s17, %s15
  $region1: #{lenet_forward.1} parent=0
    #allocation4 [shape = 'u8[1024]{0}', space=vmem, size = 0x400, scoped, tag = 'output window, operand 0, single buffered']
    #allocation5 [shape = 's32[1]{0}', space=sflag, size = 0x4, scoped, tag = 'scoped memory for lenet_forward.1']
    %19 = vsyncpa [#allocation5], 0
    // Predicated region
    $region2: #{lenet_forward.1} parent=1 // pred_check
      _
    $region3: #{lenet_forward.1} parent=1 // pred_check_branch
      %21 = sbr.rel (0) target = $region5
    $region4: #{lenet_forward.1} parent=1 // pred_region
      _
    $region5: #{lenet_forward.1} parent=1 // pred_fallthru
      _
    // Predicated region
    $region6: #{lenet_forward.1} parent=1 // pred_check
      _
    $region7: #{lenet_forward.1} parent=1 // pred_check_branch
      %23 = sbr.rel (0) target = $region9
    $region8: #{lenet_forward.1} parent=1 // pred_region
      _
    $region9: #{lenet_forward.1} parent=1 // pred_fallthru
      _
    // Predicated region
    $region10: #{lenet_forward.1} parent=1 // pred_check
      _
    $region11: #{lenet_forward.1} parent=1 // pred_check_branch
      %25 = sbr.rel (0) target = $region13
    $region12: #{lenet_forward.1} parent=1 // pred_region
      _
    $region13: #{lenet_forward.1} parent=1 // pred_fallthru
      _
    // Predicated region
    $region14: #{lenet_forward.1} parent=1 // pred_check
      _
    $region15: #{lenet_forward.1} parent=1 // pred_check_branch
      %27 = sbr.rel (0) target = $region17
    $region16: #{lenet_forward.1} parent=1 // pred_region
      _
    $region17: #{lenet_forward.1} parent=1 // pred_fallthru
      _
    // Predicated region
    $region18: #{lenet_forward.1} parent=1 // pred_check
      _
    $region19: #{lenet_forward.1} parent=1 // pred_check_branch
      %29 = sbr.rel (0) target = $region21
    $region20: #{lenet_forward.1} parent=1 // pred_region
      _
    $region21: #{lenet_forward.1} parent=1 // pred_fallthru
      _
    // Predicated region
    $region22: #{lenet_forward.1} parent=1 // pred_check
      _
    $region23: #{lenet_forward.1} parent=1 // pred_check_branch
      %31 = sbr.rel (0) target = $region25
    $region24: #{lenet_forward.1} parent=1 // pred_region
      _
    $region25: #{lenet_forward.1} parent=1 // pred_fallthru
      _
    // Predicated region
    $region26: #{lenet_forward.1} parent=1 // pred_check
      _
    $region27: #{lenet_forward.1} parent=1 // pred_check_branch
      %33 = sbr.rel (0) target = $region29
    $region28: #{lenet_forward.1} parent=1 // pred_region
      _
    $region29: #{lenet_forward.1} parent=1 // pred_fallthru
      _
    // Predicated region
    $region30: #{lenet_forward.1} parent=1 // pred_check
      _
    $region31: #{lenet_forward.1} parent=1 // pred_check_branch
      %35 = sbr.rel (0) target = $region33
    $region32: #{lenet_forward.1} parent=1 // pred_region
      _
    $region33: #{lenet_forward.1} parent=1 // pred_fallthru
      _
    // Predicated region
    $region34: #{lenet_forward.1} parent=1 // pred_check
      _
    $region35: #{lenet_forward.1} parent=1 // pred_check_branch
      %37 = sbr.rel (0) target = $region37
    $region36: #{lenet_forward.1} parent=1 // pred_region
      _
    $region37: #{lenet_forward.1} parent=1 // pred_fallthru
      _
    // Predicated region
    $region38: #{lenet_forward.1} parent=1 // pred_check
      _
    $region39: #{lenet_forward.1} parent=1 // pred_check_branch
      %39 = sbr.rel (0) target = $region41
    $region40: #{lenet_forward.1} parent=1 // pred_region
      _
    $region41: #{lenet_forward.1} parent=1 // pred_fallthru
      _
    // Predicated region
    $region42: #{lenet_forward.1} parent=1 // pred_check
      _
    $region43: #{lenet_forward.1} parent=1 // pred_check_branch
      %41 = sbr.rel (0) target = $region45
    $region44: #{lenet_forward.1} parent=1 // pred_region
      _
    $region45: #{lenet_forward.1} parent=1 // pred_fallthru
      _
    // Predicated region
    $region46: #{lenet_forward.1} parent=1 // pred_check
      _
    $region47: #{lenet_forward.1} parent=1 // pred_check_branch
      %43 = sbr.rel (0) target = $region49
    $region48: #{lenet_forward.1} parent=1 // pred_region
      _
    $region49: #{lenet_forward.1} parent=1 // pred_fallthru
      _
    // Predicated region
    $region50: #{lenet_forward.1} parent=1 // pred_check
      _
    $region51: #{lenet_forward.1} parent=1 // pred_check_branch
      %45 = sbr.rel (0) target = $region53
    $region52: #{lenet_forward.1} parent=1 // pred_region
      _
    $region53: #{lenet_forward.1} parent=1 // pred_fallthru
      _
    // Predicated region
    $region54: #{lenet_forward.1} parent=1 // pred_check
      _
    $region55: #{lenet_forward.1} parent=1 // pred_check_branch
      %47 = sbr.rel (0) target = $region57
    $region56: #{lenet_forward.1} parent=1 // pred_region
      _
    $region57: #{lenet_forward.1} parent=1 // pred_fallthru
      _
    %v48 = vld [vmem:[%s0] sm:$0xff]
    %v49 = vld [vmem:[%s0 + $0x8] sm:$0xff]
    %v50 = vld [vmem:[%s0 + $0x10] sm:$0xff]
    %v51 = vld [vmem:[%s0 + $0x18] sm:$0xf]
    %v52 = vld [vmem:[%s1] sm:$0xff]
    %v53 = vld [vmem:[%s1 + $0x8] sm:$0xff]
    %v54 = vld [vmem:[%s1 + $0x10] sm:$0xff]
    %v55 = vld [vmem:[%s1 + $0x18] sm:$0xff]
    %v56 = vld [vmem:[%s1 + $0x20] sm:$0xff]
    %v57 = vld [vmem:[%s1 + $0x28] sm:$0xff]
    %v58 = vld [vmem:[%s1 + $0x30] sm:$0xff]
    %v59 = vld [vmem:[%s1 + $0x38] sm:$0xff]
    %v60 = vld [vmem:[%s0 + $0x1] sm:$0xff]
    %v61 = vld [vmem:[%s0 + $0x9] sm:$0xff]
    %v62 = vld [vmem:[%s0 + $0x11] sm:$0xff]
    %v63 = vld [vmem:[%s0 + $0x19] sm:$0xf]
    %s64 = scalar_lea.vmem %s1, 64
    %v65 = vld [vmem:[%s64] sm:$0xff]
    %v66 = vld [vmem:[%s64 + $0x8] sm:$0xff]
    %v67 = vld [vmem:[%s64 + $0x10] sm:$0xff]
    %v68 = vld [vmem:[%s64 + $0x18] sm:$0xff]
    %v69 = vld [vmem:[%s64 + $0x20] sm:$0xff]
    %v70 = vld [vmem:[%s64 + $0x28] sm:$0xff]
    %v71 = vld [vmem:[%s64 + $0x30] sm:$0xff]
    %v72 = vld [vmem:[%s64 + $0x38] sm:$0xff]
    %vm73 = vcmask 261120
    %v75 = vsel %vm73, %v60, 0
    %v78 = vsel %vm73, %v61, 0
    %v81 = vsel %vm73, %v62, 0
    %v84 = vsel %vm73, %v63, 0
    %86 = vmatprep.subr.mxu0 %v66
    %87 = vmatpush1.msra.mxu0 %v65
    %88 = vmatprep.subr.mxu0 %v68
    %89 = vmatpush1.msra.mxu0 %v67
    %90 = vmatprep.subr.mxu0 %v70
    %91 = vmatpush1.msra.mxu0 %v69
    %92 = vmatprep.subr.mxu0 %v72
    %93 = vmatpush1.msra.mxu0 %v71
    %94 = vmatprep.subr.mxu0 0.0
    %95 = vmatpush1.msra.mxu0 0.0
    %96 = vmatprep.subr.mxu0 0.0
    %97 = vmatpush1.msra.mxu0 0.0
    %98 = vmatprep.subr.mxu0 0.0
    %99 = vmatpush1.msra.mxu0 0.0
    %100 = vmatprep.subr.mxu0 0.0
    %101 = vmatpush1.msra.mxu0 0.0
    %102 = vmatprep.subr.mxu0 0.0
    %103 = vmatpush1.msra.mxu0 0.0
    %104 = vmatprep.subr.mxu0 0.0
    %105 = vmatpush1.msra.mxu0 0.0
    %106 = vmatprep.subr.mxu0 0.0
    %107 = vmatpush1.msra.mxu0 0.0
    %108 = vmatprep.subr.mxu0 0.0
    %109 = vmatpush1.msra.mxu0 0.0
    %110 = vmatprep.subr.mxu0 0.0
    %111 = vmatpush1.msra.mxu0 0.0
    %112 = vmatprep.subr.mxu0 0.0
    %113 = vmatpush1.msra.mxu0 0.0
    %114 = vmatprep.subr.mxu0 0.0
    %115 = vmatpush1.msra.mxu0 0.0
    %116 = vmatprep.subr.mxu0 0.0
    %117 = vmatpush1.msra.mxu0 0.0
    %118 = vmatprep.subr.mxu0 0.0
    %119 = vmatpush1.msra.mxu0 0.0
    %120 = vmatprep.subr.mxu0 0.0
    %121 = vmatpush1.msra.mxu0 0.0
    %122 = vmatprep.subr.mxu0 0.0
    %123 = vmatpush1.msra.mxu0 0.0
    %124 = vmatprep.subr.mxu0 0.0
    %125 = vmatpush1.msra.mxu0 0.0
    %126 = vmatprep.subr.mxu0 0.0
    %127 = vmatpush1.msra.mxu0 0.0
    %128 = vmatprep.subr.mxu0 0.0
    %129 = vmatpush1.msra.mxu0 0.0
    %130 = vmatprep.subr.mxu0 0.0
    %131 = vmatpush1.msra.mxu0 0.0
    %132 = vmatprep.subr.mxu0 0.0
    %133 = vmatpush1.msra.mxu0 0.0
    %134 = vmatprep.subr.mxu0 0.0
    %135 = vmatpush1.msra.mxu0 0.0
    %136 = vmatprep.subr.mxu0 0.0
    %137 = vmatpush1.msra.mxu0 0.0
    %138 = vmatprep.subr.mxu0 0.0
    %139 = vmatpush1.msra.mxu0 0.0
    %140 = vmatprep.subr.mxu0 0.0
    %141 = vmatpush1.msra.mxu0 0.0
    %142 = vmatprep.subr.mxu0 0.0
    %143 = vmatpush1.msra.mxu0 0.0
    %144 = vmatprep.subr.mxu0 0.0
    %145 = vmatpush1.msra.mxu0 0.0
    %146 = vmatprep.subr.mxu0 0.0
    %147 = vmatpush1.msra.mxu0 0.0
    %148 = vmatprep.subr.mxu0 0.0
    %149 = vmatpush1.msra.mxu0 0.0
    %150 = vmatprep.mubr.f32.mxu0 0.0
    %151 = vmatmul.mubr.f32.gmra.mrb[0].mxu0 %v75
    %v152 = vpop.f32.mrb[0].mxu0
    %v153 = vadd.f32 0.0, %v152
    %v154 = vpop.f32.mrb[0].mxu0
    %v155 = vadd.f32 0.0, %v154
    %156 = vmatprep.mubr.f32.mxu0 0.0
    %157 = vmatmul.mubr.f32.gmra.mrb[0].mxu0 %v78
    %v158 = vpop.f32.mrb[0].mxu0
    %v159 = vadd.f32 0.0, %v158
    %v160 = vpop.f32.mrb[0].mxu0
    %v161 = vadd.f32 0.0, %v160
    %162 = vmatprep.mubr.f32.mxu0 0.0
    %163 = vmatmul.mubr.f32.gmra.mrb[0].mxu0 %v81
    %v164 = vpop.f32.mrb[0].mxu0
    %v165 = vadd.f32 0.0, %v164
    %v166 = vpop.f32.mrb[0].mxu0
    %v167 = vadd.f32 0.0, %v166
    %168 = vmatprep.mubr.f32.mxu0 0.0
    %169 = vmatmul.mubr.f32.gmra.mrb[0].mxu0 %v84
    %v170 = vpop.f32.mrb[0].mxu0
    %v171 = vadd.f32 0.0, %v170
    %v172 = vpop.f32.mrb[0].mxu0
    %v173 = vadd.f32 0.0, %v172
    %174 = vdwg.mxu0
    %v176 = vsel %vm73, %v48, 0
    %v179 = vsel %vm73, %v49, 0
    %v182 = vsel %vm73, %v50, 0
    %v185 = vsel %vm73, %v51, 0
    %187 = vmatprep.subr.mxu0 %v53
    %188 = vmatpush1.msra.mxu0 %v52
    %189 = vmatprep.subr.mxu0 %v55
    %190 = vmatpush1.msra.mxu0 %v54
    %191 = vmatprep.subr.mxu0 %v57
    %192 = vmatpush1.msra.mxu0 %v56
    %193 = vmatprep.subr.mxu0 %v59
    %194 = vmatpush1.msra.mxu0 %v58
    %195 = vmatprep.subr.mxu0 0.0
    %196 = vmatpush1.msra.mxu0 0.0
    %197 = vmatprep.subr.mxu0 0.0
    %198 = vmatpush1.msra.mxu0 0.0
    %199 = vmatprep.subr.mxu0 0.0
    %200 = vmatpush1.msra.mxu0 0.0
    %201 = vmatprep.subr.mxu0 0.0
    %202 = vmatpush1.msra.mxu0 0.0
    %203 = vmatprep.subr.mxu0 0.0
    %204 = vmatpush1.msra.mxu0 0.0
    %205 = vmatprep.subr.mxu0 0.0
    %206 = vmatpush1.msra.mxu0 0.0
    %207 = vmatprep.subr.mxu0 0.0
    %208 = vmatpush1.msra.mxu0 0.0
    %209 = vmatprep.subr.mxu0 0.0
    %210 = vmatpush1.msra.mxu0 0.0
    %211 = vmatprep.subr.mxu0 0.0
    %212 = vmatpush1.msra.mxu0 0.0
    %213 = vmatprep.subr.mxu0 0.0
    %214 = vmatpush1.msra.mxu0 0.0
    %215 = vmatprep.subr.mxu0 0.0
    %216 = vmatpush1.msra.mxu0 0.0
    %217 = vmatprep.subr.mxu0 0.0
    %218 = vmatpush1.msra.mxu0 0.0
    %219 = vmatprep.subr.mxu0 0.0
    %220 = vmatpush1.msra.mxu0 0.0
    %221 = vmatprep.subr.mxu0 0.0
    %222 = vmatpush1.msra.mxu0 0.0
    %223 = vmatprep.subr.mxu0 0.0
    %224 = vmatpush1.msra.mxu0 0.0
    %225 = vmatprep.subr.mxu0 0.0
    %226 = vmatpush1.msra.mxu0 0.0
    %227 = vmatprep.subr.mxu0 0.0
    %228 = vmatpush1.msra.mxu0 0.0
    %229 = vmatprep.subr.mxu0 0.0
    %230 = vmatpush1.msra.mxu0 0.0
    %231 = vmatprep.subr.mxu0 0.0
    %232 = vmatpush1.msra.mxu0 0.0
    %233 = vmatprep.subr.mxu0 0.0
    %234 = vmatpush1.msra.mxu0 0.0
    %235 = vmatprep.subr.mxu0 0.0
    %236 = vmatpush1.msra.mxu0 0.0
    %237 = vmatprep.subr.mxu0 0.0
    %238 = vmatpush1.msra.mxu0 0.0
    %239 = vmatprep.subr.mxu0 0.0
    %240 = vmatpush1.msra.mxu0 0.0
    %241 = vmatprep.subr.mxu0 0.0
    %242 = vmatpush1.msra.mxu0 0.0
    %243 = vmatprep.subr.mxu0 0.0
    %244 = vmatpush1.msra.mxu0 0.0
    %245 = vmatprep.subr.mxu0 0.0
    %246 = vmatpush1.msra.mxu0 0.0
    %247 = vmatprep.subr.mxu0 0.0
    %248 = vmatpush1.msra.mxu0 0.0
    %249 = vmatprep.subr.mxu0 0.0
    %250 = vmatpush1.msra.mxu0 0.0
    %251 = vmatprep.mubr.f32.mxu0 0.0
    %252 = vmatmul.mubr.f32.gmra.mrb[0].mxu0 %v176
    %v253 = vpop.f32.mrb[0].mxu0
    %v254 = vadd.f32 %v153, %v253
    %v255 = vpop.f32.mrb[0].mxu0
    %v256 = vadd.f32 %v155, %v255
    %257 = vmatprep.mubr.f32.mxu0 0.0
    %258 = vmatmul.mubr.f32.gmra.mrb[0].mxu0 %v179
    %v259 = vpop.f32.mrb[0].mxu0
    %v260 = vadd.f32 %v159, %v259
    %v261 = vpop.f32.mrb[0].mxu0
    %v262 = vadd.f32 %v161, %v261
    %263 = vmatprep.mubr.f32.mxu0 0.0
    %264 = vmatmul.mubr.f32.gmra.mrb[0].mxu0 %v182
    %v265 = vpop.f32.mrb[0].mxu0
    %v266 = vadd.f32 %v165, %v265
    %v267 = vpop.f32.mrb[0].mxu0
    %v268 = vadd.f32 %v167, %v267
    %269 = vmatprep.mubr.f32.mxu0 0.0
    %270 = vmatmul.mubr.f32.gmra.mrb[0].mxu0 %v185
    %v271 = vpop.f32.mrb[0].mxu0
    %v272 = vadd.f32 %v171, %v271
    %v273 = vpop.f32.mrb[0].mxu0
    %v274 = vadd.f32 %v173, %v273
    %275 = vdwg.mxu0
    %v276 = vld [vmem:[%s0 + $0x2] sm:$0xff]
    %v277 = vld [vmem:[%s0 + $0xa] sm:$0xff]
    %v278 = vld [vmem:[%s0 + $0x12] sm:$0xff]
    %v279 = vld [vmem:[%s0 + $0x1a] sm:$0xf]
    %s280 = scalar_lea.vmem %s1, 128
    %v281 = vld [vmem:[%s280] sm:$0xff]
    %v282 = vld [vmem:[%s280 + $0x8] sm:$0xff]
    %v283 = vld [vmem:[%s280 + $0x10] sm:$0xff]
    %v284 = vld [vmem:[%s280 + $0x18] sm:$0xff]
    %v285 = vld [vmem:[%s280 + $0x20] sm:$0xff]
    %v286 = vld [vmem:[%s280 + $0x28] sm:$0xff]
    %v287 = vld [vmem:[%s280 + $0x30] sm:$0xff]
    %v288 = vld [vmem:[%s280 + $0x38] sm:$0xff]
    %v290 = vsel %vm73, %v276, 0
    %v293 = vsel %vm73, %v277, 0
    %v296 = vsel %vm73, %v278, 0
    %v299 = vsel %vm73, %v279, 0
    %301 = vmatprep.subr.mxu0 %v282
    %302 = vmatpush1.msra.mxu0 %v281
    %303 = vmatprep.subr.mxu0 %v284
    %304 = vmatpush1.msra.mxu0 %v283
    %305 = vmatprep.subr.mxu0 %v286
    %306 = vmatpush1.msra.mxu0 %v285
    %307 = vmatprep.subr.mxu0 %v288
    %308 = vmatpush1.msra.mxu0 %v287
    %309 = vmatprep.subr.mxu0 0.0
    %310 = vmatpush1.msra.mxu0 0.0
    %311 = vmatprep.subr.mxu0 0.0
    %312 = vmatpush1.msra.mxu0 0.0
    %313 = vmatprep.subr.mxu0 0.0
    %314 = vmatpush1.msra.mxu0 0.0
    %315 = vmatprep.subr.mxu0 0.0
    %316 = vmatpush1.msra.mxu0 0.0
    %317 = vmatprep.subr.mxu0 0.0
    %318 = vmatpush1.msra.mxu0 0.0
    %319 = vmatprep.subr.mxu0 0.0
    %320 = vmatpush1.msra.mxu0 0.0
    %321 = vmatprep.subr.mxu0 0.0
    %322 = vmatpush1.msra.mxu0 0.0
    %323 = vmatprep.subr.mxu0 0.0
    %324 = vmatpush1.msra.mxu0 0.0
    %325 = vmatprep.subr.mxu0 0.0
    %326 = vmatpush1.msra.mxu0 0.0
    %327 = vmatprep.subr.mxu0 0.0
    %328 = vmatpush1.msra.mxu0 0.0
    %329 = vmatprep.subr.mxu0 0.0
    %330 = vmatpush1.msra.mxu0 0.0
    %331 = vmatprep.subr.mxu0 0.0
    %332 = vmatpush1.msra.mxu0 0.0
    %333 = vmatprep.subr.mxu0 0.0
    %334 = vmatpush1.msra.mxu0 0.0
    %335 = vmatprep.subr.mxu0 0.0
    %336 = vmatpush1.msra.mxu0 0.0
    %337 = vmatprep.subr.mxu0 0.0
    %338 = vmatpush1.msra.mxu0 0.0
    %339 = vmatprep.subr.mxu0 0.0
    %340 = vmatpush1.msra.mxu0 0.0
    %341 = vmatprep.subr.mxu0 0.0
    %342 = vmatpush1.msra.mxu0 0.0
    %343 = vmatprep.subr.mxu0 0.0
    %344 = vmatpush1.msra.mxu0 0.0
    %345 = vmatprep.subr.mxu0 0.0
    %346 = vmatpush1.msra.mxu0 0.0
    %347 = vmatprep.subr.mxu0 0.0
    %348 = vmatpush1.msra.mxu0 0.0
    %349 = vmatprep.subr.mxu0 0.0
    %350 = vmatpush1.msra.mxu0 0.0
    %351 = vmatprep.subr.mxu0 0.0
    %352 = vmatpush1.msra.mxu0 0.0
    %353 = vmatprep.subr.mxu0 0.0
    %354 = vmatpush1.msra.mxu0 0.0
    %355 = vmatprep.subr.mxu0 0.0
    %356 = vmatpush1.msra.mxu0 0.0
    %357 = vmatprep.subr.mxu0 0.0
    %358 = vmatpush1.msra.mxu0 0.0
    %359 = vmatprep.subr.mxu0 0.0
    %360 = vmatpush1.msra.mxu0 0.0
    %361 = vmatprep.subr.mxu0 0.0
    %362 = vmatpush1.msra.mxu0 0.0
    %363 = vmatprep.subr.mxu0 0.0
    %364 = vmatpush1.msra.mxu0 0.0
    %365 = vmatprep.mubr.f32.mxu0 0.0
    %366 = vmatmul.mubr.f32.gmra.mrb[0].mxu0 %v290
    %v367 = vpop.f32.mrb[0].mxu0
    %v368 = vadd.f32 0.0, %v367
    %v369 = vpop.f32.mrb[0].mxu0
    %v370 = vadd.f32 0.0, %v369
    %371 = vmatprep.mubr.f32.mxu0 0.0
    %372 = vmatmul.mubr.f32.gmra.mrb[0].mxu0 %v293
    %v373 = vpop.f32.mrb[0].mxu0
    %v374 = vadd.f32 0.0, %v373
    %v375 = vpop.f32.mrb[0].mxu0
    %v376 = vadd.f32 0.0, %v375
    %377 = vmatprep.mubr.f32.mxu0 0.0
    %378 = vmatmul.mubr.f32.gmra.mrb[0].mxu0 %v296
    %v379 = vpop.f32.mrb[0].mxu0
    %v380 = vadd.f32 0.0, %v379
    %v381 = vpop.f32.mrb[0].mxu0
    %v382 = vadd.f32 0.0, %v381
    %383 = vmatprep.mubr.f32.mxu0 0.0
    %384 = vmatmul.mubr.f32.gmra.mrb[0].mxu0 %v299
    %v385 = vpop.f32.mrb[0].mxu0
    %v386 = vadd.f32 0.0, %v385
    %v387 = vpop.f32.mrb[0].mxu0
    %v388 = vadd.f32 0.0, %v387
    %389 = vdwg.mxu0
    %v390 = vadd.f32 %v254, %v368
    %v391 = vadd.f32 %v256, %v370
    %v392 = vadd.f32 %v260, %v374
    %v393 = vadd.f32 %v262, %v376
    %v394 = vadd.f32 %v266, %v380
    %v395 = vadd.f32 %v268, %v382
    %v396 = vadd.f32 %v272, %v386
    %v397 = vadd.f32 %v274, %v388
    %v398 = vld [vmem:[%s0 + $0x3] sm:$0xff]
    %v399 = vld [vmem:[%s0 + $0xb] sm:$0xff]
    %v400 = vld [vmem:[%s0 + $0x13] sm:$0xff]
    %v401 = vld [vmem:[%s0 + $0x1b] sm:$0xf]
    %s402 = scalar_lea.vmem %s1, 192
    %v403 = vld [vmem:[%s402] sm:$0xff]
    %v404 = vld [vmem:[%s402 + $0x8] sm:$0xff]
    %v405 = vld [vmem:[%s402 + $0x10] sm:$0xff]
    %v406 = vld [vmem:[%s402 + $0x18] sm:$0xff]
    %v407 = vld [vmem:[%s402 + $0x20] sm:$0xff]
    %v408 = vld [vmem:[%s402 + $0x28] sm:$0xff]
    %v409 = vld [vmem:[%s402 + $0x30] sm:$0xff]
    %v410 = vld [vmem:[%s402 + $0x38] sm:$0xff]
    %v412 = vsel %vm73, %v398, 0
    %v415 = vsel %vm73, %v399, 0
    %v418 = vsel %vm73, %v400, 0
    %v421 = vsel %vm73, %v401, 0
    %423 = vmatprep.subr.mxu0 %v404
    %424 = vmatpush1.msra.mxu0 %v403
    %425 = vmatprep.subr.mxu0 %v406
    %426 = vmatpush1.msra.mxu0 %v405
    %427 = vmatprep.subr.mxu0 %v408
    %428 = vmatpush1.msra.mxu0 %v407
    %429 = vmatprep.subr.mxu0 %v410
    %430 = vmatpush1.msra.mxu0 %v409
    %431 = vmatprep.subr.mxu0 0.0
    %432 = vmatpush1.msra.mxu0 0.0
    %433 = vmatprep.subr.mxu0 0.0
    %434 = vmatpush1.msra.mxu0 0.0
    %435 = vmatprep.subr.mxu0 0.0
    %436 = vmatpush1.msra.mxu0 0.0
    %437 = vmatprep.subr.mxu0 0.0
    %438 = vmatpush1.msra.mxu0 0.0
    %439 = vmatprep.subr.mxu0 0.0
    %440 = vmatpush1.msra.mxu0 0.0
    %441 = vmatprep.subr.mxu0 0.0
    %442 = vmatpush1.msra.mxu0 0.0
    %443 = vmatprep.subr.mxu0 0.0
    %444 = vmatpush1.msra.mxu0 0.0
    %445 = vmatprep.subr.mxu0 0.0
    %446 = vmatpush1.msra.mxu0 0.0
    %447 = vmatprep.subr.mxu0 0.0
    %448 = vmatpush1.msra.mxu0 0.0
    %449 = vmatprep.subr.mxu0 0.0
    %450 = vmatpush1.msra.mxu0 0.0
    %451 = vmatprep.subr.mxu0 0.0
    %452 = vmatpush1.msra.mxu0 0.0
    %453 = vmatprep.subr.mxu0 0.0
    %454 = vmatpush1.msra.mxu0 0.0
    %455 = vmatprep.subr.mxu0 0.0
    %456 = vmatpush1.msra.mxu0 0.0
    %457 = vmatprep.subr.mxu0 0.0
    %458 = vmatpush1.msra.mxu0 0.0
    %459 = vmatprep.subr.mxu0 0.0
    %460 = vmatpush1.msra.mxu0 0.0
    %461 = vmatprep.subr.mxu0 0.0
    %462 = vmatpush1.msra.mxu0 0.0
    %463 = vmatprep.subr.mxu0 0.0
    %464 = vmatpush1.msra.mxu0 0.0
    %465 = vmatprep.subr.mxu0 0.0
    %466 = vmatpush1.msra.mxu0 0.0
    %467 = vmatprep.subr.mxu0 0.0
    %468 = vmatpush1.msra.mxu0 0.0
    %469 = vmatprep.subr.mxu0 0.0
    %470 = vmatpush1.msra.mxu0 0.0
    %471 = vmatprep.subr.mxu0 0.0
    %472 = vmatpush1.msra.mxu0 0.0
    %473 = vmatprep.subr.mxu0 0.0
    %474 = vmatpush1.msra.mxu0 0.0
    %475 = vmatprep.subr.mxu0 0.0
    %476 = vmatpush1.msra.mxu0 0.0
    %477 = vmatprep.subr.mxu0 0.0
    %478 = vmatpush1.msra.mxu0 0.0
    %479 = vmatprep.subr.mxu0 0.0
    %480 = vmatpush1.msra.mxu0 0.0
    %481 = vmatprep.subr.mxu0 0.0
    %482 = vmatpush1.msra.mxu0 0.0
    %483 = vmatprep.subr.mxu0 0.0
    %484 = vmatpush1.msra.mxu0 0.0
    %485 = vmatprep.subr.mxu0 0.0
    %486 = vmatpush1.msra.mxu0 0.0
    %487 = vmatprep.mubr.f32.mxu0 0.0
    %488 = vmatmul.mubr.f32.gmra.mrb[0].mxu0 %v412
    %v489 = vpop.f32.mrb[0].mxu0
    %v490 = vadd.f32 0.0, %v489
    %v491 = vpop.f32.mrb[0].mxu0
    %v492 = vadd.f32 0.0, %v491
    %493 = vmatprep.mubr.f32.mxu0 0.0
    %494 = vmatmul.mubr.f32.gmra.mrb[0].mxu0 %v415
    %v495 = vpop.f32.mrb[0].mxu0
    %v496 = vadd.f32 0.0, %v495
    %v497 = vpop.f32.mrb[0].mxu0
    %v498 = vadd.f32 0.0, %v497
    %499 = vmatprep.mubr.f32.mxu0 0.0
    %500 = vmatmul.mubr.f32.gmra.mrb[0].mxu0 %v418
    %v501 = vpop.f32.mrb[0].mxu0
    %v502 = vadd.f32 0.0, %v501
    %v503 = vpop.f32.mrb[0].mxu0
    %v504 = vadd.f32 0.0, %v503
    %505 = vmatprep.mubr.f32.mxu0 0.0
    %506 = vmatmul.mubr.f32.gmra.mrb[0].mxu0 %v421
    %v507 = vpop.f32.mrb[0].mxu0
    %v508 = vadd.f32 0.0, %v507
    %v509 = vpop.f32.mrb[0].mxu0
    %v510 = vadd.f32 0.0, %v509
    %511 = vdwg.mxu0
    %v512 = vadd.f32 %v390, %v490
    %v513 = vadd.f32 %v391, %v492
    %v514 = vadd.f32 %v392, %v496
    %v515 = vadd.f32 %v393, %v498
    %v516 = vadd.f32 %v394, %v502
    %v517 = vadd.f32 %v395, %v504
    %v518 = vadd.f32 %v396, %v508
    %v519 = vadd.f32 %v397, %v510
    %v520 = vld [vmem:[%s0 + $0x4] sm:$0xff]
    %v521 = vld [vmem:[%s0 + $0xc] sm:$0xff]
    %v522 = vld [vmem:[%s0 + $0x14] sm:$0xff]
    %v523 = vld [vmem:[%s0 + $0x1c] sm:$0xf]
    %s524 = scalar_lea.vmem %s1, 256
    %v525 = vld [vmem:[%s524] sm:$0xff]
    %v526 = vld [vmem:[%s524 + $0x8] sm:$0xff]
    %v527 = vld [vmem:[%s524 + $0x10] sm:$0xff]
    %v528 = vld [vmem:[%s524 + $0x18] sm:$0xff]
    %v529 = vld [vmem:[%s524 + $0x20] sm:$0xff]
    %v530 = vld [vmem:[%s524 + $0x28] sm:$0xff]
    %v531 = vld [vmem:[%s524 + $0x30] sm:$0xff]
    %v532 = vld [vmem:[%s524 + $0x38] sm:$0xff]
    %v534 = vsel %vm73, %v520, 0
    %v537 = vsel %vm73, %v521, 0
    %v540 = vsel %vm73, %v522, 0
    %v543 = vsel %vm73, %v523, 0
    %545 = vmatprep.subr.mxu0 %v526
    %546 = vmatpush1.msra.mxu0 %v525
    %547 = vmatprep.subr.mxu0 %v528
    %548 = vmatpush1.msra.mxu0 %v527
    %549 = vmatprep.subr.mxu0 %v530
    %550 = vmatpush1.msra.mxu0 %v529
    %551 = vmatprep.subr.mxu0 %v532
    %552 = vmatpush1.msra.mxu0 %v531
    %553 = vmatprep.subr.mxu0 0.0
    %554 = vmatpush1.msra.mxu0 0.0
    %555 = vmatprep.subr.mxu0 0.0
    %556 = vmatpush1.msra.mxu0 0.0
    %557 = vmatprep.subr.mxu0 0.0
    %558 = vmatpush1.msra.mxu0 0.0
    %559 = vmatprep.subr.mxu0 0.0
    %560 = vmatpush1.msra.mxu0 0.0
    %561 = vmatprep.subr.mxu0 0.0
    %562 = vmatpush1.msra.mxu0 0.0
    %563 = vmatprep.subr.mxu0 0.0
    %564 = vmatpush1.msra.mxu0 0.0
    %565 = vmatprep.subr.mxu0 0.0
    %566 = vmatpush1.msra.mxu0 0.0
    %567 = vmatprep.subr.mxu0 0.0
    %568 = vmatpush1.msra.mxu0 0.0
    %569 = vmatprep.subr.mxu0 0.0
    %570 = vmatpush1.msra.mxu0 0.0
    %571 = vmatprep.subr.mxu0 0.0
    %572 = vmatpush1.msra.mxu0 0.0
    %573 = vmatprep.subr.mxu0 0.0
    %574 = vmatpush1.msra.mxu0 0.0
    %575 = vmatprep.subr.mxu0 0.0
    %576 = vmatpush1.msra.mxu0 0.0
    %577 = vmatprep.subr.mxu0 0.0
    %578 = vmatpush1.msra.mxu0 0.0
    %579 = vmatprep.subr.mxu0 0.0
    %580 = vmatpush1.msra.mxu0 0.0
    %581 = vmatprep.subr.mxu0 0.0
    %582 = vmatpush1.msra.mxu0 0.0
    %583 = vmatprep.subr.mxu0 0.0
    %584 = vmatpush1.msra.mxu0 0.0
    %585 = vmatprep.subr.mxu0 0.0
    %586 = vmatpush1.msra.mxu0 0.0
    %587 = vmatprep.subr.mxu0 0.0
    %588 = vmatpush1.msra.mxu0 0.0
    %589 = vmatprep.subr.mxu0 0.0
    %590 = vmatpush1.msra.mxu0 0.0
    %591 = vmatprep.subr.mxu0 0.0
    %592 = vmatpush1.msra.mxu0 0.0
    %593 = vmatprep.subr.mxu0 0.0
    %594 = vmatpush1.msra.mxu0 0.0
    %595 = vmatprep.subr.mxu0 0.0
    %596 = vmatpush1.msra.mxu0 0.0
    %597 = vmatprep.subr.mxu0 0.0
    %598 = vmatpush1.msra.mxu0 0.0
    %599 = vmatprep.subr.mxu0 0.0
    %600 = vmatpush1.msra.mxu0 0.0
    %601 = vmatprep.subr.mxu0 0.0
    %602 = vmatpush1.msra.mxu0 0.0
    %603 = vmatprep.subr.mxu0 0.0
    %604 = vmatpush1.msra.mxu0 0.0
    %605 = vmatprep.subr.mxu0 0.0
    %606 = vmatpush1.msra.mxu0 0.0
    %607 = vmatprep.subr.mxu0 0.0
    %608 = vmatpush1.msra.mxu0 0.0
    %609 = vmatprep.mubr.f32.mxu0 0.0
    %610 = vmatmul.mubr.f32.gmra.mrb[0].mxu0 %v534
    %v611 = vpop.f32.mrb[0].mxu0
    %v612 = vadd.f32 0.0, %v611
    %v613 = vpop.f32.mrb[0].mxu0
    %v614 = vadd.f32 0.0, %v613
    %615 = vmatprep.mubr.f32.mxu0 0.0
    %616 = vmatmul.mubr.f32.gmra.mrb[0].mxu0 %v537
    %v617 = vpop.f32.mrb[0].mxu0
    %v618 = vadd.f32 0.0, %v617
    %v619 = vpop.f32.mrb[0].mxu0
    %v620 = vadd.f32 0.0, %v619
    %621 = vmatprep.mubr.f32.mxu0 0.0
    %622 = vmatmul.mubr.f32.gmra.mrb[0].mxu0 %v540
    %v623 = vpop.f32.mrb[0].mxu0
    %v624 = vadd.f32 0.0, %v623
    %v625 = vpop.f32.mrb[0].mxu0
    %v626 = vadd.f32 0.0, %v625
    %627 = vmatprep.mubr.f32.mxu0 0.0
    %628 = vmatmul.mubr.f32.gmra.mrb[0].mxu0 %v543
    %v629 = vpop.f32.mrb[0].mxu0
    %v630 = vadd.f32 0.0, %v629
    %v631 = vpop.f32.mrb[0].mxu0
    %v632 = vadd.f32 0.0, %v631
    %633 = vdwg.mxu0
    %v634 = vadd.f32 %v512, %v612
    %v635 = vadd.f32 %v513, %v614
    %v636 = vadd.f32 %v514, %v618
    %v637 = vadd.f32 %v515, %v620
    %v638 = vadd.f32 %v516, %v624
    %v639 = vadd.f32 %v517, %v626
    %v640 = vadd.f32 %v518, %v630
    %v641 = vadd.f32 %v519, %v632
    %v642 = vld [vmem:[%s2] sm:$0x3]
    %v644 = vlaneseq
    %v645 = vshrl.u32 %v644, 7
    %v646 = vsub.s32 0, %v645
    %v647 = vrot.slane %v642, %v646
    %v648 = vlaneseq
    %v649 = vshrl.u32 %v648, 7
    %v650 = vsub.s32 1, %v649
    %v651 = vrot.slane %v642, %v650
    %v654 = vadd.f32 %v634, %v647
    %v655 = vadd.f32 %v635, %v651
    %v656 = vadd.f32 %v636, %v647
    %v657 = vadd.f32 %v637, %v651
    %v658 = vadd.f32 %v638, %v647
    %v659 = vadd.f32 %v639, %v651
    %v660 = vadd.f32 %v640, %v647
    %v661 = vadd.f32 %v641, %v651
    %v662 = vtanh.pop %v654
    %v663 = vtanh.pop %v655
    %v664 = vtanh.pop %v656
    %v665 = vtanh.pop %v657
    %v666 = vtanh.pop %v658
    %v667 = vtanh.pop %v659
    %v668 = vtanh.pop %v660
    %v669 = vtanh.pop %v661
    %v670 = vld [vmem:[%s5] sm:$0xff]
    %v671 = vld [vmem:[%s5 + $0x8] sm:$0x3f]
    %vm672 = vcmask 228352
    %v674 = vsel %vm672, %v670, 0
    %v677 = vsel %vm672, %v671, 0
    %vm679 = vcmask 1043456
    %v681 = vsel %vm679, %v668, 0
    %v684 = vsel %vm679, %v669, 0
    %686 = vmatprep.subr.mxu0 %v663
    %687 = vmatpush1.msra.mxu0 %v662
    %688 = vmatprep.subr.mxu0 %v665
    %689 = vmatpush1.msra.mxu0 %v664
    %690 = vmatprep.subr.mxu0 %v667
    %691 = vmatpush1.msra.mxu0 %v666
    %692 = vmatprep.subr.mxu0 %v684
    %693 = vmatpush1.msra.mxu0 %v681
    %694 = vmatprep.subr.mxu0 0.0
    %695 = vmatpush1.msra.mxu0 0.0
    %696 = vmatprep.subr.mxu0 0.0
    %697 = vmatpush1.msra.mxu0 0.0
    %698 = vmatprep.subr.mxu0 0.0
    %699 = vmatpush1.msra.mxu0 0.0
    %700 = vmatprep.subr.mxu0 0.0
    %701 = vmatpush1.msra.mxu0 0.0
    %702 = vmatprep.subr.mxu0 0.0
    %703 = vmatpush1.msra.mxu0 0.0
    %704 = vmatprep.subr.mxu0 0.0
    %705 = vmatpush1.msra.mxu0 0.0
    %706 = vmatprep.subr.mxu0 0.0
    %707 = vmatpush1.msra.mxu0 0.0
    %708 = vmatprep.subr.mxu0 0.0
    %709 = vmatpush1.msra.mxu0 0.0
    %710 = vmatprep.subr.mxu0 0.0
    %711 = vmatpush1.msra.mxu0 0.0
    %712 = vmatprep.subr.mxu0 0.0
    %713 = vmatpush1.msra.mxu0 0.0
    %714 = vmatprep.subr.mxu0 0.0
    %715 = vmatpush1.msra.mxu0 0.0
    %716 = vmatprep.subr.mxu0 0.0
    %717 = vmatpush1.msra.mxu0 0.0
    %718 = vmatprep.subr.mxu0 0.0
    %719 = vmatpush1.msra.mxu0 0.0
    %720 = vmatprep.subr.mxu0 0.0
    %721 = vmatpush1.msra.mxu0 0.0
    %722 = vmatprep.subr.mxu0 0.0
    %723 = vmatpush1.msra.mxu0 0.0
    %724 = vmatprep.subr.mxu0 0.0
    %725 = vmatpush1.msra.mxu0 0.0
    %726 = vmatprep.subr.mxu0 0.0
    %727 = vmatpush1.msra.mxu0 0.0
    %728 = vmatprep.subr.mxu0 0.0
    %729 = vmatpush1.msra.mxu0 0.0
    %730 = vmatprep.subr.mxu0 0.0
    %731 = vmatpush1.msra.mxu0 0.0
    %732 = vmatprep.subr.mxu0 0.0
    %733 = vmatpush1.msra.mxu0 0.0
    %734 = vmatprep.subr.mxu0 0.0
    %735 = vmatpush1.msra.mxu0 0.0
    %736 = vmatprep.subr.mxu0 0.0
    %737 = vmatpush1.msra.mxu0 0.0
    %738 = vmatprep.subr.mxu0 0.0
    %739 = vmatpush1.msra.mxu0 0.0
    %740 = vmatprep.subr.mxu0 0.0
    %741 = vmatpush1.msra.mxu0 0.0
    %742 = vmatprep.subr.mxu0 0.0
    %743 = vmatpush1.msra.mxu0 0.0
    %744 = vmatprep.subr.mxu0 0.0
    %745 = vmatpush1.msra.mxu0 0.0
    %746 = vmatprep.subr.mxu0 0.0
    %747 = vmatpush1.msra.mxu0 0.0
    %748 = vmatprep.subr.mxu0 0.0
    %749 = vmatpush1.msra.mxu0 0.0
    %750 = vmatprep.mubr.f32.mxu0 0.0
    %751 = vmatmul.mubr.f32.gmra.mrb[0].mxu0 %v674
    %v752 = vpop.f32.mrb[0].mxu0
    %v753 = vadd.f32 0.0, %v752
    %v754 = vpop.f32.mrb[0].mxu0
    %v755 = vadd.f32 0.0, %v754
    %756 = vmatprep.mubr.f32.mxu0 0.0
    %757 = vmatmul.mubr.f32.gmra.mrb[0].mxu0 %v677
    %v758 = vpop.f32.mrb[0].mxu0
    %v759 = vadd.f32 0.0, %v758
    %v760 = vpop.f32.mrb[0].mxu0
    %v761 = vadd.f32 0.0, %v760
    %762 = vdwg.mxu0
    %v763 = vld [vmem:[%s6] sm:$0xff]
    %v764 = vld [vmem:[%s6 + $0x8] sm:$0xff]
    %v765 = vld [vmem:[%s6 + $0x10] sm:$0xff]
    %v766 = vld [vmem:[%s6 + $0x18] sm:$0xff]
    %v767 = vld [vmem:[%s6 + $0x20] sm:$0xff]
    %v768 = vld [vmem:[%s6 + $0x28] sm:$0xff]
    %v769 = vld [vmem:[%s6 + $0x30] sm:$0xff]
    %v770 = vld [vmem:[%s6 + $0x38] sm:$0xff]
    %v771 = vld [vmem:[%s6 + $0x40] sm:$0xff]
    %v772 = vld [vmem:[%s6 + $0x48] sm:$0xff]
    %v773 = vld [vmem:[%s6 + $0x50] sm:$0xff]
    %v774 = vld [vmem:[%s6 + $0x58] sm:$0xff]
    %v775 = vld [vmem:[%s6 + $0x60] sm:$0xff]
    %v776 = vld [vmem:[%s6 + $0x68] sm:$0xff]
    %v777 = vld [vmem:[%s6 + $0x70] sm:$0xff]
    %v778 = vld [vmem:[%s6 + $0x78] sm:$0xff]
    %v779 = vld [vmem:[%s6 + $0x80] sm:$0xff]
    %v780 = vld [vmem:[%s6 + $0x88] sm:$0xff]
    %v781 = vld [vmem:[%s6 + $0x90] sm:$0xff]
    %v782 = vld [vmem:[%s6 + $0x98] sm:$0xff]
    %v783 = vld [vmem:[%s6 + $0xa0] sm:$0xff]
    %vm784 = vcmask 326656
    %v786 = vsel %vm784, %v755, 0
    %v789 = vsel %vm784, %v761, 0
    %791 = vmatprep.subr.mxu0 0.0
    %792 = vmatpush1.msra.mxu0 %v763
    %793 = vmatprep.subr.mxu0 0.0
    %794 = vmatpush1.msra.mxu0 %v764
    %795 = vmatprep.subr.mxu0 0.0
    %796 = vmatpush1.msra.mxu0 %v765
    %797 = vmatprep.subr.mxu0 0.0
    %798 = vmatpush1.msra.mxu0 %v766
    %799 = vmatprep.subr.mxu0 0.0
    %800 = vmatpush1.msra.mxu0 %v767
    %801 = vmatprep.subr.mxu0 0.0
    %802 = vmatpush1.msra.mxu0 %v768
    %803 = vmatprep.subr.mxu0 0.0
    %804 = vmatpush1.msra.mxu0 %v769
    %805 = vmatprep.subr.mxu0 0.0
    %806 = vmatpush1.msra.mxu0 %v770
    %807 = vmatprep.subr.mxu0 0.0
    %808 = vmatpush1.msra.mxu0 %v771
    %809 = vmatprep.subr.mxu0 0.0
    %810 = vmatpush1.msra.mxu0 %v772
    %811 = vmatprep.subr.mxu0 0.0
    %812 = vmatpush1.msra.mxu0 %v773
    %813 = vmatprep.subr.mxu0 0.0
    %814 = vmatpush1.msra.mxu0 %v774
    %815 = vmatprep.subr.mxu0 0.0
    %816 = vmatpush1.msra.mxu0 %v775
    %817 = vmatprep.subr.mxu0 0.0
    %818 = vmatpush1.msra.mxu0 %v776
    %819 = vmatprep.subr.mxu0 0.0
    %820 = vmatpush1.msra.mxu0 %v777
    %821 = vmatprep.subr.mxu0 0.0
    %822 = vmatpush1.msra.mxu0 %v778
    %823 = vmatprep.subr.mxu0 0.0
    %824 = vmatpush1.msra.mxu0 %v779
    %825 = vmatprep.subr.mxu0 0.0
    %826 = vmatpush1.msra.mxu0 %v780
    %827 = vmatprep.subr.mxu0 0.0
    %828 = vmatpush1.msra.mxu0 %v781
    %829 = vmatprep.subr.mxu0 0.0
    %830 = vmatpush1.msra.mxu0 %v782
    %831 = vmatprep.subr.mxu0 0.0
    %832 = vmatpush1.msra.mxu0 %v783
    %833 = vmatprep.subr.mxu0 0.0
    %834 = vmatpush1.msra.mxu0 0.0
    %835 = vmatprep.subr.mxu0 0.0
    %836 = vmatpush1.msra.mxu0 0.0
    %837 = vmatprep.subr.mxu0 0.0
    %838 = vmatpush1.msra.mxu0 0.0
    %839 = vmatprep.subr.mxu0 0.0
    %840 = vmatpush1.msra.mxu0 0.0
    %841 = vmatprep.subr.mxu0 0.0
    %842 = vmatpush1.msra.mxu0 0.0
    %843 = vmatprep.subr.mxu0 0.0
    %844 = vmatpush1.msra.mxu0 0.0
    %845 = vmatprep.subr.mxu0 0.0
    %846 = vmatpush1.msra.mxu0 0.0
    %847 = vmatprep.subr.mxu0 0.0
    %848 = vmatpush1.msra.mxu0 0.0
    %849 = vmatprep.subr.mxu0 0.0
    %850 = vmatpush1.msra.mxu0 0.0
    %851 = vmatprep.subr.mxu0 0.0
    %852 = vmatpush1.msra.mxu0 0.0
    %853 = vmatprep.subr.mxu0 0.0
    %854 = vmatpush1.msra.mxu0 0.0
    %855 = vmatprep.mubr.f32.mxu0 %v786
    %856 = vmatmul.mubr.f32.gmra.mrb[0].mxu0 %v753
    %v857 = vpop.f32.mrb[0].mxu0
    %v858 = vadd.f32 0.0, %v857
    %v859 = vpop.f32.mrb[0].mxu0
    %860 = vmatprep.mubr.f32.mxu0 %v789
    %861 = vmatmul.mubr.f32.gmra.mrb[0].mxu0 %v759
    %v862 = vpop.f32.mrb[0].mxu0
    %v863 = vadd.f32 0.0, %v862
    %v864 = vpop.f32.mrb[0].mxu0
    %865 = vdwg.mxu0
    %vm866 = vcmask 687104
    %867 = vst.msk [vmem:[#allocation2] sm:$0xff] %vm866, %v858
    %vm868 = vcmask 685056
    %869 = vst.msk [vmem:[#allocation2 + $0x8] sm:$0x3f] %vm868, %v863
    %v870 = vld [vmem:[#allocation2] sm:$0xff]
    %v871 = vld [vmem:[#allocation2 + $0x8] sm:$0x3]
    %v872 = vld [vmem:[%s3] sm:$0xff]
    %v873 = vld [vmem:[%s3 + $0x8] sm:$0xff]
    %v874 = vld [vmem:[%s3 + $0x10] sm:$0xff]
    %v875 = vld [vmem:[%s3 + $0x18] sm:$0xff]
    %v876 = vld [vmem:[%s3 + $0x20] sm:$0xff]
    %v877 = vld [vmem:[%s3 + $0x28] sm:$0xff]
    %v878 = vld [vmem:[%s3 + $0x30] sm:$0xff]
    %v879 = vld [vmem:[%s3 + $0x38] sm:$0xff]
    %v880 = vld [vmem:[%s3 + $0x40] sm:$0xff]
    %v881 = vld [vmem:[%s3 + $0x48] sm:$0xff]
    %v882 = vld [vmem:[%s3 + $0x50] sm:$0xff]
    %v883 = vld [vmem:[%s3 + $0x58] sm:$0xff]
    %v884 = vld [vmem:[%s3 + $0x60] sm:$0xff]
    %v885 = vld [vmem:[%s3 + $0x68] sm:$0xff]
    %v886 = vld [vmem:[%s3 + $0x70] sm:$0xff]
    %v887 = vld [vmem:[%s3 + $0x78] sm:$0xff]
    %v888 = vld [vmem:[%s3 + $0x80] sm:$0xff]
    %v889 = vld [vmem:[%s3 + $0x88] sm:$0xff]
    %v890 = vld [vmem:[%s3 + $0x90] sm:$0xff]
    %v891 = vld [vmem:[%s3 + $0x98] sm:$0xff]
    %v892 = vld [vmem:[%s3 + $0xa0] sm:$0xf]
    %v893 = vld [vmem:[%s3 + $0xa8] sm:$0xf]
    %v894 = vld [vmem:[#allocation2 + $0x1] sm:$0xff]
    %v895 = vld [vmem:[#allocation2 + $0x9] sm:$0x3]
    %s896 = scalar_lea.vmem %s3, 176
    %v897 = vld [vmem:[%s896] sm:$0xff]
    %v898 = vld [vmem:[%s896 + $0x8] sm:$0xff]
    %v899 = vld [vmem:[%s896 + $0x10] sm:$0xff]
    %v900 = vld [vmem:[%s896 + $0x18] sm:$0xff]
    %v901 = vld [vmem:[%s896 + $0x20] sm:$0xff]
    %v902 = vld [vmem:[%s896 + $0x28] sm:$0xff]
    %v903 = vld [vmem:[%s896 + $0x30] sm:$0xff]
    %v904 = vld [vmem:[%s896 + $0x38] sm:$0xff]
    %v905 = vld [vmem:[%s896 + $0x40] sm:$0xff]
    %v906 = vld [vmem:[%s896 + $0x48] sm:$0xff]
    %v907 = vld [vmem:[%s896 + $0x50] sm:$0xff]
    %v908 = vld [vmem:[%s896 + $0x58] sm:$0xff]
    %v909 = vld [vmem:[%s896 + $0x60] sm:$0xff]
    %v910 = vld [vmem:[%s896 + $0x68] sm:$0xff]
    %v911 = vld [vmem:[%s896 + $0x70] sm:$0xff]
    %v912 = vld [vmem:[%s896 + $0x78] sm:$0xff]
    %v913 = vld [vmem:[%s896 + $0x80] sm:$0xff]
    %v914 = vld [vmem:[%s896 + $0x88] sm:$0xff]
    %v915 = vld [vmem:[%s896 + $0x90] sm:$0xff]
    %v916 = vld [vmem:[%s896 + $0x98] sm:$0xff]
    %v917 = vld [vmem:[%s896 + $0xa0] sm:$0xf]
    %v918 = vld [vmem:[%s896 + $0xa8] sm:$0xf]
    %v920 = vsel %vm866, %v894, 0
    %v923 = vsel %vm866, %v895, 0
    %v926 = vsel %vm679, %v917, 0
    %v929 = vsel %vm679, %v918, 0
    %931 = vmatprep.subr.mxu0 %v898
    %932 = vmatpush1.msra.mxu0 %v897
    %933 = vmatprep.subr.mxu0 %v900
    %934 = vmatpush1.msra.mxu0 %v899
    %935 = vmatprep.subr.mxu0 %v902
    %936 = vmatpush1.msra.mxu0 %v901
    %937 = vmatprep.subr.mxu0 %v904
    %938 = vmatpush1.msra.mxu0 %v903
    %939 = vmatprep.subr.mxu0 %v906
    %940 = vmatpush1.msra.mxu0 %v905
    %941 = vmatprep.subr.mxu0 %v908
    %942 = vmatpush1.msra.mxu0 %v907
    %943 = vmatprep.subr.mxu0 %v910
    %944 = vmatpush1.msra.mxu0 %v909
    %945 = vmatprep.subr.mxu0 %v912
    %946 = vmatpush1.msra.mxu0 %v911
    %947 = vmatprep.subr.mxu0 %v914
    %948 = vmatpush1.msra.mxu0 %v913
    %949 = vmatprep.subr.mxu0 %v916
    %950 = vmatpush1.msra.mxu0 %v915
    %951 = vmatprep.subr.mxu0 %v929
    %952 = vmatpush1.msra.mxu0 %v926
    %953 = vmatprep.subr.mxu0 0.0
    %954 = vmatpush1.msra.mxu0 0.0
    %955 = vmatprep.subr.mxu0 0.0
    %956 = vmatpush1.msra.mxu0 0.0
    %957 = vmatprep.subr.mxu0 0.0
    %958 = vmatpush1.msra.mxu0 0.0
    %959 = vmatprep.subr.mxu0 0.0
    %960 = vmatpush1.msra.mxu0 0.0
    %961 = vmatprep.subr.mxu0 0.0
    %962 = vmatpush1.msra.mxu0 0.0
    %963 = vmatprep.subr.mxu0 0.0
    %964 = vmatpush1.msra.mxu0 0.0
    %965 = vmatprep.subr.mxu0 0.0
    %966 = vmatpush1.msra.mxu0 0.0
    %967 = vmatprep.subr.mxu0 0.0
    %968 = vmatpush1.msra.mxu0 0.0
    %969 = vmatprep.subr.mxu0 0.0
    %970 = vmatpush1.msra.mxu0 0.0
    %971 = vmatprep.subr.mxu0 0.0
    %972 = vmatpush1.msra.mxu0 0.0
    %973 = vmatprep.subr.mxu0 0.0
    %974 = vmatpush1.msra.mxu0 0.0
    %975 = vmatprep.subr.mxu0 0.0
    %976 = vmatpush1.msra.mxu0 0.0
    %977 = vmatprep.subr.mxu0 0.0
    %978 = vmatpush1.msra.mxu0 0.0
    %979 = vmatprep.subr.mxu0 0.0
    %980 = vmatpush1.msra.mxu0 0.0
    %981 = vmatprep.subr.mxu0 0.0
    %982 = vmatpush1.msra.mxu0 0.0
    %983 = vmatprep.subr.mxu0 0.0
    %984 = vmatpush1.msra.mxu0 0.0
    %985 = vmatprep.subr.mxu0 0.0
    %986 = vmatpush1.msra.mxu0 0.0
    %987 = vmatprep.subr.mxu0 0.0
    %988 = vmatpush1.msra.mxu0 0.0
    %989 = vmatprep.subr.mxu0 0.0
    %990 = vmatpush1.msra.mxu0 0.0
    %991 = vmatprep.subr.mxu0 0.0
    %992 = vmatpush1.msra.mxu0 0.0
    %993 = vmatprep.subr.mxu0 0.0
    %994 = vmatpush1.msra.mxu0 0.0
    %995 = vmatprep.mubr.f32.mxu0 0.0
    %996 = vmatmul.mubr.f32.gmra.mrb[0].mxu0 %v920
    %v997 = vpop.f32.mrb[0].mxu0
    %v998 = vadd.f32 0.0, %v997
    %v999 = vpop.f32.mrb[0].mxu0
    %v1000 = vadd.f32 0.0, %v999
    %1001 = vmatprep.mubr.f32.mxu0 0.0
    %1002 = vmatmul.mubr.f32.gmra.mrb[0].mxu0 %v923
    %v1003 = vpop.f32.mrb[0].mxu0
    %v1004 = vadd.f32 0.0, %v1003
    %v1005 = vpop.f32.mrb[0].mxu0
    %v1006 = vadd.f32 0.0, %v1005
    %1007 = vdwg.mxu0
    %v1009 = vsel %vm866, %v870, 0
    %v1012 = vsel %vm866, %v871, 0
    %v1015 = vsel %vm679, %v892, 0
    %v1018 = vsel %vm679, %v893, 0
    %1020 = vmatprep.subr.mxu0 %v873
    %1021 = vmatpush1.msra.mxu0 %v872
    %1022 = vmatprep.subr.mxu0 %v875
    %1023 = vmatpush1.msra.mxu0 %v874
    %1024 = vmatprep.subr.mxu0 %v877
    %1025 = vmatpush1.msra.mxu0 %v876
    %1026 = vmatprep.subr.mxu0 %v879
    %1027 = vmatpush1.msra.mxu0 %v878
    %1028 = vmatprep.subr.mxu0 %v881
    %1029 = vmatpush1.msra.mxu0 %v880
    %1030 = vmatprep.subr.mxu0 %v883
    %1031 = vmatpush1.msra.mxu0 %v882
    %1032 = vmatprep.subr.mxu0 %v885
    %1033 = vmatpush1.msra.mxu0 %v884
    %1034 = vmatprep.subr.mxu0 %v887
    %1035 = vmatpush1.msra.mxu0 %v886
    %1036 = vmatprep.subr.mxu0 %v889
    %1037 = vmatpush1.msra.mxu0 %v888
    %1038 = vmatprep.subr.mxu0 %v891
    %1039 = vmatpush1.msra.mxu0 %v890
    %1040 = vmatprep.subr.mxu0 %v1018
    %1041 = vmatpush1.msra.mxu0 %v1015
    %1042 = vmatprep.subr.mxu0 0.0
    %1043 = vmatpush1.msra.mxu0 0.0
    %1044 = vmatprep.subr.mxu0 0.0
    %1045 = vmatpush1.msra.mxu0 0.0
    %1046 = vmatprep.subr.mxu0 0.0
    %1047 = vmatpush1.msra.mxu0 0.0
    %1048 = vmatprep.subr.mxu0 0.0
    %1049 = vmatpush1.msra.mxu0 0.0
    %1050 = vmatprep.subr.mxu0 0.0
    %1051 = vmatpush1.msra.mxu0 0.0
    %1052 = vmatprep.subr.mxu0 0.0
    %1053 = vmatpush1.msra.mxu0 0.0
    %1054 = vmatprep.subr.mxu0 0.0
    %1055 = vmatpush1.msra.mxu0 0.0
    %1056 = vmatprep.subr.mxu0 0.0
    %1057 = vmatpush1.msra.mxu0 0.0
    %1058 = vmatprep.subr.mxu0 0.0
    %1059 = vmatpush1.msra.mxu0 0.0
    %1060 = vmatprep.subr.mxu0 0.0
    %1061 = vmatpush1.msra.mxu0 0.0
    %1062 = vmatprep.subr.mxu0 0.0
    %1063 = vmatpush1.msra.mxu0 0.0
    %1064 = vmatprep.subr.mxu0 0.0
    %1065 = vmatpush1.msra.mxu0 0.0
    %1066 = vmatprep.subr.mxu0 0.0
    %1067 = vmatpush1.msra.mxu0 0.0
    %1068 = vmatprep.subr.mxu0 0.0
    %1069 = vmatpush1.msra.mxu0 0.0
    %1070 = vmatprep.subr.mxu0 0.0
    %1071 = vmatpush1.msra.mxu0 0.0
    %1072 = vmatprep.subr.mxu0 0.0
    %1073 = vmatpush1.msra.mxu0 0.0
    %1074 = vmatprep.subr.mxu0 0.0
    %1075 = vmatpush1.msra.mxu0 0.0
    %1076 = vmatprep.subr.mxu0 0.0
    %1077 = vmatpush1.msra.mxu0 0.0
    %1078 = vmatprep.subr.mxu0 0.0
    %1079 = vmatpush1.msra.mxu0 0.0
    %1080 = vmatprep.subr.mxu0 0.0
    %1081 = vmatpush1.msra.mxu0 0.0
    %1082 = vmatprep.subr.mxu0 0.0
    %1083 = vmatpush1.msra.mxu0 0.0
    %1084 = vmatprep.mubr.f32.mxu0 0.0
    %1085 = vmatmul.mubr.f32.gmra.mrb[0].mxu0 %v1009
    %v1086 = vpop.f32.mrb[0].mxu0
    %v1087 = vadd.f32 %v998, %v1086
    %v1088 = vpop.f32.mrb[0].mxu0
    %v1089 = vadd.f32 %v1000, %v1088
    %1090 = vmatprep.mubr.f32.mxu0 0.0
    %1091 = vmatmul.mubr.f32.gmra.mrb[0].mxu0 %v1012
    %v1092 = vpop.f32.mrb[0].mxu0
    %v1093 = vadd.f32 %v1004, %v1092
    %v1094 = vpop.f32.mrb[0].mxu0
    %v1095 = vadd.f32 %v1006, %v1094
    %1096 = vdwg.mxu0
    %v1097 = vld [vmem:[#allocation2 + $0x2] sm:$0xff]
    %v1098 = vld [vmem:[#allocation2 + $0xa] sm:$0x3]
    %s1099 = scalar_lea.vmem %s3, 352
    %v1100 = vld [vmem:[%s1099] sm:$0xff]
    %v1101 = vld [vmem:[%s1099 + $0x8] sm:$0xff]
    %v1102 = vld [vmem:[%s1099 + $0x10] sm:$0xff]
    %v1103 = vld [vmem:[%s1099 + $0x18] sm:$0xff]
    %v1104 = vld [vmem:[%s1099 + $0x20] sm:$0xff]
    %v1105 = vld [vmem:[%s1099 + $0x28] sm:$0xff]
    %v1106 = vld [vmem:[%s1099 + $0x30] sm:$0xff]
    %v1107 = vld [vmem:[%s1099 + $0x38] sm:$0xff]
    %v1108 = vld [vmem:[%s1099 + $0x40] sm:$0xff]
    %v1109 = vld [vmem:[%s1099 + $0x48] sm:$0xff]
    %v1110 = vld [vmem:[%s1099 + $0x50] sm:$0xff]
    %v1111 = vld [vmem:[%s1099 + $0x58] sm:$0xff]
    %v1112 = vld [vmem:[%s1099 + $0x60] sm:$0xff]
    %v1113 = vld [vmem:[%s1099 + $0x68] sm:$0xff]
    %v1114 = vld [vmem:[%s1099 + $0x70] sm:$0xff]
    %v1115 = vld [vmem:[%s1099 + $0x78] sm:$0xff]
    %v1116 = vld [vmem:[%s1099 + $0x80] sm:$0xff]
    %v1117 = vld [vmem:[%s1099 + $0x88] sm:$0xff]
    %v1118 = vld [vmem:[%s1099 + $0x90] sm:$0xff]
    %v1119 = vld [vmem:[%s1099 + $0x98] sm:$0xff]
    %v1120 = vld [vmem:[%s1099 + $0xa0] sm:$0xf]
    %v1121 = vld [vmem:[%s1099 + $0xa8] sm:$0xf]
    %v1123 = vsel %vm866, %v1097, 0
    %v1126 = vsel %vm866, %v1098, 0
    %v1129 = vsel %vm679, %v1120, 0
    %v1132 = vsel %vm679, %v1121, 0
    %1134 = vmatprep.subr.mxu0 %v1101
    %1135 = vmatpush1.msra.mxu0 %v1100
    %1136 = vmatprep.subr.mxu0 %v1103
    %1137 = vmatpush1.msra.mxu0 %v1102
    %1138 = vmatprep.subr.mxu0 %v1105
    %1139 = vmatpush1.msra.mxu0 %v1104
    %1140 = vmatprep.subr.mxu0 %v1107
    %1141 = vmatpush1.msra.mxu0 %v1106
    %1142 = vmatprep.subr.mxu0 %v1109
    %1143 = vmatpush1.msra.mxu0 %v1108
    %1144 = vmatprep.subr.mxu0 %v1111
    %1145 = vmatpush1.msra.mxu0 %v1110
    %1146 = vmatprep.subr.mxu0 %v1113
    %1147 = vmatpush1.msra.mxu0 %v1112
    %1148 = vmatprep.subr.mxu0 %v1115
    %1149 = vmatpush1.msra.mxu0 %v1114
    %1150 = vmatprep.subr.mxu0 %v1117
    %1151 = vmatpush1.msra.mxu0 %v1116
    %1152 = vmatprep.subr.mxu0 %v1119
    %1153 = vmatpush1.msra.mxu0 %v1118
    %1154 = vmatprep.subr.mxu0 %v1132
    %1155 = vmatpush1.msra.mxu0 %v1129
    %1156 = vmatprep.subr.mxu0 0.0
    %1157 = vmatpush1.msra.mxu0 0.0
    %1158 = vmatprep.subr.mxu0 0.0
    %1159 = vmatpush1.msra.mxu0 0.0
    %1160 = vmatprep.subr.mxu0 0.0
    %1161 = vmatpush1.msra.mxu0 0.0
    %1162 = vmatprep.subr.mxu0 0.0
    %1163 = vmatpush1.msra.mxu0 0.0
    %1164 = vmatprep.subr.mxu0 0.0
    %1165 = vmatpush1.msra.mxu0 0.0
    %1166 = vmatprep.subr.mxu0 0.0
    %1167 = vmatpush1.msra.mxu0 0.0
    %1168 = vmatprep.subr.mxu0 0.0
    %1169 = vmatpush1.msra.mxu0 0.0
    %1170 = vmatprep.subr.mxu0 0.0
    %1171 = vmatpush1.msra.mxu0 0.0
    %1172 = vmatprep.subr.mxu0 0.0
    %1173 = vmatpush1.msra.mxu0 0.0
    %1174 = vmatprep.subr.mxu0 0.0
    %1175 = vmatpush1.msra.mxu0 0.0
    %1176 = vmatprep.subr.mxu0 0.0
    %1177 = vmatpush1.msra.mxu0 0.0
    %1178 = vmatprep.subr.mxu0 0.0
    %1179 = vmatpush1.msra.mxu0 0.0
    %1180 = vmatprep.subr.mxu0 0.0
    %1181 = vmatpush1.msra.mxu0 0.0
    %1182 = vmatprep.subr.mxu0 0.0
    %1183 = vmatpush1.msra.mxu0 0.0
    %1184 = vmatprep.subr.mxu0 0.0
    %1185 = vmatpush1.msra.mxu0 0.0
    %1186 = vmatprep.subr.mxu0 0.0
    %1187 = vmatpush1.msra.mxu0 0.0
    %1188 = vmatprep.subr.mxu0 0.0
    %1189 = vmatpush1.msra.mxu0 0.0
    %1190 = vmatprep.subr.mxu0 0.0
    %1191 = vmatpush1.msra.mxu0 0.0
    %1192 = vmatprep.subr.mxu0 0.0
    %1193 = vmatpush1.msra.mxu0 0.0
    %1194 = vmatprep.subr.mxu0 0.0
    %1195 = vmatpush1.msra.mxu0 0.0
    %1196 = vmatprep.subr.mxu0 0.0
    %1197 = vmatpush1.msra.mxu0 0.0
    %1198 = vmatprep.mubr.f32.mxu0 0.0
    %1199 = vmatmul.mubr.f32.gmra.mrb[0].mxu0 %v1123
    %v1200 = vpop.f32.mrb[0].mxu0
    %v1201 = vadd.f32 0.0, %v1200
    %v1202 = vpop.f32.mrb[0].mxu0
    %v1203 = vadd.f32 0.0, %v1202
    %1204 = vmatprep.mubr.f32.mxu0 0.0
    %1205 = vmatmul.mubr.f32.gmra.mrb[0].mxu0 %v1126
    %v1206 = vpop.f32.mrb[0].mxu0
    %v1207 = vadd.f32 0.0, %v1206
    %v1208 = vpop.f32.mrb[0].mxu0
    %v1209 = vadd.f32 0.0, %v1208
    %1210 = vdwg.mxu0
    %v1211 = vadd.f32 %v1087, %v1201
    %v1212 = vadd.f32 %v1089, %v1203
    %v1213 = vadd.f32 %v1093, %v1207
    %v1214 = vadd.f32 %v1095, %v1209
    %v1215 = vld [vmem:[#allocation2 + $0x3] sm:$0xff]
    %v1216 = vld [vmem:[#allocation2 + $0xb] sm:$0x3]
    %s1217 = scalar_lea.vmem %s3, 528
    %v1218 = vld [vmem:[%s1217] sm:$0xff]
    %v1219 = vld [vmem:[%s1217 + $0x8] sm:$0xff]
    %v1220 = vld [vmem:[%s1217 + $0x10] sm:$0xff]
    %v1221 = vld [vmem:[%s1217 + $0x18] sm:$0xff]
    %v1222 = vld [vmem:[%s1217 + $0x20] sm:$0xff]
    %v1223 = vld [vmem:[%s1217 + $0x28] sm:$0xff]
    %v1224 = vld [vmem:[%s1217 + $0x30] sm:$0xff]
    %v1225 = vld [vmem:[%s1217 + $0x38] sm:$0xff]
    %v1226 = vld [vmem:[%s1217 + $0x40] sm:$0xff]
    %v1227 = vld [vmem:[%s1217 + $0x48] sm:$0xff]
    %v1228 = vld [vmem:[%s1217 + $0x50] sm:$0xff]
    %v1229 = vld [vmem:[%s1217 + $0x58] sm:$0xff]
    %v1230 = vld [vmem:[%s1217 + $0x60] sm:$0xff]
    %v1231 = vld [vmem:[%s1217 + $0x68] sm:$0xff]
    %v1232 = vld [vmem:[%s1217 + $0x70] sm:$0xff]
    %v1233 = vld [vmem:[%s1217 + $0x78] sm:$0xff]
    %v1234 = vld [vmem:[%s1217 + $0x80] sm:$0xff]
    %v1235 = vld [vmem:[%s1217 + $0x88] sm:$0xff]
    %v1236 = vld [vmem:[%s1217 + $0x90] sm:$0xff]
    %v1237 = vld [vmem:[%s1217 + $0x98] sm:$0xff]
    %v1238 = vld [vmem:[%s1217 + $0xa0] sm:$0xf]
    %v1239 = vld [vmem:[%s1217 + $0xa8] sm:$0xf]
    %v1241 = vsel %vm866, %v1215, 0
    %v1244 = vsel %vm866, %v1216, 0
    %v1247 = vsel %vm679, %v1238, 0
    %v1250 = vsel %vm679, %v1239, 0
    %1252 = vmatprep.subr.mxu0 %v1219
    %1253 = vmatpush1.msra.mxu0 %v1218
    %1254 = vmatprep.subr.mxu0 %v1221
    %1255 = vmatpush1.msra.mxu0 %v1220
    %1256 = vmatprep.subr.mxu0 %v1223
    %1257 = vmatpush1.msra.mxu0 %v1222
    %1258 = vmatprep.subr.mxu0 %v1225
    %1259 = vmatpush1.msra.mxu0 %v1224
    %1260 = vmatprep.subr.mxu0 %v1227
    %1261 = vmatpush1.msra.mxu0 %v1226
    %1262 = vmatprep.subr.mxu0 %v1229
    %1263 = vmatpush1.msra.mxu0 %v1228
    %1264 = vmatprep.subr.mxu0 %v1231
    %1265 = vmatpush1.msra.mxu0 %v1230
    %1266 = vmatprep.subr.mxu0 %v1233
    %1267 = vmatpush1.msra.mxu0 %v1232
    %1268 = vmatprep.subr.mxu0 %v1235
    %1269 = vmatpush1.msra.mxu0 %v1234
    %1270 = vmatprep.subr.mxu0 %v1237
    %1271 = vmatpush1.msra.mxu0 %v1236
    %1272 = vmatprep.subr.mxu0 %v1250
    %1273 = vmatpush1.msra.mxu0 %v1247
    %1274 = vmatprep.subr.mxu0 0.0
    %1275 = vmatpush1.msra.mxu0 0.0
    %1276 = vmatprep.subr.mxu0 0.0
    %1277 = vmatpush1.msra.mxu0 0.0
    %1278 = vmatprep.subr.mxu0 0.0
    %1279 = vmatpush1.msra.mxu0 0.0
    %1280 = vmatprep.subr.mxu0 0.0
    %1281 = vmatpush1.msra.mxu0 0.0
    %1282 = vmatprep.subr.mxu0 0.0
    %1283 = vmatpush1.msra.mxu0 0.0
    %1284 = vmatprep.subr.mxu0 0.0
    %1285 = vmatpush1.msra.mxu0 0.0
    %1286 = vmatprep.subr.mxu0 0.0
    %1287 = vmatpush1.msra.mxu0 0.0
    %1288 = vmatprep.subr.mxu0 0.0
    %1289 = vmatpush1.msra.mxu0 0.0
    %1290 = vmatprep.subr.mxu0 0.0
    %1291 = vmatpush1.msra.mxu0 0.0
    %1292 = vmatprep.subr.mxu0 0.0
    %1293 = vmatpush1.msra.mxu0 0.0
    %1294 = vmatprep.subr.mxu0 0.0
    %1295 = vmatpush1.msra.mxu0 0.0
    %1296 = vmatprep.subr.mxu0 0.0
    %1297 = vmatpush1.msra.mxu0 0.0
    %1298 = vmatprep.subr.mxu0 0.0
    %1299 = vmatpush1.msra.mxu0 0.0
    %1300 = vmatprep.subr.mxu0 0.0
    %1301 = vmatpush1.msra.mxu0 0.0
    %1302 = vmatprep.subr.mxu0 0.0
    %1303 = vmatpush1.msra.mxu0 0.0
    %1304 = vmatprep.subr.mxu0 0.0
    %1305 = vmatpush1.msra.mxu0 0.0
    %1306 = vmatprep.subr.mxu0 0.0
    %1307 = vmatpush1.msra.mxu0 0.0
    %1308 = vmatprep.subr.mxu0 0.0
    %1309 = vmatpush1.msra.mxu0 0.0
    %1310 = vmatprep.subr.mxu0 0.0
    %1311 = vmatpush1.msra.mxu0 0.0
    %1312 = vmatprep.subr.mxu0 0.0
    %1313 = vmatpush1.msra.mxu0 0.0
    %1314 = vmatprep.subr.mxu0 0.0
    %1315 = vmatpush1.msra.mxu0 0.0
    %1316 = vmatprep.mubr.f32.mxu0 0.0
    %1317 = vmatmul.mubr.f32.gmra.mrb[0].mxu0 %v1241
    %v1318 = vpop.f32.mrb[0].mxu0
    %v1319 = vadd.f32 0.0, %v1318
    %v1320 = vpop.f32.mrb[0].mxu0
    %v1321 = vadd.f32 0.0, %v1320
    %1322 = vmatprep.mubr.f32.mxu0 0.0
    %1323 = vmatmul.mubr.f32.gmra.mrb[0].mxu0 %v1244
    %v1324 = vpop.f32.mrb[0].mxu0
    %v1325 = vadd.f32 0.0, %v1324
    %v1326 = vpop.f32.mrb[0].mxu0
    %v1327 = vadd.f32 0.0, %v1326
    %1328 = vdwg.mxu0
    %v1329 = vadd.f32 %v1211, %v1319
    %v1330 = vadd.f32 %v1212, %v1321
    %v1331 = vadd.f32 %v1213, %v1325
    %v1332 = vadd.f32 %v1214, %v1327
    %v1333 = vld [vmem:[#allocation2 + $0x4] sm:$0xff]
    %v1334 = vld [vmem:[#allocation2 + $0xc] sm:$0x3]
    %s1335 = scalar_lea.vmem %s3, 704
    %v1336 = vld [vmem:[%s1335] sm:$0xff]
    %v1337 = vld [vmem:[%s1335 + $0x8] sm:$0xff]
    %v1338 = vld [vmem:[%s1335 + $0x10] sm:$0xff]
    %v1339 = vld [vmem:[%s1335 + $0x18] sm:$0xff]
    %v1340 = vld [vmem:[%s1335 + $0x20] sm:$0xff]
    %v1341 = vld [vmem:[%s1335 + $0x28] sm:$0xff]
    %v1342 = vld [vmem:[%s1335 + $0x30] sm:$0xff]
    %v1343 = vld [vmem:[%s1335 + $0x38] sm:$0xff]
    %v1344 = vld [vmem:[%s1335 + $0x40] sm:$0xff]
    %v1345 = vld [vmem:[%s1335 + $0x48] sm:$0xff]
    %v1346 = vld [vmem:[%s1335 + $0x50] sm:$0xff]
    %v1347 = vld [vmem:[%s1335 + $0x58] sm:$0xff]
    %v1348 = vld [vmem:[%s1335 + $0x60] sm:$0xff]
    %v1349 = vld [vmem:[%s1335 + $0x68] sm:$0xff]
    %v1350 = vld [vmem:[%s1335 + $0x70] sm:$0xff]
    %v1351 = vld [vmem:[%s1335 + $0x78] sm:$0xff]
    %v1352 = vld [vmem:[%s1335 + $0x80] sm:$0xff]
    %v1353 = vld [vmem:[%s1335 + $0x88] sm:$0xff]
    %v1354 = vld [vmem:[%s1335 + $0x90] sm:$0xff]
    %v1355 = vld [vmem:[%s1335 + $0x98] sm:$0xff]
    %v1356 = vld [vmem:[%s1335 + $0xa0] sm:$0xf]
    %v1357 = vld [vmem:[%s1335 + $0xa8] sm:$0xf]
    %v1359 = vsel %vm866, %v1333, 0
    %v1362 = vsel %vm866, %v1334, 0
    %v1365 = vsel %vm679, %v1356, 0
    %v1368 = vsel %vm679, %v1357, 0
    %1370 = vmatprep.subr.mxu0 %v1337
    %1371 = vmatpush1.msra.mxu0 %v1336
    %1372 = vmatprep.subr.mxu0 %v1339
    %1373 = vmatpush1.msra.mxu0 %v1338
    %1374 = vmatprep.subr.mxu0 %v1341
    %1375 = vmatpush1.msra.mxu0 %v1340
    %1376 = vmatprep.subr.mxu0 %v1343
    %1377 = vmatpush1.msra.mxu0 %v1342
    %1378 = vmatprep.subr.mxu0 %v1345
    %1379 = vmatpush1.msra.mxu0 %v1344
    %1380 = vmatprep.subr.mxu0 %v1347
    %1381 = vmatpush1.msra.mxu0 %v1346
    %1382 = vmatprep.subr.mxu0 %v1349
    %1383 = vmatpush1.msra.mxu0 %v1348
    %1384 = vmatprep.subr.mxu0 %v1351
    %1385 = vmatpush1.msra.mxu0 %v1350
    %1386 = vmatprep.subr.mxu0 %v1353
    %1387 = vmatpush1.msra.mxu0 %v1352
    %1388 = vmatprep.subr.mxu0 %v1355
    %1389 = vmatpush1.msra.mxu0 %v1354
    %1390 = vmatprep.subr.mxu0 %v1368
    %1391 = vmatpush1.msra.mxu0 %v1365
    %1392 = vmatprep.subr.mxu0 0.0
    %1393 = vmatpush1.msra.mxu0 0.0
    %1394 = vmatprep.subr.mxu0 0.0
    %1395 = vmatpush1.msra.mxu0 0.0
    %1396 = vmatprep.subr.mxu0 0.0
    %1397 = vmatpush1.msra.mxu0 0.0
    %1398 = vmatprep.subr.mxu0 0.0
    %1399 = vmatpush1.msra.mxu0 0.0
    %1400 = vmatprep.subr.mxu0 0.0
    %1401 = vmatpush1.msra.mxu0 0.0
    %1402 = vmatprep.subr.mxu0 0.0
    %1403 = vmatpush1.msra.mxu0 0.0
    %1404 = vmatprep.subr.mxu0 0.0
    %1405 = vmatpush1.msra.mxu0 0.0
    %1406 = vmatprep.subr.mxu0 0.0
    %1407 = vmatpush1.msra.mxu0 0.0
    %1408 = vmatprep.subr.mxu0 0.0
    %1409 = vmatpush1.msra.mxu0 0.0
    %1410 = vmatprep.subr.mxu0 0.0
    %1411 = vmatpush1.msra.mxu0 0.0
    %1412 = vmatprep.subr.mxu0 0.0
    %1413 = vmatpush1.msra.mxu0 0.0
    %1414 = vmatprep.subr.mxu0 0.0
    %1415 = vmatpush1.msra.mxu0 0.0
    %1416 = vmatprep.subr.mxu0 0.0
    %1417 = vmatpush1.msra.mxu0 0.0
    %1418 = vmatprep.subr.mxu0 0.0
    %1419 = vmatpush1.msra.mxu0 0.0
    %1420 = vmatprep.subr.mxu0 0.0
    %1421 = vmatpush1.msra.mxu0 0.0
    %1422 = vmatprep.subr.mxu0 0.0
    %1423 = vmatpush1.msra.mxu0 0.0
    %1424 = vmatprep.subr.mxu0 0.0
    %1425 = vmatpush1.msra.mxu0 0.0
    %1426 = vmatprep.subr.mxu0 0.0
    %1427 = vmatpush1.msra.mxu0 0.0
    %1428 = vmatprep.subr.mxu0 0.0
    %1429 = vmatpush1.msra.mxu0 0.0
    %1430 = vmatprep.subr.mxu0 0.0
    %1431 = vmatpush1.msra.mxu0 0.0
    %1432 = vmatprep.subr.mxu0 0.0
    %1433 = vmatpush1.msra.mxu0 0.0
    %1434 = vmatprep.mubr.f32.mxu0 0.0
    %1435 = vmatmul.mubr.f32.gmra.mrb[0].mxu0 %v1359
    %v1436 = vpop.f32.mrb[0].mxu0
    %v1437 = vadd.f32 0.0, %v1436
    %v1438 = vpop.f32.mrb[0].mxu0
    %v1439 = vadd.f32 0.0, %v1438
    %1440 = vmatprep.mubr.f32.mxu0 0.0
    %1441 = vmatmul.mubr.f32.gmra.mrb[0].mxu0 %v1362
    %v1442 = vpop.f32.mrb[0].mxu0
    %v1443 = vadd.f32 0.0, %v1442
    %v1444 = vpop.f32.mrb[0].mxu0
    %v1445 = vadd.f32 0.0, %v1444
    %1446 = vdwg.mxu0
    %v1447 = vadd.f32 %v1329, %v1437
    %v1448 = vadd.f32 %v1330, %v1439
    %v1449 = vadd.f32 %v1331, %v1443
    %v1450 = vadd.f32 %v1332, %v1445
    %1451 = vst [vmem:[#allocation3] sm:$0xff] %v1447
    %1452 = vst.msk [vmem:[#allocation3 + $0x8] sm:$0xff] %vm73, %v1448
    %1453 = vst [vmem:[#allocation3 + $0x10] sm:$0x3] %v1449
    %vm1454 = vcmask 254976
    %1455 = vst.msk [vmem:[#allocation3 + $0x18] sm:$0x3] %vm1454, %v1450
    %s1456 = scalar_lea.vmem %s0, 32
    %v1457 = vld [vmem:[%s1456] sm:$0xff]
    %v1458 = vld [vmem:[%s1456 + $0x8] sm:$0xff]
    %v1459 = vld [vmem:[%s1456 + $0x10] sm:$0xff]
    %v1460 = vld [vmem:[%s1456 + $0x18] sm:$0xf]
    %v1461 = vld [vmem:[%s1] sm:$0xff]
    %v1462 = vld [vmem:[%s1 + $0x8] sm:$0xff]
    %v1463 = vld [vmem:[%s1 + $0x10] sm:$0xff]
    %v1464 = vld [vmem:[%s1 + $0x18] sm:$0xff]
    %v1465 = vld [vmem:[%s1 + $0x20] sm:$0xff]
    %v1466 = vld [vmem:[%s1 + $0x28] sm:$0xff]
    %v1467 = vld [vmem:[%s1 + $0x30] sm:$0xff]
    %v1468 = vld [vmem:[%s1 + $0x38] sm:$0xff]
    %v1469 = vld [vmem:[%s1456 + $0x1] sm:$0xff]
    %v1470 = vld [vmem:[%s1456 + $0x9] sm:$0xff]
    %v1471 = vld [vmem:[%s1456 + $0x11] sm:$0xff]
    %v1472 = vld [vmem:[%s1456 + $0x19] sm:$0xf]
    %v1473 = vld [vmem:[%s64] sm:$0xff]
    %v1474 = vld [vmem:[%s64 + $0x8] sm:$0xff]
    %v1475 = vld [vmem:[%s64 + $0x10] sm:$0xff]
    %v1476 = vld [vmem:[%s64 + $0x18] sm:$0xff]
    %v1477 = vld [vmem:[%s64 + $0x20] sm:$0xff]
    %v1478 = vld [vmem:[%s64 + $0x28] sm:$0xff]
    %v1479 = vld [vmem:[%s64 + $0x30] sm:$0xff]
    %v1480 = vld [vmem:[%s64 + $0x38] sm:$0xff]
    %v1482 = vsel %vm73, %v1469, 0
    %v1485 = vsel %vm73, %v1470, 0
    %v1488 = vsel %vm73, %v1471, 0
    %v1491 = vsel %vm73, %v1472, 0
    %1493 = vmatprep.subr.mxu0 %v1474
    %1494 = vmatpush1.msra.mxu0 %v1473
    %1495 = vmatprep.subr.mxu0 %v1476
    %1496 = vmatpush1.msra.mxu0 %v1475
    %1497 = vmatprep.subr.mxu0 %v1478
    %1498 = vmatpush1.msra.mxu0 %v1477
    %1499 = vmatprep.subr.mxu0 %v1480
    %1500 = vmatpush1.msra.mxu0 %v1479
    %1501 = vmatprep.subr.mxu0 0.0
    %1502 = vmatpush1.msra.mxu0 0.0
    %1503 = vmatprep.subr.mxu0 0.0
    %1504 = vmatpush1.msra.mxu0 0.0
    %1505 = vmatprep.subr.mxu0 0.0
    %1506 = vmatpush1.msra.mxu0 0.0
    %1507 = vmatprep.subr.mxu0 0.0
    %1508 = vmatpush1.msra.mxu0 0.0
    %1509 = vmatprep.subr.mxu0 0.0
    %1510 = vmatpush1.msra.mxu0 0.0
    %1511 = vmatprep.subr.mxu0 0.0
    %1512 = vmatpush1.msra.mxu0 0.0
    %1513 = vmatprep.subr.mxu0 0.0
    %1514 = vmatpush1.msra.mxu0 0.0
    %1515 = vmatprep.subr.mxu0 0.0
    %1516 = vmatpush1.msra.mxu0 0.0
    %1517 = vmatprep.subr.mxu0 0.0
    %1518 = vmatpush1.msra.mxu0 0.0
    %1519 = vmatprep.subr.mxu0 0.0
    %1520 = vmatpush1.msra.mxu0 0.0
    %1521 = vmatprep.subr.mxu0 0.0
    %1522 = vmatpush1.msra.mxu0 0.0
    %1523 = vmatprep.subr.mxu0 0.0
    %1524 = vmatpush1.msra.mxu0 0.0
    %1525 = vmatprep.subr.mxu0 0.0
    %1526 = vmatpush1.msra.mxu0 0.0
    %1527 = vmatprep.subr.mxu0 0.0
    %1528 = vmatpush1.msra.mxu0 0.0
    %1529 = vmatprep.subr.mxu0 0.0
    %1530 = vmatpush1.msra.mxu0 0.0
    %1531 = vmatprep.subr.mxu0 0.0
    %1532 = vmatpush1.msra.mxu0 0.0
    %1533 = vmatprep.subr.mxu0 0.0
    %1534 = vmatpush1.msra.mxu0 0.0
    %1535 = vmatprep.subr.mxu0 0.0
    %1536 = vmatpush1.msra.mxu0 0.0
    %1537 = vmatprep.subr.mxu0 0.0
    %1538 = vmatpush1.msra.mxu0 0.0
    %1539 = vmatprep.subr.mxu0 0.0
    %1540 = vmatpush1.msra.mxu0 0.0
    %1541 = vmatprep.subr.mxu0 0.0
    %1542 = vmatpush1.msra.mxu0 0.0
    %1543 = vmatprep.subr.mxu0 0.0
    %1544 = vmatpush1.msra.mxu0 0.0
    %1545 = vmatprep.subr.mxu0 0.0
    %1546 = vmatpush1.msra.mxu0 0.0
    %1547 = vmatprep.subr.mxu0 0.0
    %1548 = vmatpush1.msra.mxu0 0.0
    %1549 = vmatprep.subr.mxu0 0.0
    %1550 = vmatpush1.msra.mxu0 0.0
    %1551 = vmatprep.subr.mxu0 0.0
    %1552 = vmatpush1.msra.mxu0 0.0
    %1553 = vmatprep.subr.mxu0 0.0
    %1554 = vmatpush1.msra.mxu0 0.0
    %1555 = vmatprep.subr.mxu0 0.0
    %1556 = vmatpush1.msra.mxu0 0.0
    %1557 = vmatprep.mubr.f32.mxu0 0.0
    %1558 = vmatmul.mubr.f32.gmra.mrb[0].mxu0 %v1482
    %v1559 = vpop.f32.mrb[0].mxu0
    %v1560 = vadd.f32 0.0, %v1559
    %v1561 = vpop.f32.mrb[0].mxu0
    %v1562 = vadd.f32 0.0, %v1561
    %1563 = vmatprep.mubr.f32.mxu0 0.0
    %1564 = vmatmul.mubr.f32.gmra.mrb[0].mxu0 %v1485
    %v1565 = vpop.f32.mrb[0].mxu0
    %v1566 = vadd.f32 0.0, %v1565
    %v1567 = vpop.f32.mrb[0].mxu0
    %v1568 = vadd.f32 0.0, %v1567
    %1569 = vmatprep.mubr.f32.mxu0 0.0
    %1570 = vmatmul.mubr.f32.gmra.mrb[0].mxu0 %v1488
    %v1571 = vpop.f32.mrb[0].mxu0
    %v1572 = vadd.f32 0.0, %v1571
    %v1573 = vpop.f32.mrb[0].mxu0
    %v1574 = vadd.f32 0.0, %v1573
    %1575 = vmatprep.mubr.f32.mxu0 0.0
    %1576 = vmatmul.mubr.f32.gmra.mrb[0].mxu0 %v1491
    %v1577 = vpop.f32.mrb[0].mxu0
    %v1578 = vadd.f32 0.0, %v1577
    %v1579 = vpop.f32.mrb[0].mxu0
    %v1580 = vadd.f32 0.0, %v1579
    %1581 = vdwg.mxu0
    %v1583 = vsel %vm73, %v1457, 0
    %v1586 = vsel %vm73, %v1458, 0
    %v1589 = vsel %vm73, %v1459, 0
    %v1592 = vsel %vm73, %v1460, 0
    %1594 = vmatprep.subr.mxu0 %v1462
    %1595 = vmatpush1.msra.mxu0 %v1461
    %1596 = vmatprep.subr.mxu0 %v1464
    %1597 = vmatpush1.msra.mxu0 %v1463
    %1598 = vmatprep.subr.mxu0 %v1466
    %1599 = vmatpush1.msra.mxu0 %v1465
    %1600 = vmatprep.subr.mxu0 %v1468
    %1601 = vmatpush1.msra.mxu0 %v1467
    %1602 = vmatprep.subr.mxu0 0.0
    %1603 = vmatpush1.msra.mxu0 0.0
    %1604 = vmatprep.subr.mxu0 0.0
    %1605 = vmatpush1.msra.mxu0 0.0
    %1606 = vmatprep.subr.mxu0 0.0
    %1607 = vmatpush1.msra.mxu0 0.0
    %1608 = vmatprep.subr.mxu0 0.0
    %1609 = vmatpush1.msra.mxu0 0.0
    %1610 = vmatprep.subr.mxu0 0.0
    %1611 = vmatpush1.msra.mxu0 0.0
    %1612 = vmatprep.subr.mxu0 0.0
    %1613 = vmatpush1.msra.mxu0 0.0
    %1614 = vmatprep.subr.mxu0 0.0
    %1615 = vmatpush1.msra.mxu0 0.0
    %1616 = vmatprep.subr.mxu0 0.0
    %1617 = vmatpush1.msra.mxu0 0.0
    %1618 = vmatprep.subr.mxu0 0.0
    %1619 = vmatpush1.msra.mxu0 0.0
    %1620 = vmatprep.subr.mxu0 0.0
    %1621 = vmatpush1.msra.mxu0 0.0
    %1622 = vmatprep.subr.mxu0 0.0
    %1623 = vmatpush1.msra.mxu0 0.0
    %1624 = vmatprep.subr.mxu0 0.0
    %1625 = vmatpush1.msra.mxu0 0.0
    %1626 = vmatprep.subr.mxu0 0.0
    %1627 = vmatpush1.msra.mxu0 0.0
    %1628 = vmatprep.subr.mxu0 0.0
    %1629 = vmatpush1.msra.mxu0 0.0
    %1630 = vmatprep.subr.mxu0 0.0
    %1631 = vmatpush1.msra.mxu0 0.0
    %1632 = vmatprep.subr.mxu0 0.0
    %1633 = vmatpush1.msra.mxu0 0.0
    %1634 = vmatprep.subr.mxu0 0.0
    %1635 = vmatpush1.msra.mxu0 0.0
    %1636 = vmatprep.subr.mxu0 0.0
    %1637 = vmatpush1.msra.mxu0 0.0
    %1638 = vmatprep.subr.mxu0 0.0
    %1639 = vmatpush1.msra.mxu0 0.0
    %1640 = vmatprep.subr.mxu0 0.0
    %1641 = vmatpush1.msra.mxu0 0.0
    %1642 = vmatprep.subr.mxu0 0.0
    %1643 = vmatpush1.msra.mxu0 0.0
    %1644 = vmatprep.subr.mxu0 0.0
    %1645 = vmatpush1.msra.mxu0 0.0
    %1646 = vmatprep.subr.mxu0 0.0
    %1647 = vmatpush1.msra.mxu0 0.0
    %1648 = vmatprep.subr.mxu0 0.0
    %1649 = vmatpush1.msra.mxu0 0.0
    %1650 = vmatprep.subr.mxu0 0.0
    %1651 = vmatpush1.msra.mxu0 0.0
    %1652 = vmatprep.subr.mxu0 0.0
    %1653 = vmatpush1.msra.mxu0 0.0
    %1654 = vmatprep.subr.mxu0 0.0
    %1655 = vmatpush1.msra.mxu0 0.0
    %1656 = vmatprep.subr.mxu0 0.0
    %1657 = vmatpush1.msra.mxu0 0.0
    %1658 = vmatprep.mubr.f32.mxu0 0.0
    %1659 = vmatmul.mubr.f32.gmra.mrb[0].mxu0 %v1583
    %v1660 = vpop.f32.mrb[0].mxu0
    %v1661 = vadd.f32 %v1560, %v1660
    %v1662 = vpop.f32.mrb[0].mxu0
    %v1663 = vadd.f32 %v1562, %v1662
    %1664 = vmatprep.mubr.f32.mxu0 0.0
    %1665 = vmatmul.mubr.f32.gmra.mrb[0].mxu0 %v1586
    %v1666 = vpop.f32.mrb[0].mxu0
    %v1667 = vadd.f32 %v1566, %v1666
    %v1668 = vpop.f32.mrb[0].mxu0
    %v1669 = vadd.f32 %v1568, %v1668
    %1670 = vmatprep.mubr.f32.mxu0 0.0
    %1671 = vmatmul.mubr.f32.gmra.mrb[0].mxu0 %v1589
    %v1672 = vpop.f32.mrb[0].mxu0
    %v1673 = vadd.f32 %v1572, %v1672
    %v1674 = vpop.f32.mrb[0].mxu0
    %v1675 = vadd.f32 %v1574, %v1674
    %1676 = vmatprep.mubr.f32.mxu0 0.0
    %1677 = vmatmul.mubr.f32.gmra.mrb[0].mxu0 %v1592
    %v1678 = vpop.f32.mrb[0].mxu0
    %v1679 = vadd.f32 %v1578, %v1678
    %v1680 = vpop.f32.mrb[0].mxu0
    %v1681 = vadd.f32 %v1580, %v1680
    %1682 = vdwg.mxu0
    %v1683 = vld [vmem:[%s1456 + $0x2] sm:$0xff]
    %v1684 = vld [vmem:[%s1456 + $0xa] sm:$0xff]
    %v1685 = vld [vmem:[%s1456 + $0x12] sm:$0xff]
    %v1686 = vld [vmem:[%s1456 + $0x1a] sm:$0xf]
    %v1687 = vld [vmem:[%s280] sm:$0xff]
    %v1688 = vld [vmem:[%s280 + $0x8] sm:$0xff]
    %v1689 = vld [vmem:[%s280 + $0x10] sm:$0xff]
    %v1690 = vld [vmem:[%s280 + $0x18] sm:$0xff]
    %v1691 = vld [vmem:[%s280 + $0x20] sm:$0xff]
    %v1692 = vld [vmem:[%s280 + $0x28] sm:$0xff]
    %v1693 = vld [vmem:[%s280 + $0x30] sm:$0xff]
    %v1694 = vld [vmem:[%s280 + $0x38] sm:$0xff]
    %v1696 = vsel %vm73, %v1683, 0
    %v1699 = vsel %vm73, %v1684, 0
    %v1702 = vsel %vm73, %v1685, 0
    %v1705 = vsel %vm73, %v1686, 0
    %1707 = vmatprep.subr.mxu0 %v1688
    %1708 = vmatpush1.msra.mxu0 %v1687
    %1709 = vmatprep.subr.mxu0 %v1690
    %1710 = vmatpush1.msra.mxu0 %v1689
    %1711 = vmatprep.subr.mxu0 %v1692
    %1712 = vmatpush1.msra.mxu0 %v1691
    %1713 = vmatprep.subr.mxu0 %v1694
    %1714 = vmatpush1.msra.mxu0 %v1693
    %1715 = vmatprep.subr.mxu0 0.0
    %1716 = vmatpush1.msra.mxu0 0.0
    %1717 = vmatprep.subr.mxu0 0.0
    %1718 = vmatpush1.msra.mxu0 0.0
    %1719 = vmatprep.subr.mxu0 0.0
    %1720 = vmatpush1.msra.mxu0 0.0
    %1721 = vmatprep.subr.mxu0 0.0
    %1722 = vmatpush1.msra.mxu0 0.0
    %1723 = vmatprep.subr.mxu0 0.0
    %1724 = vmatpush1.msra.mxu0 0.0
    %1725 = vmatprep.subr.mxu0 0.0
    %1726 = vmatpush1.msra.mxu0 0.0
    %1727 = vmatprep.subr.mxu0 0.0
    %1728 = vmatpush1.msra.mxu0 0.0
    %1729 = vmatprep.subr.mxu0 0.0
    %1730 = vmatpush1.msra.mxu0 0.0
    %1731 = vmatprep.subr.mxu0 0.0
    %1732 = vmatpush1.msra.mxu0 0.0
    %1733 = vmatprep.subr.mxu0 0.0
    %1734 = vmatpush1.msra.mxu0 0.0
    %1735 = vmatprep.subr.mxu0 0.0
    %1736 = vmatpush1.msra.mxu0 0.0
    %1737 = vmatprep.subr.mxu0 0.0
    %1738 = vmatpush1.msra.mxu0 0.0
    %1739 = vmatprep.subr.mxu0 0.0
    %1740 = vmatpush1.msra.mxu0 0.0
    %1741 = vmatprep.subr.mxu0 0.0
    %1742 = vmatpush1.msra.mxu0 0.0
    %1743 = vmatprep.subr.mxu0 0.0
    %1744 = vmatpush1.msra.mxu0 0.0
    %1745 = vmatprep.subr.mxu0 0.0
    %1746 = vmatpush1.msra.mxu0 0.0
    %1747 = vmatprep.subr.mxu0 0.0
    %1748 = vmatpush1.msra.mxu0 0.0
    %1749 = vmatprep.subr.mxu0 0.0
    %1750 = vmatpush1.msra.mxu0 0.0
    %1751 = vmatprep.subr.mxu0 0.0
    %1752 = vmatpush1.msra.mxu0 0.0
    %1753 = vmatprep.subr.mxu0 0.0
    %1754 = vmatpush1.msra.mxu0 0.0
    %1755 = vmatprep.subr.mxu0 0.0
    %1756 = vmatpush1.msra.mxu0 0.0
    %1757 = vmatprep.subr.mxu0 0.0
    %1758 = vmatpush1.msra.mxu0 0.0
    %1759 = vmatprep.subr.mxu0 0.0
    %1760 = vmatpush1.msra.mxu0 0.0
    %1761 = vmatprep.subr.mxu0 0.0
    %1762 = vmatpush1.msra.mxu0 0.0
    %1763 = vmatprep.subr.mxu0 0.0
    %1764 = vmatpush1.msra.mxu0 0.0
    %1765 = vmatprep.subr.mxu0 0.0
    %1766 = vmatpush1.msra.mxu0 0.0
    %1767 = vmatprep.subr.mxu0 0.0
    %1768 = vmatpush1.msra.mxu0 0.0
    %1769 = vmatprep.subr.mxu0 0.0
    %1770 = vmatpush1.msra.mxu0 0.0
    %1771 = vmatprep.mubr.f32.mxu0 0.0
    %1772 = vmatmul.mubr.f32.gmra.mrb[0].mxu0 %v1696
    %v1773 = vpop.f32.mrb[0].mxu0
    %v1774 = vadd.f32 0.0, %v1773
    %v1775 = vpop.f32.mrb[0].mxu0
    %v1776 = vadd.f32 0.0, %v1775
    %1777 = vmatprep.mubr.f32.mxu0 0.0
    %1778 = vmatmul.mubr.f32.gmra.mrb[0].mxu0 %v1699
    %v1779 = vpop.f32.mrb[0].mxu0
    %v1780 = vadd.f32 0.0, %v1779
    %v1781 = vpop.f32.mrb[0].mxu0
    %v1782 = vadd.f32 0.0, %v1781
    %1783 = vmatprep.mubr.f32.mxu0 0.0
    %1784 = vmatmul.mubr.f32.gmra.mrb[0].mxu0 %v1702
    %v1785 = vpop.f32.mrb[0].mxu0
    %v1786 = vadd.f32 0.0, %v1785
    %v1787 = vpop.f32.mrb[0].mxu0
    %v1788 = vadd.f32 0.0, %v1787
    %1789 = vmatprep.mubr.f32.mxu0 0.0
    %1790 = vmatmul.mubr.f32.gmra.mrb[0].mxu0 %v1705
    %v1791 = vpop.f32.mrb[0].mxu0
    %v1792 = vadd.f32 0.0, %v1791
    %v1793 = vpop.f32.mrb[0].mxu0
    %v1794 = vadd.f32 0.0, %v1793
    %1795 = vdwg.mxu0
    %v1796 = vadd.f32 %v1661, %v1774
    %v1797 = vadd.f32 %v1663, %v1776
    %v1798 = vadd.f32 %v1667, %v1780
    %v1799 = vadd.f32 %v1669, %v1782
    %v1800 = vadd.f32 %v1673, %v1786
    %v1801 = vadd.f32 %v1675, %v1788
    %v1802 = vadd.f32 %v1679, %v1792
    %v1803 = vadd.f32 %v1681, %v1794
    %v1804 = vld [vmem:[%s1456 + $0x3] sm:$0xff]
    %v1805 = vld [vmem:[%s1456 + $0xb] sm:$0xff]
    %v1806 = vld [vmem:[%s1456 + $0x13] sm:$0xff]
    %v1807 = vld [vmem:[%s1456 + $0x1b] sm:$0xf]
    %v1808 = vld [vmem:[%s402] sm:$0xff]
    %v1809 = vld [vmem:[%s402 + $0x8] sm:$0xff]
    %v1810 = vld [vmem:[%s402 + $0x10] sm:$0xff]
    %v1811 = vld [vmem:[%s402 + $0x18] sm:$0xff]
    %v1812 = vld [vmem:[%s402 + $0x20] sm:$0xff]
    %v1813 = vld [vmem:[%s402 + $0x28] sm:$0xff]
    %v1814 = vld [vmem:[%s402 + $0x30] sm:$0xff]
    %v1815 = vld [vmem:[%s402 + $0x38] sm:$0xff]
    %v1817 = vsel %vm73, %v1804, 0
    %v1820 = vsel %vm73, %v1805, 0
    %v1823 = vsel %vm73, %v1806, 0
    %v1826 = vsel %vm73, %v1807, 0
    %1828 = vmatprep.subr.mxu0 %v1809
    %1829 = vmatpush1.msra.mxu0 %v1808
    %1830 = vmatprep.subr.mxu0 %v1811
    %1831 = vmatpush1.msra.mxu0 %v1810
    %1832 = vmatprep.subr.mxu0 %v1813
    %1833 = vmatpush1.msra.mxu0 %v1812
    %1834 = vmatprep.subr.mxu0 %v1815
    %1835 = vmatpush1.msra.mxu0 %v1814
    %1836 = vmatprep.subr.mxu0 0.0
    %1837 = vmatpush1.msra.mxu0 0.0
    %1838 = vmatprep.subr.mxu0 0.0
    %1839 = vmatpush1.msra.mxu0 0.0
    %1840 = vmatprep.subr.mxu0 0.0
    %1841 = vmatpush1.msra.mxu0 0.0
    %1842 = vmatprep.subr.mxu0 0.0
    %1843 = vmatpush1.msra.mxu0 0.0
    %1844 = vmatprep.subr.mxu0 0.0
    %1845 = vmatpush1.msra.mxu0 0.0
    %1846 = vmatprep.subr.mxu0 0.0
    %1847 = vmatpush1.msra.mxu0 0.0
    %1848 = vmatprep.subr.mxu0 0.0
    %1849 = vmatpush1.msra.mxu0 0.0
    %1850 = vmatprep.subr.mxu0 0.0
    %1851 = vmatpush1.msra.mxu0 0.0
    %1852 = vmatprep.subr.mxu0 0.0
    %1853 = vmatpush1.msra.mxu0 0.0
    %1854 = vmatprep.subr.mxu0 0.0
    %1855 = vmatpush1.msra.mxu0 0.0
    %1856 = vmatprep.subr.mxu0 0.0
    %1857 = vmatpush1.msra.mxu0 0.0
    %1858 = vmatprep.subr.mxu0 0.0
    %1859 = vmatpush1.msra.mxu0 0.0
    %1860 = vmatprep.subr.mxu0 0.0
    %1861 = vmatpush1.msra.mxu0 0.0
    %1862 = vmatprep.subr.mxu0 0.0
    %1863 = vmatpush1.msra.mxu0 0.0
    %1864 = vmatprep.subr.mxu0 0.0
    %1865 = vmatpush1.msra.mxu0 0.0
    %1866 = vmatprep.subr.mxu0 0.0
    %1867 = vmatpush1.msra.mxu0 0.0
    %1868 = vmatprep.subr.mxu0 0.0
    %1869 = vmatpush1.msra.mxu0 0.0
    %1870 = vmatprep.subr.mxu0 0.0
    %1871 = vmatpush1.msra.mxu0 0.0
    %1872 = vmatprep.subr.mxu0 0.0
    %1873 = vmatpush1.msra.mxu0 0.0
    %1874 = vmatprep.subr.mxu0 0.0
    %1875 = vmatpush1.msra.mxu0 0.0
    %1876 = vmatprep.subr.mxu0 0.0
    %1877 = vmatpush1.msra.mxu0 0.0
    %1878 = vmatprep.subr.mxu0 0.0
    %1879 = vmatpush1.msra.mxu0 0.0
    %1880 = vmatprep.subr.mxu0 0.0
    %1881 = vmatpush1.msra.mxu0 0.0
    %1882 = vmatprep.subr.mxu0 0.0
    %1883 = vmatpush1.msra.mxu0 0.0
    %1884 = vmatprep.subr.mxu0 0.0
    %1885 = vmatpush1.msra.mxu0 0.0
    %1886 = vmatprep.subr.mxu0 0.0
    %1887 = vmatpush1.msra.mxu0 0.0
    %1888 = vmatprep.subr.mxu0 0.0
    %1889 = vmatpush1.msra.mxu0 0.0
    %1890 = vmatprep.subr.mxu0 0.0
    %1891 = vmatpush1.msra.mxu0 0.0
    %1892 = vmatprep.mubr.f32.mxu0 0.0
    %1893 = vmatmul.mubr.f32.gmra.mrb[0].mxu0 %v1817
    %v1894 = vpop.f32.mrb[0].mxu0
    %v1895 = vadd.f32 0.0, %v1894
    %v1896 = vpop.f32.mrb[0].mxu0
    %v1897 = vadd.f32 0.0, %v1896
    %1898 = vmatprep.mubr.f32.mxu0 0.0
    %1899 = vmatmul.mubr.f32.gmra.mrb[0].mxu0 %v1820
    %v1900 = vpop.f32.mrb[0].mxu0
    %v1901 = vadd.f32 0.0, %v1900
    %v1902 = vpop.f32.mrb[0].mxu0
    %v1903 = vadd.f32 0.0, %v1902
    %1904 = vmatprep.mubr.f32.mxu0 0.0
    %1905 = vmatmul.mubr.f32.gmra.mrb[0].mxu0 %v1823
    %v1906 = vpop.f32.mrb[0].mxu0
    %v1907 = vadd.f32 0.0, %v1906
    %v1908 = vpop.f32.mrb[0].mxu0
    %v1909 = vadd.f32 0.0, %v1908
    %1910 = vmatprep.mubr.f32.mxu0 0.0
    %1911 = vmatmul.mubr.f32.gmra.mrb[0].mxu0 %v1826
    %v1912 = vpop.f32.mrb[0].mxu0
    %v1913 = vadd.f32 0.0, %v1912
    %v1914 = vpop.f32.mrb[0].mxu0
    %v1915 = vadd.f32 0.0, %v1914
    %1916 = vdwg.mxu0
    %v1917 = vadd.f32 %v1796, %v1895
    %v1918 = vadd.f32 %v1797, %v1897
    %v1919 = vadd.f32 %v1798, %v1901
    %v1920 = vadd.f32 %v1799, %v1903
    %v1921 = vadd.f32 %v1800, %v1907
    %v1922 = vadd.f32 %v1801, %v1909
    %v1923 = vadd.f32 %v1802, %v1913
    %v1924 = vadd.f32 %v1803, %v1915
    %v1925 = vld [vmem:[%s1456 + $0x4] sm:$0xff]
    %v1926 = vld [vmem:[%s1456 + $0xc] sm:$0xff]
    %v1927 = vld [vmem:[%s1456 + $0x14] sm:$0xff]
    %v1928 = vld [vmem:[%s1456 + $0x1c] sm:$0xf]
    %v1929 = vld [vmem:[%s524] sm:$0xff]
    %v1930 = vld [vmem:[%s524 + $0x8] sm:$0xff]
    %v1931 = vld [vmem:[%s524 + $0x10] sm:$0xff]
    %v1932 = vld [vmem:[%s524 + $0x18] sm:$0xff]
    %v1933 = vld [vmem:[%s524 + $0x20] sm:$0xff]
    %v1934 = vld [vmem:[%s524 + $0x28] sm:$0xff]
    %v1935 = vld [vmem:[%s524 + $0x30] sm:$0xff]
    %v1936 = vld [vmem:[%s524 + $0x38] sm:$0xff]
    %v1938 = vsel %vm73, %v1925, 0
    %v1941 = vsel %vm73, %v1926, 0
    %v1944 = vsel %vm73, %v1927, 0
    %v1947 = vsel %vm73, %v1928, 0
    %1949 = vmatprep.subr.mxu0 %v1930
    %1950 = vmatpush1.msra.mxu0 %v1929
    %1951 = vmatprep.subr.mxu0 %v1932
    %1952 = vmatpush1.msra.mxu0 %v1931
    %1953 = vmatprep.subr.mxu0 %v1934
    %1954 = vmatpush1.msra.mxu0 %v1933
    %1955 = vmatprep.subr.mxu0 %v1936
    %1956 = vmatpush1.msra.mxu0 %v1935
    %1957 = vmatprep.subr.mxu0 0.0
    %1958 = vmatpush1.msra.mxu0 0.0
    %1959 = vmatprep.subr.mxu0 0.0
    %1960 = vmatpush1.msra.mxu0 0.0
    %1961 = vmatprep.subr.mxu0 0.0
    %1962 = vmatpush1.msra.mxu0 0.0
    %1963 = vmatprep.subr.mxu0 0.0
    %1964 = vmatpush1.msra.mxu0 0.0
    %1965 = vmatprep.subr.mxu0 0.0
    %1966 = vmatpush1.msra.mxu0 0.0
    %1967 = vmatprep.subr.mxu0 0.0
    %1968 = vmatpush1.msra.mxu0 0.0
    %1969 = vmatprep.subr.mxu0 0.0
    %1970 = vmatpush1.msra.mxu0 0.0
    %1971 = vmatprep.subr.mxu0 0.0
    %1972 = vmatpush1.msra.mxu0 0.0
    %1973 = vmatprep.subr.mxu0 0.0
    %1974 = vmatpush1.msra.mxu0 0.0
    %1975 = vmatprep.subr.mxu0 0.0
    %1976 = vmatpush1.msra.mxu0 0.0
    %1977 = vmatprep.subr.mxu0 0.0
    %1978 = vmatpush1.msra.mxu0 0.0
    %1979 = vmatprep.subr.mxu0 0.0
    %1980 = vmatpush1.msra.mxu0 0.0
    %1981 = vmatprep.subr.mxu0 0.0
    %1982 = vmatpush1.msra.mxu0 0.0
    %1983 = vmatprep.subr.mxu0 0.0
    %1984 = vmatpush1.msra.mxu0 0.0
    %1985 = vmatprep.subr.mxu0 0.0
    %1986 = vmatpush1.msra.mxu0 0.0
    %1987 = vmatprep.subr.mxu0 0.0
    %1988 = vmatpush1.msra.mxu0 0.0
    %1989 = vmatprep.subr.mxu0 0.0
    %1990 = vmatpush1.msra.mxu0 0.0
    %1991 = vmatprep.subr.mxu0 0.0
    %1992 = vmatpush1.msra.mxu0 0.0
    %1993 = vmatprep.subr.mxu0 0.0
    %1994 = vmatpush1.msra.mxu0 0.0
    %1995 = vmatprep.subr.mxu0 0.0
    %1996 = vmatpush1.msra.mxu0 0.0
    %1997 = vmatprep.subr.mxu0 0.0
    %1998 = vmatpush1.msra.mxu0 0.0
    %1999 = vmatprep.subr.mxu0 0.0
    %2000 = vmatpush1.msra.mxu0 0.0
    %2001 = vmatprep.subr.mxu0 0.0
    %2002 = vmatpush1.msra.mxu0 0.0
    %2003 = vmatprep.subr.mxu0 0.0
    %2004 = vmatpush1.msra.mxu0 0.0
    %2005 = vmatprep.subr.mxu0 0.0
    %2006 = vmatpush1.msra.mxu0 0.0
    %2007 = vmatprep.subr.mxu0 0.0
    %2008 = vmatpush1.msra.mxu0 0.0
    %2009 = vmatprep.subr.mxu0 0.0
    %2010 = vmatpush1.msra.mxu0 0.0
    %2011 = vmatprep.subr.mxu0 0.0
    %2012 = vmatpush1.msra.mxu0 0.0
    %2013 = vmatprep.mubr.f32.mxu0 0.0
    %2014 = vmatmul.mubr.f32.gmra.mrb[0].mxu0 %v1938
    %v2015 = vpop.f32.mrb[0].mxu0
    %v2016 = vadd.f32 0.0, %v2015
    %v2017 = vpop.f32.mrb[0].mxu0
    %v2018 = vadd.f32 0.0, %v2017
    %2019 = vmatprep.mubr.f32.mxu0 0.0
    %2020 = vmatmul.mubr.f32.gmra.mrb[0].mxu0 %v1941
    %v2021 = vpop.f32.mrb[0].mxu0
    %v2022 = vadd.f32 0.0, %v2021
    %v2023 = vpop.f32.mrb[0].mxu0
    %v2024 = vadd.f32 0.0, %v2023
    %2025 = vmatprep.mubr.f32.mxu0 0.0
    %2026 = vmatmul.mubr.f32.gmra.mrb[0].mxu0 %v1944
    %v2027 = vpop.f32.mrb[0].mxu0
    %v2028 = vadd.f32 0.0, %v2027
    %v2029 = vpop.f32.mrb[0].mxu0
    %v2030 = vadd.f32 0.0, %v2029
    %2031 = vmatprep.mubr.f32.mxu0 0.0
    %2032 = vmatmul.mubr.f32.gmra.mrb[0].mxu0 %v1947
    %v2033 = vpop.f32.mrb[0].mxu0
    %v2034 = vadd.f32 0.0, %v2033
    %v2035 = vpop.f32.mrb[0].mxu0
    %v2036 = vadd.f32 0.0, %v2035
    %2037 = vdwg.mxu0
    %v2038 = vadd.f32 %v1917, %v2016
    %v2039 = vadd.f32 %v1918, %v2018
    %v2040 = vadd.f32 %v1919, %v2022
    %v2041 = vadd.f32 %v1920, %v2024
    %v2042 = vadd.f32 %v1921, %v2028
    %v2043 = vadd.f32 %v1922, %v2030
    %v2044 = vadd.f32 %v1923, %v2034
    %v2045 = vadd.f32 %v1924, %v2036
    %v2046 = vld [vmem:[%s2] sm:$0x3]
    %v2048 = vlaneseq
    %v2049 = vshrl.u32 %v2048, 7
    %v2050 = vsub.s32 0, %v2049
    %v2051 = vrot.slane %v2046, %v2050
    %v2052 = vlaneseq
    %v2053 = vshrl.u32 %v2052, 7
    %v2054 = vsub.s32 1, %v2053
    %v2055 = vrot.slane %v2046, %v2054
    %v2058 = vadd.f32 %v2038, %v2051
    %v2059 = vadd.f32 %v2039, %v2055
    %v2060 = vadd.f32 %v2040, %v2051
    %v2061 = vadd.f32 %v2041, %v2055
    %v2062 = vadd.f32 %v2042, %v2051
    %v2063 = vadd.f32 %v2043, %v2055
    %v2064 = vadd.f32 %v2044, %v2051
    %v2065 = vadd.f32 %v2045, %v2055
    %v2066 = vtanh.pop %v2058
    %v2067 = vtanh.pop %v2059
    %v2068 = vtanh.pop %v2060
    %v2069 = vtanh.pop %v2061
    %v2070 = vtanh.pop %v2062
    %v2071 = vtanh.pop %v2063
    %v2072 = vtanh.pop %v2064
    %v2073 = vtanh.pop %v2065
    %v2074 = vld [vmem:[%s5] sm:$0xff]
    %v2075 = vld [vmem:[%s5 + $0x8] sm:$0x3f]
    %v2077 = vsel %vm672, %v2074, 0
    %v2080 = vsel %vm672, %v2075, 0
    %v2083 = vsel %vm679, %v2072, 0
    %v2086 = vsel %vm679, %v2073, 0
    %2088 = vmatprep.subr.mxu0 %v2067
    %2089 = vmatpush1.msra.mxu0 %v2066
    %2090 = vmatprep.subr.mxu0 %v2069
    %2091 = vmatpush1.msra.mxu0 %v2068
    %2092 = vmatprep.subr.mxu0 %v2071
    %2093 = vmatpush1.msra.mxu0 %v2070
    %2094 = vmatprep.subr.mxu0 %v2086
    %2095 = vmatpush1.msra.mxu0 %v2083
    %2096 = vmatprep.subr.mxu0 0.0
    %2097 = vmatpush1.msra.mxu0 0.0
    %2098 = vmatprep.subr.mxu0 0.0
    %2099 = vmatpush1.msra.mxu0 0.0
    %2100 = vmatprep.subr.mxu0 0.0
    %2101 = vmatpush1.msra.mxu0 0.0
    %2102 = vmatprep.subr.mxu0 0.0
    %2103 = vmatpush1.msra.mxu0 0.0
    %2104 = vmatprep.subr.mxu0 0.0
    %2105 = vmatpush1.msra.mxu0 0.0
    %2106 = vmatprep.subr.mxu0 0.0
    %2107 = vmatpush1.msra.mxu0 0.0
    %2108 = vmatprep.subr.mxu0 0.0
    %2109 = vmatpush1.msra.mxu0 0.0
    %2110 = vmatprep.subr.mxu0 0.0
    %2111 = vmatpush1.msra.mxu0 0.0
    %2112 = vmatprep.subr.mxu0 0.0
    %2113 = vmatpush1.msra.mxu0 0.0
    %2114 = vmatprep.subr.mxu0 0.0
    %2115 = vmatpush1.msra.mxu0 0.0
    %2116 = vmatprep.subr.mxu0 0.0
    %2117 = vmatpush1.msra.mxu0 0.0
    %2118 = vmatprep.subr.mxu0 0.0
    %2119 = vmatpush1.msra.mxu0 0.0
    %2120 = vmatprep.subr.mxu0 0.0
    %2121 = vmatpush1.msra.mxu0 0.0
    %2122 = vmatprep.subr.mxu0 0.0
    %2123 = vmatpush1.msra.mxu0 0.0
    %2124 = vmatprep.subr.mxu0 0.0
    %2125 = vmatpush1.msra.mxu0 0.0
    %2126 = vmatprep.subr.mxu0 0.0
    %2127 = vmatpush1.msra.mxu0 0.0
    %2128 = vmatprep.subr.mxu0 0.0
    %2129 = vmatpush1.msra.mxu0 0.0
    %2130 = vmatprep.subr.mxu0 0.0
    %2131 = vmatpush1.msra.mxu0 0.0
    %2132 = vmatprep.subr.mxu0 0.0
    %2133 = vmatpush1.msra.mxu0 0.0
    %2134 = vmatprep.subr.mxu0 0.0
    %2135 = vmatpush1.msra.mxu0 0.0
    %2136 = vmatprep.subr.mxu0 0.0
    %2137 = vmatpush1.msra.mxu0 0.0
    %2138 = vmatprep.subr.mxu0 0.0
    %2139 = vmatpush1.msra.mxu0 0.0
    %2140 = vmatprep.subr.mxu0 0.0
    %2141 = vmatpush1.msra.mxu0 0.0
    %2142 = vmatprep.subr.mxu0 0.0
    %2143 = vmatpush1.msra.mxu0 0.0
    %2144 = vmatprep.subr.mxu0 0.0
    %2145 = vmatpush1.msra.mxu0 0.0
    %2146 = vmatprep.subr.mxu0 0.0
    %2147 = vmatpush1.msra.mxu0 0.0
    %2148 = vmatprep.subr.mxu0 0.0
    %2149 = vmatpush1.msra.mxu0 0.0
    %2150 = vmatprep.subr.mxu0 0.0
    %2151 = vmatpush1.msra.mxu0 0.0
    %2152 = vmatprep.mubr.f32.mxu0 0.0
    %2153 = vmatmul.mubr.f32.gmra.mrb[0].mxu0 %v2077
    %v2154 = vpop.f32.mrb[0].mxu0
    %v2155 = vadd.f32 0.0, %v2154
    %v2156 = vpop.f32.mrb[0].mxu0
    %v2157 = vadd.f32 0.0, %v2156
    %2158 = vmatprep.mubr.f32.mxu0 0.0
    %2159 = vmatmul.mubr.f32.gmra.mrb[0].mxu0 %v2080
    %v2160 = vpop.f32.mrb[0].mxu0
    %v2161 = vadd.f32 0.0, %v2160
    %v2162 = vpop.f32.mrb[0].mxu0
    %v2163 = vadd.f32 0.0, %v2162
    %2164 = vdwg.mxu0
    %v2165 = vld [vmem:[%s6] sm:$0xff]
    %v2166 = vld [vmem:[%s6 + $0x8] sm:$0xff]
    %v2167 = vld [vmem:[%s6 + $0x10] sm:$0xff]
    %v2168 = vld [vmem:[%s6 + $0x18] sm:$0xff]
    %v2169 = vld [vmem:[%s6 + $0x20] sm:$0xff]
    %v2170 = vld [vmem:[%s6 + $0x28] sm:$0xff]
    %v2171 = vld [vmem:[%s6 + $0x30] sm:$0xff]
    %v2172 = vld [vmem:[%s6 + $0x38] sm:$0xff]
    %v2173 = vld [vmem:[%s6 + $0x40] sm:$0xff]
    %v2174 = vld [vmem:[%s6 + $0x48] sm:$0xff]
    %v2175 = vld [vmem:[%s6 + $0x50] sm:$0xff]
    %v2176 = vld [vmem:[%s6 + $0x58] sm:$0xff]
    %v2177 = vld [vmem:[%s6 + $0x60] sm:$0xff]
    %v2178 = vld [vmem:[%s6 + $0x68] sm:$0xff]
    %v2179 = vld [vmem:[%s6 + $0x70] sm:$0xff]
    %v2180 = vld [vmem:[%s6 + $0x78] sm:$0xff]
    %v2181 = vld [vmem:[%s6 + $0x80] sm:$0xff]
    %v2182 = vld [vmem:[%s6 + $0x88] sm:$0xff]
    %v2183 = vld [vmem:[%s6 + $0x90] sm:$0xff]
    %v2184 = vld [vmem:[%s6 + $0x98] sm:$0xff]
    %v2185 = vld [vmem:[%s6 + $0xa0] sm:$0xff]
    %v2187 = vsel %vm784, %v2157, 0
    %v2190 = vsel %vm784, %v2163, 0
    %2192 = vmatprep.subr.mxu0 0.0
    %2193 = vmatpush1.msra.mxu0 %v2165
    %2194 = vmatprep.subr.mxu0 0.0
    %2195 = vmatpush1.msra.mxu0 %v2166
    %2196 = vmatprep.subr.mxu0 0.0
    %2197 = vmatpush1.msra.mxu0 %v2167
    %2198 = vmatprep.subr.mxu0 0.0
    %2199 = vmatpush1.msra.mxu0 %v2168
    %2200 = vmatprep.subr.mxu0 0.0
    %2201 = vmatpush1.msra.mxu0 %v2169
    %2202 = vmatprep.subr.mxu0 0.0
    %2203 = vmatpush1.msra.mxu0 %v2170
    %2204 = vmatprep.subr.mxu0 0.0
    %2205 = vmatpush1.msra.mxu0 %v2171
    %2206 = vmatprep.subr.mxu0 0.0
    %2207 = vmatpush1.msra.mxu0 %v2172
    %2208 = vmatprep.subr.mxu0 0.0
    %2209 = vmatpush1.msra.mxu0 %v2173
    %2210 = vmatprep.subr.mxu0 0.0
    %2211 = vmatpush1.msra.mxu0 %v2174
    %2212 = vmatprep.subr.mxu0 0.0
    %2213 = vmatpush1.msra.mxu0 %v2175
    %2214 = vmatprep.subr.mxu0 0.0
    %2215 = vmatpush1.msra.mxu0 %v2176
    %2216 = vmatprep.subr.mxu0 0.0
    %2217 = vmatpush1.msra.mxu0 %v2177
    %2218 = vmatprep.subr.mxu0 0.0
    %2219 = vmatpush1.msra.mxu0 %v2178
    %2220 = vmatprep.subr.mxu0 0.0
    %2221 = vmatpush1.msra.mxu0 %v2179
    %2222 = vmatprep.subr.mxu0 0.0
    %2223 = vmatpush1.msra.mxu0 %v2180
    %2224 = vmatprep.subr.mxu0 0.0
    %2225 = vmatpush1.msra.mxu0 %v2181
    %2226 = vmatprep.subr.mxu0 0.0
    %2227 = vmatpush1.msra.mxu0 %v2182
    %2228 = vmatprep.subr.mxu0 0.0
    %2229 = vmatpush1.msra.mxu0 %v2183
    %2230 = vmatprep.subr.mxu0 0.0
    %2231 = vmatpush1.msra.mxu0 %v2184
    %2232 = vmatprep.subr.mxu0 0.0
    %2233 = vmatpush1.msra.mxu0 %v2185
    %2234 = vmatprep.subr.mxu0 0.0
    %2235 = vmatpush1.msra.mxu0 0.0
    %2236 = vmatprep.subr.mxu0 0.0
    %2237 = vmatpush1.msra.mxu0 0.0
    %2238 = vmatprep.subr.mxu0 0.0
    %2239 = vmatpush1.msra.mxu0 0.0
    %2240 = vmatprep.subr.mxu0 0.0
    %2241 = vmatpush1.msra.mxu0 0.0
    %2242 = vmatprep.subr.mxu0 0.0
    %2243 = vmatpush1.msra.mxu0 0.0
    %2244 = vmatprep.subr.mxu0 0.0
    %2245 = vmatpush1.msra.mxu0 0.0
    %2246 = vmatprep.subr.mxu0 0.0
    %2247 = vmatpush1.msra.mxu0 0.0
    %2248 = vmatprep.subr.mxu0 0.0
    %2249 = vmatpush1.msra.mxu0 0.0
    %2250 = vmatprep.subr.mxu0 0.0
    %2251 = vmatpush1.msra.mxu0 0.0
    %2252 = vmatprep.subr.mxu0 0.0
    %2253 = vmatpush1.msra.mxu0 0.0
    %2254 = vmatprep.subr.mxu0 0.0
    %2255 = vmatpush1.msra.mxu0 0.0
    %2256 = vmatprep.mubr.f32.mxu0 %v2187
    %2257 = vmatmul.mubr.f32.gmra.mrb[0].mxu0 %v2155
    %v2258 = vpop.f32.mrb[0].mxu0
    %v2259 = vadd.f32 0.0, %v2258
    %v2260 = vpop.f32.mrb[0].mxu0
    %2261 = vmatprep.mubr.f32.mxu0 %v2190
    %2262 = vmatmul.mubr.f32.gmra.mrb[0].mxu0 %v2161
    %v2263 = vpop.f32.mrb[0].mxu0
    %v2264 = vadd.f32 0.0, %v2263
    %v2265 = vpop.f32.mrb[0].mxu0
    %2266 = vdwg.mxu0
    %2267 = vst.msk [vmem:[#allocation2] sm:$0xff] %vm866, %v2259
    %2268 = vst.msk [vmem:[#allocation2 + $0x8] sm:$0x3f] %vm868, %v2264
    %v2269 = vld [vmem:[#allocation2] sm:$0xff]
    %v2270 = vld [vmem:[#allocation2 + $0x8] sm:$0x3]
    %v2271 = vld [vmem:[%s3] sm:$0xff]
    %v2272 = vld [vmem:[%s3 + $0x8] sm:$0xff]
    %v2273 = vld [vmem:[%s3 + $0x10] sm:$0xff]
    %v2274 = vld [vmem:[%s3 + $0x18] sm:$0xff]
    %v2275 = vld [vmem:[%s3 + $0x20] sm:$0xff]
    %v2276 = vld [vmem:[%s3 + $0x28] sm:$0xff]
    %v2277 = vld [vmem:[%s3 + $0x30] sm:$0xff]
    %v2278 = vld [vmem:[%s3 + $0x38] sm:$0xff]
    %v2279 = vld [vmem:[%s3 + $0x40] sm:$0xff]
    %v2280 = vld [vmem:[%s3 + $0x48] sm:$0xff]
    %v2281 = vld [vmem:[%s3 + $0x50] sm:$0xff]
    %v2282 = vld [vmem:[%s3 + $0x58] sm:$0xff]
    %v2283 = vld [vmem:[%s3 + $0x60] sm:$0xff]
    %v2284 = vld [vmem:[%s3 + $0x68] sm:$0xff]
    %v2285 = vld [vmem:[%s3 + $0x70] sm:$0xff]
    %v2286 = vld [vmem:[%s3 + $0x78] sm:$0xff]
    %v2287 = vld [vmem:[%s3 + $0x80] sm:$0xff]
    %v2288 = vld [vmem:[%s3 + $0x88] sm:$0xff]
    %v2289 = vld [vmem:[%s3 + $0x90] sm:$0xff]
    %v2290 = vld [vmem:[%s3 + $0x98] sm:$0xff]
    %v2291 = vld [vmem:[%s3 + $0xa0] sm:$0xf]
    %v2292 = vld [vmem:[%s3 + $0xa8] sm:$0xf]
    %v2293 = vld [vmem:[#allocation2 + $0x1] sm:$0xff]
    %v2294 = vld [vmem:[#allocation2 + $0x9] sm:$0x3]
    %v2295 = vld [vmem:[%s896] sm:$0xff]
    %v2296 = vld [vmem:[%s896 + $0x8] sm:$0xff]
    %v2297 = vld [vmem:[%s896 + $0x10] sm:$0xff]
    %v2298 = vld [vmem:[%s896 + $0x18] sm:$0xff]
    %v2299 = vld [vmem:[%s896 + $0x20] sm:$0xff]
    %v2300 = vld [vmem:[%s896 + $0x28] sm:$0xff]
    %v2301 = vld [vmem:[%s896 + $0x30] sm:$0xff]
    %v2302 = vld [vmem:[%s896 + $0x38] sm:$0xff]
    %v2303 = vld [vmem:[%s896 + $0x40] sm:$0xff]
    %v2304 = vld [vmem:[%s896 + $0x48] sm:$0xff]
    %v2305 = vld [vmem:[%s896 + $0x50] sm:$0xff]
    %v2306 = vld [vmem:[%s896 + $0x58] sm:$0xff]
    %v2307 = vld [vmem:[%s896 + $0x60] sm:$0xff]
    %v2308 = vld [vmem:[%s896 + $0x68] sm:$0xff]
    %v2309 = vld [vmem:[%s896 + $0x70] sm:$0xff]
    %v2310 = vld [vmem:[%s896 + $0x78] sm:$0xff]
    %v2311 = vld [vmem:[%s896 + $0x80] sm:$0xff]
    %v2312 = vld [vmem:[%s896 + $0x88] sm:$0xff]
    %v2313 = vld [vmem:[%s896 + $0x90] sm:$0xff]
    %v2314 = vld [vmem:[%s896 + $0x98] sm:$0xff]
    %v2315 = vld [vmem:[%s896 + $0xa0] sm:$0xf]
    %v2316 = vld [vmem:[%s896 + $0xa8] sm:$0xf]
    %v2318 = vsel %vm866, %v2293, 0
    %v2321 = vsel %vm866, %v2294, 0
    %v2324 = vsel %vm679, %v2315, 0
    %v2327 = vsel %vm679, %v2316, 0
    %2329 = vmatprep.subr.mxu0 %v2296
    %2330 = vmatpush1.msra.mxu0 %v2295
    %2331 = vmatprep.subr.mxu0 %v2298
    %2332 = vmatpush1.msra.mxu0 %v2297
    %2333 = vmatprep.subr.mxu0 %v2300
    %2334 = vmatpush1.msra.mxu0 %v2299
    %2335 = vmatprep.subr.mxu0 %v2302
    %2336 = vmatpush1.msra.mxu0 %v2301
    %2337 = vmatprep.subr.mxu0 %v2304
    %2338 = vmatpush1.msra.mxu0 %v2303
    %2339 = vmatprep.subr.mxu0 %v2306
    %2340 = vmatpush1.msra.mxu0 %v2305
    %2341 = vmatprep.subr.mxu0 %v2308
    %2342 = vmatpush1.msra.mxu0 %v2307
    %2343 = vmatprep.subr.mxu0 %v2310
    %2344 = vmatpush1.msra.mxu0 %v2309
    %2345 = vmatprep.subr.mxu0 %v2312
    %2346 = vmatpush1.msra.mxu0 %v2311
    %2347 = vmatprep.subr.mxu0 %v2314
    %2348 = vmatpush1.msra.mxu0 %v2313
    %2349 = vmatprep.subr.mxu0 %v2327
    %2350 = vmatpush1.msra.mxu0 %v2324
    %2351 = vmatprep.subr.mxu0 0.0
    %2352 = vmatpush1.msra.mxu0 0.0
    %2353 = vmatprep.subr.mxu0 0.0
    %2354 = vmatpush1.msra.mxu0 0.0
    %2355 = vmatprep.subr.mxu0 0.0
    %2356 = vmatpush1.msra.mxu0 0.0
    %2357 = vmatprep.subr.mxu0 0.0
    %2358 = vmatpush1.msra.mxu0 0.0
    %2359 = vmatprep.subr.mxu0 0.0
    %2360 = vmatpush1.msra.mxu0 0.0
    %2361 = vmatprep.subr.mxu0 0.0
    %2362 = vmatpush1.msra.mxu0 0.0
    %2363 = vmatprep.subr.mxu0 0.0
    %2364 = vmatpush1.msra.mxu0 0.0
    %2365 = vmatprep.subr.mxu0 0.0
    %2366 = vmatpush1.msra.mxu0 0.0
    %2367 = vmatprep.subr.mxu0 0.0
    %2368 = vmatpush1.msra.mxu0 0.0
    %2369 = vmatprep.subr.mxu0 0.0
    %2370 = vmatpush1.msra.mxu0 0.0
    %2371 = vmatprep.subr.mxu0 0.0
    %2372 = vmatpush1.msra.mxu0 0.0
    %2373 = vmatprep.subr.mxu0 0.0
    %2374 = vmatpush1.msra.mxu0 0.0
    %2375 = vmatprep.subr.mxu0 0.0
    %2376 = vmatpush1.msra.mxu0 0.0
    %2377 = vmatprep.subr.mxu0 0.0
    %2378 = vmatpush1.msra.mxu0 0.0
    %2379 = vmatprep.subr.mxu0 0.0
    %2380 = vmatpush1.msra.mxu0 0.0
    %2381 = vmatprep.subr.mxu0 0.0
    %2382 = vmatpush1.msra.mxu0 0.0
    %2383 = vmatprep.subr.mxu0 0.0
    %2384 = vmatpush1.msra.mxu0 0.0
    %2385 = vmatprep.subr.mxu0 0.0
    %2386 = vmatpush1.msra.mxu0 0.0
    %2387 = vmatprep.subr.mxu0 0.0
    %2388 = vmatpush1.msra.mxu0 0.0
    %2389 = vmatprep.subr.mxu0 0.0
    %2390 = vmatpush1.msra.mxu0 0.0
    %2391 = vmatprep.subr.mxu0 0.0
    %2392 = vmatpush1.msra.mxu0 0.0
    %2393 = vmatprep.mubr.f32.mxu0 0.0
    %2394 = vmatmul.mubr.f32.gmra.mrb[0].mxu0 %v2318
    %v2395 = vpop.f32.mrb[0].mxu0
    %v2396 = vadd.f32 0.0, %v2395
    %v2397 = vpop.f32.mrb[0].mxu0
    %v2398 = vadd.f32 0.0, %v2397
    %2399 = vmatprep.mubr.f32.mxu0 0.0
    %2400 = vmatmul.mubr.f32.gmra.mrb[0].mxu0 %v2321
    %v2401 = vpop.f32.mrb[0].mxu0
    %v2402 = vadd.f32 0.0, %v2401
    %v2403 = vpop.f32.mrb[0].mxu0
    %v2404 = vadd.f32 0.0, %v2403
    %2405 = vdwg.mxu0
    %v2407 = vsel %vm866, %v2269, 0
    %v2410 = vsel %vm866, %v2270, 0
    %v2413 = vsel %vm679, %v2291, 0
    %v2416 = vsel %vm679, %v2292, 0
    %2418 = vmatprep.subr.mxu0 %v2272
    %2419 = vmatpush1.msra.mxu0 %v2271
    %2420 = vmatprep.subr.mxu0 %v2274
    %2421 = vmatpush1.msra.mxu0 %v2273
    %2422 = vmatprep.subr.mxu0 %v2276
    %2423 = vmatpush1.msra.mxu0 %v2275
    %2424 = vmatprep.subr.mxu0 %v2278
    %2425 = vmatpush1.msra.mxu0 %v2277
    %2426 = vmatprep.subr.mxu0 %v2280
    %2427 = vmatpush1.msra.mxu0 %v2279
    %2428 = vmatprep.subr.mxu0 %v2282
    %2429 = vmatpush1.msra.mxu0 %v2281
    %2430 = vmatprep.subr.mxu0 %v2284
    %2431 = vmatpush1.msra.mxu0 %v2283
    %2432 = vmatprep.subr.mxu0 %v2286
    %2433 = vmatpush1.msra.mxu0 %v2285
    %2434 = vmatprep.subr.mxu0 %v2288
    %2435 = vmatpush1.msra.mxu0 %v2287
    %2436 = vmatprep.subr.mxu0 %v2290
    %2437 = vmatpush1.msra.mxu0 %v2289
    %2438 = vmatprep.subr.mxu0 %v2416
    %2439 = vmatpush1.msra.mxu0 %v2413
    %2440 = vmatprep.subr.mxu0 0.0
    %2441 = vmatpush1.msra.mxu0 0.0
    %2442 = vmatprep.subr.mxu0 0.0
    %2443 = vmatpush1.msra.mxu0 0.0
    %2444 = vmatprep.subr.mxu0 0.0
    %2445 = vmatpush1.msra.mxu0 0.0
    %2446 = vmatprep.subr.mxu0 0.0
    %2447 = vmatpush1.msra.mxu0 0.0
    %2448 = vmatprep.subr.mxu0 0.0
    %2449 = vmatpush1.msra.mxu0 0.0
    %2450 = vmatprep.subr.mxu0 0.0
    %2451 = vmatpush1.msra.mxu0 0.0
    %2452 = vmatprep.subr.mxu0 0.0
    %2453 = vmatpush1.msra.mxu0 0.0
    %2454 = vmatprep.subr.mxu0 0.0
    %2455 = vmatpush1.msra.mxu0 0.0
    %2456 = vmatprep.subr.mxu0 0.0
    %2457 = vmatpush1.msra.mxu0 0.0
    %2458 = vmatprep.subr.mxu0 0.0
    %2459 = vmatpush1.msra.mxu0 0.0
    %2460 = vmatprep.subr.mxu0 0.0
    %2461 = vmatpush1.msra.mxu0 0.0
    %2462 = vmatprep.subr.mxu0 0.0
    %2463 = vmatpush1.msra.mxu0 0.0
    %2464 = vmatprep.subr.mxu0 0.0
    %2465 = vmatpush1.msra.mxu0 0.0
    %2466 = vmatprep.subr.mxu0 0.0
    %2467 = vmatpush1.msra.mxu0 0.0
    %2468 = vmatprep.subr.mxu0 0.0
    %2469 = vmatpush1.msra.mxu0 0.0
    %2470 = vmatprep.subr.mxu0 0.0
    %2471 = vmatpush1.msra.mxu0 0.0
    %2472 = vmatprep.subr.mxu0 0.0
    %2473 = vmatpush1.msra.mxu0 0.0
    %2474 = vmatprep.subr.mxu0 0.0
    %2475 = vmatpush1.msra.mxu0 0.0
    %2476 = vmatprep.subr.mxu0 0.0
    %2477 = vmatpush1.msra.mxu0 0.0
    %2478 = vmatprep.subr.mxu0 0.0
    %2479 = vmatpush1.msra.mxu0 0.0
    %2480 = vmatprep.subr.mxu0 0.0
    %2481 = vmatpush1.msra.mxu0 0.0
    %2482 = vmatprep.mubr.f32.mxu0 0.0
    %2483 = vmatmul.mubr.f32.gmra.mrb[0].mxu0 %v2407
    %v2484 = vpop.f32.mrb[0].mxu0
    %v2485 = vadd.f32 %v2396, %v2484
    %v2486 = vpop.f32.mrb[0].mxu0
    %v2487 = vadd.f32 %v2398, %v2486
    %2488 = vmatprep.mubr.f32.mxu0 0.0
    %2489 = vmatmul.mubr.f32.gmra.mrb[0].mxu0 %v2410
    %v2490 = vpop.f32.mrb[0].mxu0
    %v2491 = vadd.f32 %v2402, %v2490
    %v2492 = vpop.f32.mrb[0].mxu0
    %v2493 = vadd.f32 %v2404, %v2492
    %2494 = vdwg.mxu0
    %v2495 = vld [vmem:[#allocation2 + $0x2] sm:$0xff]
    %v2496 = vld [vmem:[#allocation2 + $0xa] sm:$0x3]
    %v2497 = vld [vmem:[%s1099] sm:$0xff]
    %v2498 = vld [vmem:[%s1099 + $0x8] sm:$0xff]
    %v2499 = vld [vmem:[%s1099 + $0x10] sm:$0xff]
    %v2500 = vld [vmem:[%s1099 + $0x18] sm:$0xff]
    %v2501 = vld [vmem:[%s1099 + $0x20] sm:$0xff]
    %v2502 = vld [vmem:[%s1099 + $0x28] sm:$0xff]
    %v2503 = vld [vmem:[%s1099 + $0x30] sm:$0xff]
    %v2504 = vld [vmem:[%s1099 + $0x38] sm:$0xff]
    %v2505 = vld [vmem:[%s1099 + $0x40] sm:$0xff]
    %v2506 = vld [vmem:[%s1099 + $0x48] sm:$0xff]
    %v2507 = vld [vmem:[%s1099 + $0x50] sm:$0xff]
    %v2508 = vld [vmem:[%s1099 + $0x58] sm:$0xff]
    %v2509 = vld [vmem:[%s1099 + $0x60] sm:$0xff]
    %v2510 = vld [vmem:[%s1099 + $0x68] sm:$0xff]
    %v2511 = vld [vmem:[%s1099 + $0x70] sm:$0xff]
    %v2512 = vld [vmem:[%s1099 + $0x78] sm:$0xff]
    %v2513 = vld [vmem:[%s1099 + $0x80] sm:$0xff]
    %v2514 = vld [vmem:[%s1099 + $0x88] sm:$0xff]
    %v2515 = vld [vmem:[%s1099 + $0x90] sm:$0xff]
    %v2516 = vld [vmem:[%s1099 + $0x98] sm:$0xff]
    %v2517 = vld [vmem:[%s1099 + $0xa0] sm:$0xf]
    %v2518 = vld [vmem:[%s1099 + $0xa8] sm:$0xf]
    %v2520 = vsel %vm866, %v2495, 0
    %v2523 = vsel %vm866, %v2496, 0
    %v2526 = vsel %vm679, %v2517, 0
    %v2529 = vsel %vm679, %v2518, 0
    %2531 = vmatprep.subr.mxu0 %v2498
    %2532 = vmatpush1.msra.mxu0 %v2497
    %2533 = vmatprep.subr.mxu0 %v2500
    %2534 = vmatpush1.msra.mxu0 %v2499
    %2535 = vmatprep.subr.mxu0 %v2502
    %2536 = vmatpush1.msra.mxu0 %v2501
    %2537 = vmatprep.subr.mxu0 %v2504
    %2538 = vmatpush1.msra.mxu0 %v2503
    %2539 = vmatprep.subr.mxu0 %v2506
    %2540 = vmatpush1.msra.mxu0 %v2505
    %2541 = vmatprep.subr.mxu0 %v2508
    %2542 = vmatpush1.msra.mxu0 %v2507
    %2543 = vmatprep.subr.mxu0 %v2510
    %2544 = vmatpush1.msra.mxu0 %v2509
    %2545 = vmatprep.subr.mxu0 %v2512
    %2546 = vmatpush1.msra.mxu0 %v2511
    %2547 = vmatprep.subr.mxu0 %v2514
    %2548 = vmatpush1.msra.mxu0 %v2513
    %2549 = vmatprep.subr.mxu0 %v2516
    %2550 = vmatpush1.msra.mxu0 %v2515
    %2551 = vmatprep.subr.mxu0 %v2529
    %2552 = vmatpush1.msra.mxu0 %v2526
    %2553 = vmatprep.subr.mxu0 0.0
    %2554 = vmatpush1.msra.mxu0 0.0
    %2555 = vmatprep.subr.mxu0 0.0
    %2556 = vmatpush1.msra.mxu0 0.0
    %2557 = vmatprep.subr.mxu0 0.0
    %2558 = vmatpush1.msra.mxu0 0.0
    %2559 = vmatprep.subr.mxu0 0.0
    %2560 = vmatpush1.msra.mxu0 0.0
    %2561 = vmatprep.subr.mxu0 0.0
    %2562 = vmatpush1.msra.mxu0 0.0
    %2563 = vmatprep.subr.mxu0 0.0
    %2564 = vmatpush1.msra.mxu0 0.0
    %2565 = vmatprep.subr.mxu0 0.0
    %2566 = vmatpush1.msra.mxu0 0.0
    %2567 = vmatprep.subr.mxu0 0.0
    %2568 = vmatpush1.msra.mxu0 0.0
    %2569 = vmatprep.subr.mxu0 0.0
    %2570 = vmatpush1.msra.mxu0 0.0
    %2571 = vmatprep.subr.mxu0 0.0
    %2572 = vmatpush1.msra.mxu0 0.0
    %2573 = vmatprep.subr.mxu0 0.0
    %2574 = vmatpush1.msra.mxu0 0.0
    %2575 = vmatprep.subr.mxu0 0.0
    %2576 = vmatpush1.msra.mxu0 0.0
    %2577 = vmatprep.subr.mxu0 0.0
    %2578 = vmatpush1.msra.mxu0 0.0
    %2579 = vmatprep.subr.mxu0 0.0
    %2580 = vmatpush1.msra.mxu0 0.0
    %2581 = vmatprep.subr.mxu0 0.0
    %2582 = vmatpush1.msra.mxu0 0.0
    %2583 = vmatprep.subr.mxu0 0.0
    %2584 = vmatpush1.msra.mxu0 0.0
    %2585 = vmatprep.subr.mxu0 0.0
    %2586 = vmatpush1.msra.mxu0 0.0
    %2587 = vmatprep.subr.mxu0 0.0
    %2588 = vmatpush1.msra.mxu0 0.0
    %2589 = vmatprep.subr.mxu0 0.0
    %2590 = vmatpush1.msra.mxu0 0.0
    %2591 = vmatprep.subr.mxu0 0.0
    %2592 = vmatpush1.msra.mxu0 0.0
    %2593 = vmatprep.subr.mxu0 0.0
    %2594 = vmatpush1.msra.mxu0 0.0
    %2595 = vmatprep.mubr.f32.mxu0 0.0
    %2596 = vmatmul.mubr.f32.gmra.mrb[0].mxu0 %v2520
    %v2597 = vpop.f32.mrb[0].mxu0
    %v2598 = vadd.f32 0.0, %v2597
    %v2599 = vpop.f32.mrb[0].mxu0
    %v2600 = vadd.f32 0.0, %v2599
    %2601 = vmatprep.mubr.f32.mxu0 0.0
    %2602 = vmatmul.mubr.f32.gmra.mrb[0].mxu0 %v2523
    %v2603 = vpop.f32.mrb[0].mxu0
    %v2604 = vadd.f32 0.0, %v2603
    %v2605 = vpop.f32.mrb[0].mxu0
    %v2606 = vadd.f32 0.0, %v2605
    %2607 = vdwg.mxu0
    %v2608 = vadd.f32 %v2485, %v2598
    %v2609 = vadd.f32 %v2487, %v2600
    %v2610 = vadd.f32 %v2491, %v2604
    %v2611 = vadd.f32 %v2493, %v2606
    %v2612 = vld [vmem:[#allocation2 + $0x3] sm:$0xff]
    %v2613 = vld [vmem:[#allocation2 + $0xb] sm:$0x3]
    %v2614 = vld [vmem:[%s1217] sm:$0xff]
    %v2615 = vld [vmem:[%s1217 + $0x8] sm:$0xff]
    %v2616 = vld [vmem:[%s1217 + $0x10] sm:$0xff]
    %v2617 = vld [vmem:[%s1217 + $0x18] sm:$0xff]
    %v2618 = vld [vmem:[%s1217 + $0x20] sm:$0xff]
    %v2619 = vld [vmem:[%s1217 + $0x28] sm:$0xff]
    %v2620 = vld [vmem:[%s1217 + $0x30] sm:$0xff]
    %v2621 = vld [vmem:[%s1217 + $0x38] sm:$0xff]
    %v2622 = vld [vmem:[%s1217 + $0x40] sm:$0xff]
    %v2623 = vld [vmem:[%s1217 + $0x48] sm:$0xff]
    %v2624 = vld [vmem:[%s1217 + $0x50] sm:$0xff]
    %v2625 = vld [vmem:[%s1217 + $0x58] sm:$0xff]
    %v2626 = vld [vmem:[%s1217 + $0x60] sm:$0xff]
    %v2627 = vld [vmem:[%s1217 + $0x68] sm:$0xff]
    %v2628 = vld [vmem:[%s1217 + $0x70] sm:$0xff]
    %v2629 = vld [vmem:[%s1217 + $0x78] sm:$0xff]
    %v2630 = vld [vmem:[%s1217 + $0x80] sm:$0xff]
    %v2631 = vld [vmem:[%s1217 + $0x88] sm:$0xff]
    %v2632 = vld [vmem:[%s1217 + $0x90] sm:$0xff]
    %v2633 = vld [vmem:[%s1217 + $0x98] sm:$0xff]
    %v2634 = vld [vmem:[%s1217 + $0xa0] sm:$0xf]
    %v2635 = vld [vmem:[%s1217 + $0xa8] sm:$0xf]
    %v2637 = vsel %vm866, %v2612, 0
    %v2640 = vsel %vm866, %v2613, 0
    %v2643 = vsel %vm679, %v2634, 0
    %v2646 = vsel %vm679, %v2635, 0
    %2648 = vmatprep.subr.mxu0 %v2615
    %2649 = vmatpush1.msra.mxu0 %v2614
    %2650 = vmatprep.subr.mxu0 %v2617
    %2651 = vmatpush1.msra.mxu0 %v2616
    %2652 = vmatprep.subr.mxu0 %v2619
    %2653 = vmatpush1.msra.mxu0 %v2618
    %2654 = vmatprep.subr.mxu0 %v2621
    %2655 = vmatpush1.msra.mxu0 %v2620
    %2656 = vmatprep.subr.mxu0 %v2623
    %2657 = vmatpush1.msra.mxu0 %v2622
    %2658 = vmatprep.subr.mxu0 %v2625
    %2659 = vmatpush1.msra.mxu0 %v2624
    %2660 = vmatprep.subr.mxu0 %v2627
    %2661 = vmatpush1.msra.mxu0 %v2626
    %2662 = vmatprep.subr.mxu0 %v2629
    %2663 = vmatpush1.msra.mxu0 %v2628
    %2664 = vmatprep.subr.mxu0 %v2631
    %2665 = vmatpush1.msra.mxu0 %v2630
    %2666 = vmatprep.subr.mxu0 %v2633
    %2667 = vmatpush1.msra.mxu0 %v2632
    %2668 = vmatprep.subr.mxu0 %v2646
    %2669 = vmatpush1.msra.mxu0 %v2643
    %2670 = vmatprep.subr.mxu0 0.0
    %2671 = vmatpush1.msra.mxu0 0.0
    %2672 = vmatprep.subr.mxu0 0.0
    %2673 = vmatpush1.msra.mxu0 0.0
    %2674 = vmatprep.subr.mxu0 0.0
    %2675 = vmatpush1.msra.mxu0 0.0
    %2676 = vmatprep.subr.mxu0 0.0
    %2677 = vmatpush1.msra.mxu0 0.0
    %2678 = vmatprep.subr.mxu0 0.0
    %2679 = vmatpush1.msra.mxu0 0.0
    %2680 = vmatprep.subr.mxu0 0.0
    %2681 = vmatpush1.msra.mxu0 0.0
    %2682 = vmatprep.subr.mxu0 0.0
    %2683 = vmatpush1.msra.mxu0 0.0
    %2684 = vmatprep.subr.mxu0 0.0
    %2685 = vmatpush1.msra.mxu0 0.0
    %2686 = vmatprep.subr.mxu0 0.0
    %2687 = vmatpush1.msra.mxu0 0.0
    %2688 = vmatprep.subr.mxu0 0.0
    %2689 = vmatpush1.msra.mxu0 0.0
    %2690 = vmatprep.subr.mxu0 0.0
    %2691 = vmatpush1.msra.mxu0 0.0
    %2692 = vmatprep.subr.mxu0 0.0
    %2693 = vmatpush1.msra.mxu0 0.0
    %2694 = vmatprep.subr.mxu0 0.0
    %2695 = vmatpush1.msra.mxu0 0.0
    %2696 = vmatprep.subr.mxu0 0.0
    %2697 = vmatpush1.msra.mxu0 0.0
    %2698 = vmatprep.subr.mxu0 0.0
    %2699 = vmatpush1.msra.mxu0 0.0
    %2700 = vmatprep.subr.mxu0 0.0
    %2701 = vmatpush1.msra.mxu0 0.0
    %2702 = vmatprep.subr.mxu0 0.0
    %2703 = vmatpush1.msra.mxu0 0.0
    %2704 = vmatprep.subr.mxu0 0.0
    %2705 = vmatpush1.msra.mxu0 0.0
    %2706 = vmatprep.subr.mxu0 0.0
    %2707 = vmatpush1.msra.mxu0 0.0
    %2708 = vmatprep.subr.mxu0 0.0
    %2709 = vmatpush1.msra.mxu0 0.0
    %2710 = vmatprep.subr.mxu0 0.0
    %2711 = vmatpush1.msra.mxu0 0.0
    %2712 = vmatprep.mubr.f32.mxu0 0.0
    %2713 = vmatmul.mubr.f32.gmra.mrb[0].mxu0 %v2637
    %v2714 = vpop.f32.mrb[0].mxu0
    %v2715 = vadd.f32 0.0, %v2714
    %v2716 = vpop.f32.mrb[0].mxu0
    %v2717 = vadd.f32 0.0, %v2716
    %2718 = vmatprep.mubr.f32.mxu0 0.0
    %2719 = vmatmul.mubr.f32.gmra.mrb[0].mxu0 %v2640
    %v2720 = vpop.f32.mrb[0].mxu0
    %v2721 = vadd.f32 0.0, %v2720
    %v2722 = vpop.f32.mrb[0].mxu0
    %v2723 = vadd.f32 0.0, %v2722
    %2724 = vdwg.mxu0
    %v2725 = vadd.f32 %v2608, %v2715
    %v2726 = vadd.f32 %v2609, %v2717
    %v2727 = vadd.f32 %v2610, %v2721
    %v2728 = vadd.f32 %v2611, %v2723
    %v2729 = vld [vmem:[#allocation2 + $0x4] sm:$0xff]
    %v2730 = vld [vmem:[#allocation2 + $0xc] sm:$0x3]
    %v2731 = vld [vmem:[%s1335] sm:$0xff]
    %v2732 = vld [vmem:[%s1335 + $0x8] sm:$0xff]
    %v2733 = vld [vmem:[%s1335 + $0x10] sm:$0xff]
    %v2734 = vld [vmem:[%s1335 + $0x18] sm:$0xff]
    %v2735 = vld [vmem:[%s1335 + $0x20] sm:$0xff]
    %v2736 = vld [vmem:[%s1335 + $0x28] sm:$0xff]
    %v2737 = vld [vmem:[%s1335 + $0x30] sm:$0xff]
    %v2738 = vld [vmem:[%s1335 + $0x38] sm:$0xff]
    %v2739 = vld [vmem:[%s1335 + $0x40] sm:$0xff]
    %v2740 = vld [vmem:[%s1335 + $0x48] sm:$0xff]
    %v2741 = vld [vmem:[%s1335 + $0x50] sm:$0xff]
    %v2742 = vld [vmem:[%s1335 + $0x58] sm:$0xff]
    %v2743 = vld [vmem:[%s1335 + $0x60] sm:$0xff]
    %v2744 = vld [vmem:[%s1335 + $0x68] sm:$0xff]
    %v2745 = vld [vmem:[%s1335 + $0x70] sm:$0xff]
    %v2746 = vld [vmem:[%s1335 + $0x78] sm:$0xff]
    %v2747 = vld [vmem:[%s1335 + $0x80] sm:$0xff]
    %v2748 = vld [vmem:[%s1335 + $0x88] sm:$0xff]
    %v2749 = vld [vmem:[%s1335 + $0x90] sm:$0xff]
    %v2750 = vld [vmem:[%s1335 + $0x98] sm:$0xff]
    %v2751 = vld [vmem:[%s1335 + $0xa0] sm:$0xf]
    %v2752 = vld [vmem:[%s1335 + $0xa8] sm:$0xf]
    %v2754 = vsel %vm866, %v2729, 0
    %v2757 = vsel %vm866, %v2730, 0
    %v2760 = vsel %vm679, %v2751, 0
    %v2763 = vsel %vm679, %v2752, 0
    %2765 = vmatprep.subr.mxu0 %v2732
    %2766 = vmatpush1.msra.mxu0 %v2731
    %2767 = vmatprep.subr.mxu0 %v2734
    %2768 = vmatpush1.msra.mxu0 %v2733
    %2769 = vmatprep.subr.mxu0 %v2736
    %2770 = vmatpush1.msra.mxu0 %v2735
    %2771 = vmatprep.subr.mxu0 %v2738
    %2772 = vmatpush1.msra.mxu0 %v2737
    %2773 = vmatprep.subr.mxu0 %v2740
    %2774 = vmatpush1.msra.mxu0 %v2739
    %2775 = vmatprep.subr.mxu0 %v2742
    %2776 = vmatpush1.msra.mxu0 %v2741
    %2777 = vmatprep.subr.mxu0 %v2744
    %2778 = vmatpush1.msra.mxu0 %v2743
    %2779 = vmatprep.subr.mxu0 %v2746
    %2780 = vmatpush1.msra.mxu0 %v2745
    %2781 = vmatprep.subr.mxu0 %v2748
    %2782 = vmatpush1.msra.mxu0 %v2747
    %2783 = vmatprep.subr.mxu0 %v2750
    %2784 = vmatpush1.msra.mxu0 %v2749
    %2785 = vmatprep.subr.mxu0 %v2763
    %2786 = vmatpush1.msra.mxu0 %v2760
    %2787 = vmatprep.subr.mxu0 0.0
    %2788 = vmatpush1.msra.mxu0 0.0
    %2789 = vmatprep.subr.mxu0 0.0
    %2790 = vmatpush1.msra.mxu0 0.0
    %2791 = vmatprep.subr.mxu0 0.0
    %2792 = vmatpush1.msra.mxu0 0.0
    %2793 = vmatprep.subr.mxu0 0.0
    %2794 = vmatpush1.msra.mxu0 0.0
    %2795 = vmatprep.subr.mxu0 0.0
    %2796 = vmatpush1.msra.mxu0 0.0
    %2797 = vmatprep.subr.mxu0 0.0
    %2798 = vmatpush1.msra.mxu0 0.0
    %2799 = vmatprep.subr.mxu0 0.0
    %2800 = vmatpush1.msra.mxu0 0.0
    %2801 = vmatprep.subr.mxu0 0.0
    %2802 = vmatpush1.msra.mxu0 0.0
    %2803 = vmatprep.subr.mxu0 0.0
    %2804 = vmatpush1.msra.mxu0 0.0
    %2805 = vmatprep.subr.mxu0 0.0
    %2806 = vmatpush1.msra.mxu0 0.0
    %2807 = vmatprep.subr.mxu0 0.0
    %2808 = vmatpush1.msra.mxu0 0.0
    %2809 = vmatprep.subr.mxu0 0.0
    %2810 = vmatpush1.msra.mxu0 0.0
    %2811 = vmatprep.subr.mxu0 0.0
    %2812 = vmatpush1.msra.mxu0 0.0
    %2813 = vmatprep.subr.mxu0 0.0
    %2814 = vmatpush1.msra.mxu0 0.0
    %2815 = vmatprep.subr.mxu0 0.0
    %2816 = vmatpush1.msra.mxu0 0.0
    %2817 = vmatprep.subr.mxu0 0.0
    %2818 = vmatpush1.msra.mxu0 0.0
    %2819 = vmatprep.subr.mxu0 0.0
    %2820 = vmatpush1.msra.mxu0 0.0
    %2821 = vmatprep.subr.mxu0 0.0
    %2822 = vmatpush1.msra.mxu0 0.0
    %2823 = vmatprep.subr.mxu0 0.0
    %2824 = vmatpush1.msra.mxu0 0.0
    %2825 = vmatprep.subr.mxu0 0.0
    %2826 = vmatpush1.msra.mxu0 0.0
    %2827 = vmatprep.subr.mxu0 0.0
    %2828 = vmatpush1.msra.mxu0 0.0
    %2829 = vmatprep.mubr.f32.mxu0 0.0
    %2830 = vmatmul.mubr.f32.gmra.mrb[0].mxu0 %v2754
    %v2831 = vpop.f32.mrb[0].mxu0
    %v2832 = vadd.f32 0.0, %v2831
    %v2833 = vpop.f32.mrb[0].mxu0
    %v2834 = vadd.f32 0.0, %v2833
    %2835 = vmatprep.mubr.f32.mxu0 0.0
    %2836 = vmatmul.mubr.f32.gmra.mrb[0].mxu0 %v2757
    %v2837 = vpop.f32.mrb[0].mxu0
    %v2838 = vadd.f32 0.0, %v2837
    %v2839 = vpop.f32.mrb[0].mxu0
    %v2840 = vadd.f32 0.0, %v2839
    %2841 = vdwg.mxu0
    %v2842 = vadd.f32 %v2725, %v2832
    %v2843 = vadd.f32 %v2726, %v2834
    %v2844 = vadd.f32 %v2727, %v2838
    %v2845 = vadd.f32 %v2728, %v2840
    %vm2850 = vcmask 1041408
    %v2851 = vrot.slane %v2842, 6
    %v2852 = vrot.slane %v2843, 6
    %v2853 = vrot.slane %v2844, 6
    %v2854 = vsel %vm2850, %v2851, %v2853
    %v2855 = vrot.slane %v2845, 6
    %v2856 = vsel %vm2850, %v2852, %v2855
    %2861 = vst [vmem:[#allocation3 + $0x10] sm:$0xfc] %v2851
    %vm2862 = vcmask 261122
    %2863 = vst.msk [vmem:[#allocation3 + $0x18] sm:$0xfc] %vm2862, %v2852
    %2864 = vst [vmem:[#allocation3 + $0x20] sm:$0xf] %v2854
    %vm2865 = vcmask 257024
    %2866 = vst.msk [vmem:[#allocation3 + $0x28] sm:$0xf] %vm2865, %v2856
    %v2867 = vld [vmem:[#allocation3] sm:$0xff]
    %v2868 = vld [vmem:[#allocation3 + $0x8] sm:$0xff]
    %v2869 = vld [vmem:[#allocation3 + $0x10] sm:$0xff]
    %v2870 = vld [vmem:[#allocation3 + $0x18] sm:$0xff]
    %v2871 = vld [vmem:[#allocation3 + $0x20] sm:$0xf]
    %v2872 = vld [vmem:[#allocation3 + $0x28] sm:$0xf]
    %v2873 = vld [vmem:[%s4] sm:$0x3]
    %v2875 = vlaneseq
    %v2876 = vshrl.u32 %v2875, 7
    %v2877 = vsub.s32 0, %v2876
    %v2878 = vrot.slane %v2873, %v2877
    %v2879 = vlaneseq
    %v2880 = vshrl.u32 %v2879, 7
    %v2881 = vsub.s32 1, %v2880
    %v2882 = vrot.slane %v2873, %v2881
    %v2885 = vadd.f32 %v2867, %v2878
    %v2886 = vadd.f32 %v2868, %v2882
    %v2887 = vadd.f32 %v2869, %v2878
    %v2888 = vadd.f32 %v2870, %v2882
    %v2889 = vadd.f32 %v2871, %v2878
    %v2890 = vadd.f32 %v2872, %v2882
    %v2891 = vtanh.pop %v2885
    %v2892 = vtanh.pop %v2886
    %v2893 = vtanh.pop %v2887
    %v2894 = vtanh.pop %v2888
    %v2895 = vtanh.pop %v2889
    %v2896 = vtanh.pop %v2890
    %v2897 = vld [vmem:[%s7] sm:$0x3]
    %vm2898 = vcmask 162816
    %v2900 = vsel %vm2898, %v2897, 0
    %v2903 = vsel %vm679, %v2895, 0
    %v2906 = vsel %vm679, %v2896, 0
    %2908 = vmatprep.subr.mxu0 %v2892
    %2909 = vmatpush1.msra.mxu0 %v2891
    %2910 = vmatprep.subr.mxu0 %v2894
    %2911 = vmatpush1.msra.mxu0 %v2893
    %2912 = vmatprep.subr.mxu0 %v2906
    %2913 = vmatpush1.msra.mxu0 %v2903
    %2914 = vmatprep.subr.mxu0 0.0
    %2915 = vmatpush1.msra.mxu0 0.0
    %2916 = vmatprep.subr.mxu0 0.0
    %2917 = vmatpush1.msra.mxu0 0.0
    %2918 = vmatprep.subr.mxu0 0.0
    %2919 = vmatpush1.msra.mxu0 0.0
    %2920 = vmatprep.subr.mxu0 0.0
    %2921 = vmatpush1.msra.mxu0 0.0
    %2922 = vmatprep.subr.mxu0 0.0
    %2923 = vmatpush1.msra.mxu0 0.0
    %2924 = vmatprep.subr.mxu0 0.0
    %2925 = vmatpush1.msra.mxu0 0.0
    %2926 = vmatprep.subr.mxu0 0.0
    %2927 = vmatpush1.msra.mxu0 0.0
    %2928 = vmatprep.subr.mxu0 0.0
    %2929 = vmatpush1.msra.mxu0 0.0
    %2930 = vmatprep.subr.mxu0 0.0
    %2931 = vmatpush1.msra.mxu0 0.0
    %2932 = vmatprep.subr.mxu0 0.0
    %2933 = vmatpush1.msra.mxu0 0.0
    %2934 = vmatprep.subr.mxu0 0.0
    %2935 = vmatpush1.msra.mxu0 0.0
    %2936 = vmatprep.subr.mxu0 0.0
    %2937 = vmatpush1.msra.mxu0 0.0
    %2938 = vmatprep.subr.mxu0 0.0
    %2939 = vmatpush1.msra.mxu0 0.0
    %2940 = vmatprep.subr.mxu0 0.0
    %2941 = vmatpush1.msra.mxu0 0.0
    %2942 = vmatprep.subr.mxu0 0.0
    %2943 = vmatpush1.msra.mxu0 0.0
    %2944 = vmatprep.subr.mxu0 0.0
    %2945 = vmatpush1.msra.mxu0 0.0
    %2946 = vmatprep.subr.mxu0 0.0
    %2947 = vmatpush1.msra.mxu0 0.0
    %2948 = vmatprep.subr.mxu0 0.0
    %2949 = vmatpush1.msra.mxu0 0.0
    %2950 = vmatprep.subr.mxu0 0.0
    %2951 = vmatpush1.msra.mxu0 0.0
    %2952 = vmatprep.subr.mxu0 0.0
    %2953 = vmatpush1.msra.mxu0 0.0
    %2954 = vmatprep.subr.mxu0 0.0
    %2955 = vmatpush1.msra.mxu0 0.0
    %2956 = vmatprep.subr.mxu0 0.0
    %2957 = vmatpush1.msra.mxu0 0.0
    %2958 = vmatprep.subr.mxu0 0.0
    %2959 = vmatpush1.msra.mxu0 0.0
    %2960 = vmatprep.subr.mxu0 0.0
    %2961 = vmatpush1.msra.mxu0 0.0
    %2962 = vmatprep.subr.mxu0 0.0
    %2963 = vmatpush1.msra.mxu0 0.0
    %2964 = vmatprep.subr.mxu0 0.0
    %2965 = vmatpush1.msra.mxu0 0.0
    %2966 = vmatprep.subr.mxu0 0.0
    %2967 = vmatpush1.msra.mxu0 0.0
    %2968 = vmatprep.subr.mxu0 0.0
    %2969 = vmatpush1.msra.mxu0 0.0
    %2970 = vmatprep.subr.mxu0 0.0
    %2971 = vmatpush1.msra.mxu0 0.0
    %2972 = vmatprep.mubr.f32.mxu0 0.0
    %2973 = vmatmul.mubr.f32.gmra.mrb[0].mxu0 %v2900
    %v2974 = vpop.f32.mrb[0].mxu0
    %v2975 = vadd.f32 0.0, %v2974
    %v2976 = vpop.f32.mrb[0].mxu0
    %v2977 = vadd.f32 0.0, %v2976
    %2978 = vdwg.mxu0
    %v2979 = vld [vmem:[%s8] sm:$0xff]
    %v2980 = vld [vmem:[%s8 + $0x8] sm:$0xff]
    %v2981 = vld [vmem:[%s8 + $0x10] sm:$0xff]
    %v2982 = vld [vmem:[%s8 + $0x18] sm:$0xff]
    %v2983 = vld [vmem:[%s8 + $0x20] sm:$0xff]
    %v2984 = vld [vmem:[%s8 + $0x28] sm:$0xff]
    %v2985 = vld [vmem:[%s8 + $0x30] sm:$0xff]
    %v2986 = vld [vmem:[%s8 + $0x38] sm:$0xff]
    %v2987 = vld [vmem:[%s8 + $0x40] sm:$0xff]
    %v2988 = vld [vmem:[%s8 + $0x48] sm:$0xff]
    %v2989 = vld [vmem:[%s8 + $0x50] sm:$0xff]
    %v2990 = vld [vmem:[%s8 + $0x58] sm:$0xff]
    %v2991 = vld [vmem:[%s8 + $0x60] sm:$0xff]
    %v2992 = vld [vmem:[%s8 + $0x68] sm:$0xff]
    %v2993 = vld [vmem:[%s8 + $0x70] sm:$0xff]
    %v2994 = vld [vmem:[%s8 + $0x78] sm:$0xff]
    %v2995 = vld [vmem:[%s8 + $0x80] sm:$0xff]
    %v2996 = vld [vmem:[%s8 + $0x88] sm:$0xff]
    %v2997 = vld [vmem:[%s8 + $0x90] sm:$0xff]
    %v2998 = vld [vmem:[%s8 + $0x98] sm:$0xff]
    %s2999 = scalar_lea.vmem %s7, 2
    %v3000 = vld [vmem:[%s2999] sm:$0x3]
    %v3002 = vsel %vm2898, %v3000, 0
    %3004 = vmatprep.subr.mxu0 %v2892
    %3005 = vmatpush1.msra.mxu0 %v2891
    %3006 = vmatprep.subr.mxu0 %v2894
    %3007 = vmatpush1.msra.mxu0 %v2893
    %3008 = vmatprep.subr.mxu0 %v2906
    %3009 = vmatpush1.msra.mxu0 %v2903
    %3010 = vmatprep.subr.mxu0 0.0
    %3011 = vmatpush1.msra.mxu0 0.0
    %3012 = vmatprep.subr.mxu0 0.0
    %3013 = vmatpush1.msra.mxu0 0.0
    %3014 = vmatprep.subr.mxu0 0.0
    %3015 = vmatpush1.msra.mxu0 0.0
    %3016 = vmatprep.subr.mxu0 0.0
    %3017 = vmatpush1.msra.mxu0 0.0
    %3018 = vmatprep.subr.mxu0 0.0
    %3019 = vmatpush1.msra.mxu0 0.0
    %3020 = vmatprep.subr.mxu0 0.0
    %3021 = vmatpush1.msra.mxu0 0.0
    %3022 = vmatprep.subr.mxu0 0.0
    %3023 = vmatpush1.msra.mxu0 0.0
    %3024 = vmatprep.subr.mxu0 0.0
    %3025 = vmatpush1.msra.mxu0 0.0
    %3026 = vmatprep.subr.mxu0 0.0
    %3027 = vmatpush1.msra.mxu0 0.0
    %3028 = vmatprep.subr.mxu0 0.0
    %3029 = vmatpush1.msra.mxu0 0.0
    %3030 = vmatprep.subr.mxu0 0.0
    %3031 = vmatpush1.msra.mxu0 0.0
    %3032 = vmatprep.subr.mxu0 0.0
    %3033 = vmatpush1.msra.mxu0 0.0
    %3034 = vmatprep.subr.mxu0 0.0
    %3035 = vmatpush1.msra.mxu0 0.0
    %3036 = vmatprep.subr.mxu0 0.0
    %3037 = vmatpush1.msra.mxu0 0.0
    %3038 = vmatprep.subr.mxu0 0.0
    %3039 = vmatpush1.msra.mxu0 0.0
    %3040 = vmatprep.subr.mxu0 0.0
    %3041 = vmatpush1.msra.mxu0 0.0
    %3042 = vmatprep.subr.mxu0 0.0
    %3043 = vmatpush1.msra.mxu0 0.0
    %3044 = vmatprep.subr.mxu0 0.0
    %3045 = vmatpush1.msra.mxu0 0.0
    %3046 = vmatprep.subr.mxu0 0.0
    %3047 = vmatpush1.msra.mxu0 0.0
    %3048 = vmatprep.subr.mxu0 0.0
    %3049 = vmatpush1.msra.mxu0 0.0
    %3050 = vmatprep.subr.mxu0 0.0
    %3051 = vmatpush1.msra.mxu0 0.0
    %3052 = vmatprep.subr.mxu0 0.0
    %3053 = vmatpush1.msra.mxu0 0.0
    %3054 = vmatprep.subr.mxu0 0.0
    %3055 = vmatpush1.msra.mxu0 0.0
    %3056 = vmatprep.subr.mxu0 0.0
    %3057 = vmatpush1.msra.mxu0 0.0
    %3058 = vmatprep.subr.mxu0 0.0
    %3059 = vmatpush1.msra.mxu0 0.0
    %3060 = vmatprep.subr.mxu0 0.0
    %3061 = vmatpush1.msra.mxu0 0.0
    %3062 = vmatprep.subr.mxu0 0.0
    %3063 = vmatpush1.msra.mxu0 0.0
    %3064 = vmatprep.subr.mxu0 0.0
    %3065 = vmatpush1.msra.mxu0 0.0
    %3066 = vmatprep.subr.mxu0 0.0
    %3067 = vmatpush1.msra.mxu0 0.0
    %3068 = vmatprep.mubr.f32.mxu0 0.0
    %3069 = vmatmul.mubr.f32.gmra.mrb[0].mxu0 %v3002
    %v3070 = vpop.f32.mrb[0].mxu0
    %v3071 = vadd.f32 0.0, %v3070
    %v3072 = vpop.f32.mrb[0].mxu0
    %v3073 = vadd.f32 0.0, %v3072
    %3074 = vdwg.mxu0
    %s3075 = scalar_lea.vmem %s8, 160
    %v3076 = vld [vmem:[%s3075] sm:$0xff]
    %v3077 = vld [vmem:[%s3075 + $0x8] sm:$0xff]
    %v3078 = vld [vmem:[%s3075 + $0x10] sm:$0xff]
    %v3079 = vld [vmem:[%s3075 + $0x18] sm:$0xff]
    %v3080 = vld [vmem:[%s3075 + $0x20] sm:$0xff]
    %v3081 = vld [vmem:[%s3075 + $0x28] sm:$0xff]
    %v3082 = vld [vmem:[%s3075 + $0x30] sm:$0xff]
    %v3083 = vld [vmem:[%s3075 + $0x38] sm:$0xff]
    %v3084 = vld [vmem:[%s3075 + $0x40] sm:$0xff]
    %v3085 = vld [vmem:[%s3075 + $0x48] sm:$0xff]
    %v3086 = vld [vmem:[%s3075 + $0x50] sm:$0xff]
    %v3087 = vld [vmem:[%s3075 + $0x58] sm:$0xff]
    %v3088 = vld [vmem:[%s3075 + $0x60] sm:$0xff]
    %v3089 = vld [vmem:[%s3075 + $0x68] sm:$0xff]
    %v3090 = vld [vmem:[%s3075 + $0x70] sm:$0xff]
    %v3091 = vld [vmem:[%s3075 + $0x78] sm:$0xff]
    %v3092 = vld [vmem:[%s3075 + $0x80] sm:$0xff]
    %v3093 = vld [vmem:[%s3075 + $0x88] sm:$0xff]
    %v3094 = vld [vmem:[%s3075 + $0x90] sm:$0xff]
    %v3095 = vld [vmem:[%s3075 + $0x98] sm:$0xff]
    %v3097 = vsel %vm73, %v3073, 0
    %3099 = vmatprep.subr.mxu0 0.0
    %3100 = vmatpush1.msra.mxu0 %v3076
    %3101 = vmatprep.subr.mxu0 0.0
    %3102 = vmatpush1.msra.mxu0 %v3077
    %3103 = vmatprep.subr.mxu0 0.0
    %3104 = vmatpush1.msra.mxu0 %v3078
    %3105 = vmatprep.subr.mxu0 0.0
    %3106 = vmatpush1.msra.mxu0 %v3079
    %3107 = vmatprep.subr.mxu0 0.0
    %3108 = vmatpush1.msra.mxu0 %v3080
    %3109 = vmatprep.subr.mxu0 0.0
    %3110 = vmatpush1.msra.mxu0 %v3081
    %3111 = vmatprep.subr.mxu0 0.0
    %3112 = vmatpush1.msra.mxu0 %v3082
    %3113 = vmatprep.subr.mxu0 0.0
    %3114 = vmatpush1.msra.mxu0 %v3083
    %3115 = vmatprep.subr.mxu0 0.0
    %3116 = vmatpush1.msra.mxu0 %v3084
    %3117 = vmatprep.subr.mxu0 0.0
    %3118 = vmatpush1.msra.mxu0 %v3085
    %3119 = vmatprep.subr.mxu0 0.0
    %3120 = vmatpush1.msra.mxu0 %v3086
    %3121 = vmatprep.subr.mxu0 0.0
    %3122 = vmatpush1.msra.mxu0 %v3087
    %3123 = vmatprep.subr.mxu0 0.0
    %3124 = vmatpush1.msra.mxu0 %v3088
    %3125 = vmatprep.subr.mxu0 0.0
    %3126 = vmatpush1.msra.mxu0 %v3089
    %3127 = vmatprep.subr.mxu0 0.0
    %3128 = vmatpush1.msra.mxu0 %v3090
    %3129 = vmatprep.subr.mxu0 0.0
    %3130 = vmatpush1.msra.mxu0 %v3091
    %3131 = vmatprep.subr.mxu0 0.0
    %3132 = vmatpush1.msra.mxu0 %v3092
    %3133 = vmatprep.subr.mxu0 0.0
    %3134 = vmatpush1.msra.mxu0 %v3093
    %3135 = vmatprep.subr.mxu0 0.0
    %3136 = vmatpush1.msra.mxu0 %v3094
    %3137 = vmatprep.subr.mxu0 0.0
    %3138 = vmatpush1.msra.mxu0 %v3095
    %3139 = vmatprep.subr.mxu0 0.0
    %3140 = vmatpush1.msra.mxu0 0.0
    %3141 = vmatprep.subr.mxu0 0.0
    %3142 = vmatpush1.msra.mxu0 0.0
    %3143 = vmatprep.subr.mxu0 0.0
    %3144 = vmatpush1.msra.mxu0 0.0
    %3145 = vmatprep.subr.mxu0 0.0
    %3146 = vmatpush1.msra.mxu0 0.0
    %3147 = vmatprep.subr.mxu0 0.0
    %3148 = vmatpush1.msra.mxu0 0.0
    %3149 = vmatprep.subr.mxu0 0.0
    %3150 = vmatpush1.msra.mxu0 0.0
    %3151 = vmatprep.subr.mxu0 0.0
    %3152 = vmatpush1.msra.mxu0 0.0
    %3153 = vmatprep.subr.mxu0 0.0
    %3154 = vmatpush1.msra.mxu0 0.0
    %3155 = vmatprep.subr.mxu0 0.0
    %3156 = vmatpush1.msra.mxu0 0.0
    %3157 = vmatprep.subr.mxu0 0.0
    %3158 = vmatpush1.msra.mxu0 0.0
    %3159 = vmatprep.subr.mxu0 0.0
    %3160 = vmatpush1.msra.mxu0 0.0
    %3161 = vmatprep.subr.mxu0 0.0
    %3162 = vmatpush1.msra.mxu0 0.0
    %3163 = vmatprep.mubr.f32.mxu0 %v3097
    %3164 = vmatmul.mubr.f32.gmra.mrb[0].mxu0 %v3071
    %v3165 = vpop.f32.mrb[0].mxu0
    %v3166 = vadd.f32 0.0, %v3165
    %v3167 = vpop.f32.mrb[0].mxu0
    %3168 = vdwg.mxu0
    %v3170 = vsel %vm73, %v2977, 0
    %3172 = vmatprep.subr.mxu0 0.0
    %3173 = vmatpush1.msra.mxu0 %v2979
    %3174 = vmatprep.subr.mxu0 0.0
    %3175 = vmatpush1.msra.mxu0 %v2980
    %3176 = vmatprep.subr.mxu0 0.0
    %3177 = vmatpush1.msra.mxu0 %v2981
    %3178 = vmatprep.subr.mxu0 0.0
    %3179 = vmatpush1.msra.mxu0 %v2982
    %3180 = vmatprep.subr.mxu0 0.0
    %3181 = vmatpush1.msra.mxu0 %v2983
    %3182 = vmatprep.subr.mxu0 0.0
    %3183 = vmatpush1.msra.mxu0 %v2984
    %3184 = vmatprep.subr.mxu0 0.0
    %3185 = vmatpush1.msra.mxu0 %v2985
    %3186 = vmatprep.subr.mxu0 0.0
    %3187 = vmatpush1.msra.mxu0 %v2986
    %3188 = vmatprep.subr.mxu0 0.0
    %3189 = vmatpush1.msra.mxu0 %v2987
    %3190 = vmatprep.subr.mxu0 0.0
    %3191 = vmatpush1.msra.mxu0 %v2988
    %3192 = vmatprep.subr.mxu0 0.0
    %3193 = vmatpush1.msra.mxu0 %v2989
    %3194 = vmatprep.subr.mxu0 0.0
    %3195 = vmatpush1.msra.mxu0 %v2990
    %3196 = vmatprep.subr.mxu0 0.0
    %3197 = vmatpush1.msra.mxu0 %v2991
    %3198 = vmatprep.subr.mxu0 0.0
    %3199 = vmatpush1.msra.mxu0 %v2992
    %3200 = vmatprep.subr.mxu0 0.0
    %3201 = vmatpush1.msra.mxu0 %v2993
    %3202 = vmatprep.subr.mxu0 0.0
    %3203 = vmatpush1.msra.mxu0 %v2994
    %3204 = vmatprep.subr.mxu0 0.0
    %3205 = vmatpush1.msra.mxu0 %v2995
    %3206 = vmatprep.subr.mxu0 0.0
    %3207 = vmatpush1.msra.mxu0 %v2996
    %3208 = vmatprep.subr.mxu0 0.0
    %3209 = vmatpush1.msra.mxu0 %v2997
    %3210 = vmatprep.subr.mxu0 0.0
    %3211 = vmatpush1.msra.mxu0 %v2998
    %3212 = vmatprep.subr.mxu0 0.0
    %3213 = vmatpush1.msra.mxu0 0.0
    %3214 = vmatprep.subr.mxu0 0.0
    %3215 = vmatpush1.msra.mxu0 0.0
    %3216 = vmatprep.subr.mxu0 0.0
    %3217 = vmatpush1.msra.mxu0 0.0
    %3218 = vmatprep.subr.mxu0 0.0
    %3219 = vmatpush1.msra.mxu0 0.0
    %3220 = vmatprep.subr.mxu0 0.0
    %3221 = vmatpush1.msra.mxu0 0.0
    %3222 = vmatprep.subr.mxu0 0.0
    %3223 = vmatpush1.msra.mxu0 0.0
    %3224 = vmatprep.subr.mxu0 0.0
    %3225 = vmatpush1.msra.mxu0 0.0
    %3226 = vmatprep.subr.mxu0 0.0
    %3227 = vmatpush1.msra.mxu0 0.0
    %3228 = vmatprep.subr.mxu0 0.0
    %3229 = vmatpush1.msra.mxu0 0.0
    %3230 = vmatprep.subr.mxu0 0.0
    %3231 = vmatpush1.msra.mxu0 0.0
    %3232 = vmatprep.subr.mxu0 0.0
    %3233 = vmatpush1.msra.mxu0 0.0
    %3234 = vmatprep.subr.mxu0 0.0
    %3235 = vmatpush1.msra.mxu0 0.0
    %3236 = vmatprep.mubr.f32.mxu0 %v3170
    %3237 = vmatmul.mubr.f32.gmra.mrb[0].mxu0 %v2975
    %v3238 = vpop.f32.mrb[0].mxu0
    %v3239 = vadd.f32 %v3166, %v3238
    %v3240 = vpop.f32.mrb[0].mxu0
    %3241 = vdwg.mxu0
    %s3242 = scalar_lea.vmem %s7, 4
    %v3243 = vld [vmem:[%s3242] sm:$0x3]
    %v3245 = vsel %vm2898, %v3243, 0
    %3247 = vmatprep.subr.mxu0 %v2892
    %3248 = vmatpush1.msra.mxu0 %v2891
    %3249 = vmatprep.subr.mxu0 %v2894
    %3250 = vmatpush1.msra.mxu0 %v2893
    %3251 = vmatprep.subr.mxu0 %v2906
    %3252 = vmatpush1.msra.mxu0 %v2903
    %3253 = vmatprep.subr.mxu0 0.0
    %3254 = vmatpush1.msra.mxu0 0.0
    %3255 = vmatprep.subr.mxu0 0.0
    %3256 = vmatpush1.msra.mxu0 0.0
    %3257 = vmatprep.subr.mxu0 0.0
    %3258 = vmatpush1.msra.mxu0 0.0
    %3259 = vmatprep.subr.mxu0 0.0
    %3260 = vmatpush1.msra.mxu0 0.0
    %3261 = vmatprep.subr.mxu0 0.0
    %3262 = vmatpush1.msra.mxu0 0.0
    %3263 = vmatprep.subr.mxu0 0.0
    %3264 = vmatpush1.msra.mxu0 0.0
    %3265 = vmatprep.subr.mxu0 0.0
    %3266 = vmatpush1.msra.mxu0 0.0
    %3267 = vmatprep.subr.mxu0 0.0
    %3268 = vmatpush1.msra.mxu0 0.0
    %3269 = vmatprep.subr.mxu0 0.0
    %3270 = vmatpush1.msra.mxu0 0.0
    %3271 = vmatprep.subr.mxu0 0.0
    %3272 = vmatpush1.msra.mxu0 0.0
    %3273 = vmatprep.subr.mxu0 0.0
    %3274 = vmatpush1.msra.mxu0 0.0
    %3275 = vmatprep.subr.mxu0 0.0
    %3276 = vmatpush1.msra.mxu0 0.0
    %3277 = vmatprep.subr.mxu0 0.0
    %3278 = vmatpush1.msra.mxu0 0.0
    %3279 = vmatprep.subr.mxu0 0.0
    %3280 = vmatpush1.msra.mxu0 0.0
    %3281 = vmatprep.subr.mxu0 0.0
    %3282 = vmatpush1.msra.mxu0 0.0
    %3283 = vmatprep.subr.mxu0 0.0
    %3284 = vmatpush1.msra.mxu0 0.0
    %3285 = vmatprep.subr.mxu0 0.0
    %3286 = vmatpush1.msra.mxu0 0.0
    %3287 = vmatprep.subr.mxu0 0.0
    %3288 = vmatpush1.msra.mxu0 0.0
    %3289 = vmatprep.subr.mxu0 0.0
    %3290 = vmatpush1.msra.mxu0 0.0
    %3291 = vmatprep.subr.mxu0 0.0
    %3292 = vmatpush1.msra.mxu0 0.0
    %3293 = vmatprep.subr.mxu0 0.0
    %3294 = vmatpush1.msra.mxu0 0.0
    %3295 = vmatprep.subr.mxu0 0.0
    %3296 = vmatpush1.msra.mxu0 0.0
    %3297 = vmatprep.subr.mxu0 0.0
    %3298 = vmatpush1.msra.mxu0 0.0
    %3299 = vmatprep.subr.mxu0 0.0
    %3300 = vmatpush1.msra.mxu0 0.0
    %3301 = vmatprep.subr.mxu0 0.0
    %3302 = vmatpush1.msra.mxu0 0.0
    %3303 = vmatprep.subr.mxu0 0.0
    %3304 = vmatpush1.msra.mxu0 0.0
    %3305 = vmatprep.subr.mxu0 0.0
    %3306 = vmatpush1.msra.mxu0 0.0
    %3307 = vmatprep.subr.mxu0 0.0
    %3308 = vmatpush1.msra.mxu0 0.0
    %3309 = vmatprep.subr.mxu0 0.0
    %3310 = vmatpush1.msra.mxu0 0.0
    %3311 = vmatprep.mubr.f32.mxu0 0.0
    %3312 = vmatmul.mubr.f32.gmra.mrb[0].mxu0 %v3245
    %v3313 = vpop.f32.mrb[0].mxu0
    %v3314 = vadd.f32 0.0, %v3313
    %v3315 = vpop.f32.mrb[0].mxu0
    %v3316 = vadd.f32 0.0, %v3315
    %3317 = vdwg.mxu0
    %s3318 = scalar_lea.vmem %s8, 320
    %v3319 = vld [vmem:[%s3318] sm:$0xff]
    %v3320 = vld [vmem:[%s3318 + $0x8] sm:$0xff]
    %v3321 = vld [vmem:[%s3318 + $0x10] sm:$0xff]
    %v3322 = vld [vmem:[%s3318 + $0x18] sm:$0xff]
    %v3323 = vld [vmem:[%s3318 + $0x20] sm:$0xff]
    %v3324 = vld [vmem:[%s3318 + $0x28] sm:$0xff]
    %v3325 = vld [vmem:[%s3318 + $0x30] sm:$0xff]
    %v3326 = vld [vmem:[%s3318 + $0x38] sm:$0xff]
    %v3327 = vld [vmem:[%s3318 + $0x40] sm:$0xff]
    %v3328 = vld [vmem:[%s3318 + $0x48] sm:$0xff]
    %v3329 = vld [vmem:[%s3318 + $0x50] sm:$0xff]
    %v3330 = vld [vmem:[%s3318 + $0x58] sm:$0xff]
    %v3331 = vld [vmem:[%s3318 + $0x60] sm:$0xff]
    %v3332 = vld [vmem:[%s3318 + $0x68] sm:$0xff]
    %v3333 = vld [vmem:[%s3318 + $0x70] sm:$0xff]
    %v3334 = vld [vmem:[%s3318 + $0x78] sm:$0xff]
    %v3335 = vld [vmem:[%s3318 + $0x80] sm:$0xff]
    %v3336 = vld [vmem:[%s3318 + $0x88] sm:$0xff]
    %v3337 = vld [vmem:[%s3318 + $0x90] sm:$0xff]
    %v3338 = vld [vmem:[%s3318 + $0x98] sm:$0xff]
    %v3340 = vsel %vm73, %v3316, 0
    %3342 = vmatprep.subr.mxu0 0.0
    %3343 = vmatpush1.msra.mxu0 %v3319
    %3344 = vmatprep.subr.mxu0 0.0
    %3345 = vmatpush1.msra.mxu0 %v3320
    %3346 = vmatprep.subr.mxu0 0.0
    %3347 = vmatpush1.msra.mxu0 %v3321
    %3348 = vmatprep.subr.mxu0 0.0
    %3349 = vmatpush1.msra.mxu0 %v3322
    %3350 = vmatprep.subr.mxu0 0.0
    %3351 = vmatpush1.msra.mxu0 %v3323
    %3352 = vmatprep.subr.mxu0 0.0
    %3353 = vmatpush1.msra.mxu0 %v3324
    %3354 = vmatprep.subr.mxu0 0.0
    %3355 = vmatpush1.msra.mxu0 %v3325
    %3356 = vmatprep.subr.mxu0 0.0
    %3357 = vmatpush1.msra.mxu0 %v3326
    %3358 = vmatprep.subr.mxu0 0.0
    %3359 = vmatpush1.msra.mxu0 %v3327
    %3360 = vmatprep.subr.mxu0 0.0
    %3361 = vmatpush1.msra.mxu0 %v3328
    %3362 = vmatprep.subr.mxu0 0.0
    %3363 = vmatpush1.msra.mxu0 %v3329
    %3364 = vmatprep.subr.mxu0 0.0
    %3365 = vmatpush1.msra.mxu0 %v3330
    %3366 = vmatprep.subr.mxu0 0.0
    %3367 = vmatpush1.msra.mxu0 %v3331
    %3368 = vmatprep.subr.mxu0 0.0
    %3369 = vmatpush1.msra.mxu0 %v3332
    %3370 = vmatprep.subr.mxu0 0.0
    %3371 = vmatpush1.msra.mxu0 %v3333
    %3372 = vmatprep.subr.mxu0 0.0
    %3373 = vmatpush1.msra.mxu0 %v3334
    %3374 = vmatprep.subr.mxu0 0.0
    %3375 = vmatpush1.msra.mxu0 %v3335
    %3376 = vmatprep.subr.mxu0 0.0
    %3377 = vmatpush1.msra.mxu0 %v3336
    %3378 = vmatprep.subr.mxu0 0.0
    %3379 = vmatpush1.msra.mxu0 %v3337
    %3380 = vmatprep.subr.mxu0 0.0
    %3381 = vmatpush1.msra.mxu0 %v3338
    %3382 = vmatprep.subr.mxu0 0.0
    %3383 = vmatpush1.msra.mxu0 0.0
    %3384 = vmatprep.subr.mxu0 0.0
    %3385 = vmatpush1.msra.mxu0 0.0
    %3386 = vmatprep.subr.mxu0 0.0
    %3387 = vmatpush1.msra.mxu0 0.0
    %3388 = vmatprep.subr.mxu0 0.0
    %3389 = vmatpush1.msra.mxu0 0.0
    %3390 = vmatprep.subr.mxu0 0.0
    %3391 = vmatpush1.msra.mxu0 0.0
    %3392 = vmatprep.subr.mxu0 0.0
    %3393 = vmatpush1.msra.mxu0 0.0
    %3394 = vmatprep.subr.mxu0 0.0
    %3395 = vmatpush1.msra.mxu0 0.0
    %3396 = vmatprep.subr.mxu0 0.0
    %3397 = vmatpush1.msra.mxu0 0.0
    %3398 = vmatprep.subr.mxu0 0.0
    %3399 = vmatpush1.msra.mxu0 0.0
    %3400 = vmatprep.subr.mxu0 0.0
    %3401 = vmatpush1.msra.mxu0 0.0
    %3402 = vmatprep.subr.mxu0 0.0
    %3403 = vmatpush1.msra.mxu0 0.0
    %3404 = vmatprep.subr.mxu0 0.0
    %3405 = vmatpush1.msra.mxu0 0.0
    %3406 = vmatprep.mubr.f32.mxu0 %v3340
    %3407 = vmatmul.mubr.f32.gmra.mrb[0].mxu0 %v3314
    %v3408 = vpop.f32.mrb[0].mxu0
    %v3409 = vadd.f32 0.0, %v3408
    %v3410 = vpop.f32.mrb[0].mxu0
    %3411 = vdwg.mxu0
    %v3412 = vadd.f32 %v3239, %v3409
    %s3413 = scalar_lea.vmem %s7, 6
    %v3414 = vld [vmem:[%s3413] sm:$0x3]
    %v3416 = vsel %vm2898, %v3414, 0
    %3418 = vmatprep.subr.mxu0 %v2892
    %3419 = vmatpush1.msra.mxu0 %v2891
    %3420 = vmatprep.subr.mxu0 %v2894
    %3421 = vmatpush1.msra.mxu0 %v2893
    %3422 = vmatprep.subr.mxu0 %v2906
    %3423 = vmatpush1.msra.mxu0 %v2903
    %3424 = vmatprep.subr.mxu0 0.0
    %3425 = vmatpush1.msra.mxu0 0.0
    %3426 = vmatprep.subr.mxu0 0.0
    %3427 = vmatpush1.msra.mxu0 0.0
    %3428 = vmatprep.subr.mxu0 0.0
    %3429 = vmatpush1.msra.mxu0 0.0
    %3430 = vmatprep.subr.mxu0 0.0
    %3431 = vmatpush1.msra.mxu0 0.0
    %3432 = vmatprep.subr.mxu0 0.0
    %3433 = vmatpush1.msra.mxu0 0.0
    %3434 = vmatprep.subr.mxu0 0.0
    %3435 = vmatpush1.msra.mxu0 0.0
    %3436 = vmatprep.subr.mxu0 0.0
    %3437 = vmatpush1.msra.mxu0 0.0
    %3438 = vmatprep.subr.mxu0 0.0
    %3439 = vmatpush1.msra.mxu0 0.0
    %3440 = vmatprep.subr.mxu0 0.0
    %3441 = vmatpush1.msra.mxu0 0.0
    %3442 = vmatprep.subr.mxu0 0.0
    %3443 = vmatpush1.msra.mxu0 0.0
    %3444 = vmatprep.subr.mxu0 0.0
    %3445 = vmatpush1.msra.mxu0 0.0
    %3446 = vmatprep.subr.mxu0 0.0
    %3447 = vmatpush1.msra.mxu0 0.0
    %3448 = vmatprep.subr.mxu0 0.0
    %3449 = vmatpush1.msra.mxu0 0.0
    %3450 = vmatprep.subr.mxu0 0.0
    %3451 = vmatpush1.msra.mxu0 0.0
    %3452 = vmatprep.subr.mxu0 0.0
    %3453 = vmatpush1.msra.mxu0 0.0
    %3454 = vmatprep.subr.mxu0 0.0
    %3455 = vmatpush1.msra.mxu0 0.0
    %3456 = vmatprep.subr.mxu0 0.0
    %3457 = vmatpush1.msra.mxu0 0.0
    %3458 = vmatprep.subr.mxu0 0.0
    %3459 = vmatpush1.msra.mxu0 0.0
    %3460 = vmatprep.subr.mxu0 0.0
    %3461 = vmatpush1.msra.mxu0 0.0
    %3462 = vmatprep.subr.mxu0 0.0
    %3463 = vmatpush1.msra.mxu0 0.0
    %3464 = vmatprep.subr.mxu0 0.0
    %3465 = vmatpush1.msra.mxu0 0.0
    %3466 = vmatprep.subr.mxu0 0.0
    %3467 = vmatpush1.msra.mxu0 0.0
    %3468 = vmatprep.subr.mxu0 0.0
    %3469 = vmatpush1.msra.mxu0 0.0
    %3470 = vmatprep.subr.mxu0 0.0
    %3471 = vmatpush1.msra.mxu0 0.0
    %3472 = vmatprep.subr.mxu0 0.0
    %3473 = vmatpush1.msra.mxu0 0.0
    %3474 = vmatprep.subr.mxu0 0.0
    %3475 = vmatpush1.msra.mxu0 0.0
    %3476 = vmatprep.subr.mxu0 0.0
    %3477 = vmatpush1.msra.mxu0 0.0
    %3478 = vmatprep.subr.mxu0 0.0
    %3479 = vmatpush1.msra.mxu0 0.0
    %3480 = vmatprep.subr.mxu0 0.0
    %3481 = vmatpush1.msra.mxu0 0.0
    %3482 = vmatprep.mubr.f32.mxu0 0.0
    %3483 = vmatmul.mubr.f32.gmra.mrb[0].mxu0 %v3416
    %v3484 = vpop.f32.mrb[0].mxu0
    %v3485 = vadd.f32 0.0, %v3484
    %v3486 = vpop.f32.mrb[0].mxu0
    %v3487 = vadd.f32 0.0, %v3486
    %3488 = vdwg.mxu0
    %s3489 = scalar_lea.vmem %s8, 480
    %v3490 = vld [vmem:[%s3489] sm:$0xff]
    %v3491 = vld [vmem:[%s3489 + $0x8] sm:$0xff]
    %v3492 = vld [vmem:[%s3489 + $0x10] sm:$0xff]
    %v3493 = vld [vmem:[%s3489 + $0x18] sm:$0xff]
    %v3494 = vld [vmem:[%s3489 + $0x20] sm:$0xff]
    %v3495 = vld [vmem:[%s3489 + $0x28] sm:$0xff]
    %v3496 = vld [vmem:[%s3489 + $0x30] sm:$0xff]
    %v3497 = vld [vmem:[%s3489 + $0x38] sm:$0xff]
    %v3498 = vld [vmem:[%s3489 + $0x40] sm:$0xff]
    %v3499 = vld [vmem:[%s3489 + $0x48] sm:$0xff]
    %v3500 = vld [vmem:[%s3489 + $0x50] sm:$0xff]
    %v3501 = vld [vmem:[%s3489 + $0x58] sm:$0xff]
    %v3502 = vld [vmem:[%s3489 + $0x60] sm:$0xff]
    %v3503 = vld [vmem:[%s3489 + $0x68] sm:$0xff]
    %v3504 = vld [vmem:[%s3489 + $0x70] sm:$0xff]
    %v3505 = vld [vmem:[%s3489 + $0x78] sm:$0xff]
    %v3506 = vld [vmem:[%s3489 + $0x80] sm:$0xff]
    %v3507 = vld [vmem:[%s3489 + $0x88] sm:$0xff]
    %v3508 = vld [vmem:[%s3489 + $0x90] sm:$0xff]
    %v3509 = vld [vmem:[%s3489 + $0x98] sm:$0xff]
    %v3511 = vsel %vm73, %v3487, 0
    %3513 = vmatprep.subr.mxu0 0.0
    %3514 = vmatpush1.msra.mxu0 %v3490
    %3515 = vmatprep.subr.mxu0 0.0
    %3516 = vmatpush1.msra.mxu0 %v3491
    %3517 = vmatprep.subr.mxu0 0.0
    %3518 = vmatpush1.msra.mxu0 %v3492
    %3519 = vmatprep.subr.mxu0 0.0
    %3520 = vmatpush1.msra.mxu0 %v3493
    %3521 = vmatprep.subr.mxu0 0.0
    %3522 = vmatpush1.msra.mxu0 %v3494
    %3523 = vmatprep.subr.mxu0 0.0
    %3524 = vmatpush1.msra.mxu0 %v3495
    %3525 = vmatprep.subr.mxu0 0.0
    %3526 = vmatpush1.msra.mxu0 %v3496
    %3527 = vmatprep.subr.mxu0 0.0
    %3528 = vmatpush1.msra.mxu0 %v3497
    %3529 = vmatprep.subr.mxu0 0.0
    %3530 = vmatpush1.msra.mxu0 %v3498
    %3531 = vmatprep.subr.mxu0 0.0
    %3532 = vmatpush1.msra.mxu0 %v3499
    %3533 = vmatprep.subr.mxu0 0.0
    %3534 = vmatpush1.msra.mxu0 %v3500
    %3535 = vmatprep.subr.mxu0 0.0
    %3536 = vmatpush1.msra.mxu0 %v3501
    %3537 = vmatprep.subr.mxu0 0.0
    %3538 = vmatpush1.msra.mxu0 %v3502
    %3539 = vmatprep.subr.mxu0 0.0
    %3540 = vmatpush1.msra.mxu0 %v3503
    %3541 = vmatprep.subr.mxu0 0.0
    %3542 = vmatpush1.msra.mxu0 %v3504
    %3543 = vmatprep.subr.mxu0 0.0
    %3544 = vmatpush1.msra.mxu0 %v3505
    %3545 = vmatprep.subr.mxu0 0.0
    %3546 = vmatpush1.msra.mxu0 %v3506
    %3547 = vmatprep.subr.mxu0 0.0
    %3548 = vmatpush1.msra.mxu0 %v3507
    %3549 = vmatprep.subr.mxu0 0.0
    %3550 = vmatpush1.msra.mxu0 %v3508
    %3551 = vmatprep.subr.mxu0 0.0
    %3552 = vmatpush1.msra.mxu0 %v3509
    %3553 = vmatprep.subr.mxu0 0.0
    %3554 = vmatpush1.msra.mxu0 0.0
    %3555 = vmatprep.subr.mxu0 0.0
    %3556 = vmatpush1.msra.mxu0 0.0
    %3557 = vmatprep.subr.mxu0 0.0
    %3558 = vmatpush1.msra.mxu0 0.0
    %3559 = vmatprep.subr.mxu0 0.0
    %3560 = vmatpush1.msra.mxu0 0.0
    %3561 = vmatprep.subr.mxu0 0.0
    %3562 = vmatpush1.msra.mxu0 0.0
    %3563 = vmatprep.subr.mxu0 0.0
    %3564 = vmatpush1.msra.mxu0 0.0
    %3565 = vmatprep.subr.mxu0 0.0
    %3566 = vmatpush1.msra.mxu0 0.0
    %3567 = vmatprep.subr.mxu0 0.0
    %3568 = vmatpush1.msra.mxu0 0.0
    %3569 = vmatprep.subr.mxu0 0.0
    %3570 = vmatpush1.msra.mxu0 0.0
    %3571 = vmatprep.subr.mxu0 0.0
    %3572 = vmatpush1.msra.mxu0 0.0
    %3573 = vmatprep.subr.mxu0 0.0
    %3574 = vmatpush1.msra.mxu0 0.0
    %3575 = vmatprep.subr.mxu0 0.0
    %3576 = vmatpush1.msra.mxu0 0.0
    %3577 = vmatprep.mubr.f32.mxu0 %v3511
    %3578 = vmatmul.mubr.f32.gmra.mrb[0].mxu0 %v3485
    %v3579 = vpop.f32.mrb[0].mxu0
    %v3580 = vadd.f32 0.0, %v3579
    %v3581 = vpop.f32.mrb[0].mxu0
    %3582 = vdwg.mxu0
    %v3583 = vadd.f32 %v3412, %v3580
    %s3584 = scalar_lea.vmem %s7, 8
    %v3585 = vld [vmem:[%s3584] sm:$0x3]
    %v3587 = vsel %vm2898, %v3585, 0
    %3589 = vmatprep.subr.mxu0 %v2892
    %3590 = vmatpush1.msra.mxu0 %v2891
    %3591 = vmatprep.subr.mxu0 %v2894
    %3592 = vmatpush1.msra.mxu0 %v2893
    %3593 = vmatprep.subr.mxu0 %v2906
    %3594 = vmatpush1.msra.mxu0 %v2903
    %3595 = vmatprep.subr.mxu0 0.0
    %3596 = vmatpush1.msra.mxu0 0.0
    %3597 = vmatprep.subr.mxu0 0.0
    %3598 = vmatpush1.msra.mxu0 0.0
    %3599 = vmatprep.subr.mxu0 0.0
    %3600 = vmatpush1.msra.mxu0 0.0
    %3601 = vmatprep.subr.mxu0 0.0
    %3602 = vmatpush1.msra.mxu0 0.0
    %3603 = vmatprep.subr.mxu0 0.0
    %3604 = vmatpush1.msra.mxu0 0.0
    %3605 = vmatprep.subr.mxu0 0.0
    %3606 = vmatpush1.msra.mxu0 0.0
    %3607 = vmatprep.subr.mxu0 0.0
    %3608 = vmatpush1.msra.mxu0 0.0
    %3609 = vmatprep.subr.mxu0 0.0
    %3610 = vmatpush1.msra.mxu0 0.0
    %3611 = vmatprep.subr.mxu0 0.0
    %3612 = vmatpush1.msra.mxu0 0.0
    %3613 = vmatprep.subr.mxu0 0.0
    %3614 = vmatpush1.msra.mxu0 0.0
    %3615 = vmatprep.subr.mxu0 0.0
    %3616 = vmatpush1.msra.mxu0 0.0
    %3617 = vmatprep.subr.mxu0 0.0
    %3618 = vmatpush1.msra.mxu0 0.0
    %3619 = vmatprep.subr.mxu0 0.0
    %3620 = vmatpush1.msra.mxu0 0.0
    %3621 = vmatprep.subr.mxu0 0.0
    %3622 = vmatpush1.msra.mxu0 0.0
    %3623 = vmatprep.subr.mxu0 0.0
    %3624 = vmatpush1.msra.mxu0 0.0
    %3625 = vmatprep.subr.mxu0 0.0
    %3626 = vmatpush1.msra.mxu0 0.0
    %3627 = vmatprep.subr.mxu0 0.0
    %3628 = vmatpush1.msra.mxu0 0.0
    %3629 = vmatprep.subr.mxu0 0.0
    %3630 = vmatpush1.msra.mxu0 0.0
    %3631 = vmatprep.subr.mxu0 0.0
    %3632 = vmatpush1.msra.mxu0 0.0
    %3633 = vmatprep.subr.mxu0 0.0
    %3634 = vmatpush1.msra.mxu0 0.0
    %3635 = vmatprep.subr.mxu0 0.0
    %3636 = vmatpush1.msra.mxu0 0.0
    %3637 = vmatprep.subr.mxu0 0.0
    %3638 = vmatpush1.msra.mxu0 0.0
    %3639 = vmatprep.subr.mxu0 0.0
    %3640 = vmatpush1.msra.mxu0 0.0
    %3641 = vmatprep.subr.mxu0 0.0
    %3642 = vmatpush1.msra.mxu0 0.0
    %3643 = vmatprep.subr.mxu0 0.0
    %3644 = vmatpush1.msra.mxu0 0.0
    %3645 = vmatprep.subr.mxu0 0.0
    %3646 = vmatpush1.msra.mxu0 0.0
    %3647 = vmatprep.subr.mxu0 0.0
    %3648 = vmatpush1.msra.mxu0 0.0
    %3649 = vmatprep.subr.mxu0 0.0
    %3650 = vmatpush1.msra.mxu0 0.0
    %3651 = vmatprep.subr.mxu0 0.0
    %3652 = vmatpush1.msra.mxu0 0.0
    %3653 = vmatprep.mubr.f32.mxu0 0.0
    %3654 = vmatmul.mubr.f32.gmra.mrb[0].mxu0 %v3587
    %v3655 = vpop.f32.mrb[0].mxu0
    %v3656 = vadd.f32 0.0, %v3655
    %v3657 = vpop.f32.mrb[0].mxu0
    %v3658 = vadd.f32 0.0, %v3657
    %3659 = vdwg.mxu0
    %s3660 = scalar_lea.vmem %s8, 640
    %v3661 = vld [vmem:[%s3660] sm:$0xff]
    %v3662 = vld [vmem:[%s3660 + $0x8] sm:$0xff]
    %v3663 = vld [vmem:[%s3660 + $0x10] sm:$0xff]
    %v3664 = vld [vmem:[%s3660 + $0x18] sm:$0xff]
    %v3665 = vld [vmem:[%s3660 + $0x20] sm:$0xff]
    %v3666 = vld [vmem:[%s3660 + $0x28] sm:$0xff]
    %v3667 = vld [vmem:[%s3660 + $0x30] sm:$0xff]
    %v3668 = vld [vmem:[%s3660 + $0x38] sm:$0xff]
    %v3669 = vld [vmem:[%s3660 + $0x40] sm:$0xff]
    %v3670 = vld [vmem:[%s3660 + $0x48] sm:$0xff]
    %v3671 = vld [vmem:[%s3660 + $0x50] sm:$0xff]
    %v3672 = vld [vmem:[%s3660 + $0x58] sm:$0xff]
    %v3673 = vld [vmem:[%s3660 + $0x60] sm:$0xff]
    %v3674 = vld [vmem:[%s3660 + $0x68] sm:$0xff]
    %v3675 = vld [vmem:[%s3660 + $0x70] sm:$0xff]
    %v3676 = vld [vmem:[%s3660 + $0x78] sm:$0xff]
    %v3677 = vld [vmem:[%s3660 + $0x80] sm:$0xff]
    %v3678 = vld [vmem:[%s3660 + $0x88] sm:$0xff]
    %v3679 = vld [vmem:[%s3660 + $0x90] sm:$0xff]
    %v3680 = vld [vmem:[%s3660 + $0x98] sm:$0xff]
    %v3682 = vsel %vm73, %v3658, 0
    %3684 = vmatprep.subr.mxu0 0.0
    %3685 = vmatpush1.msra.mxu0 %v3661
    %3686 = vmatprep.subr.mxu0 0.0
    %3687 = vmatpush1.msra.mxu0 %v3662
    %3688 = vmatprep.subr.mxu0 0.0
    %3689 = vmatpush1.msra.mxu0 %v3663
    %3690 = vmatprep.subr.mxu0 0.0
    %3691 = vmatpush1.msra.mxu0 %v3664
    %3692 = vmatprep.subr.mxu0 0.0
    %3693 = vmatpush1.msra.mxu0 %v3665
    %3694 = vmatprep.subr.mxu0 0.0
    %3695 = vmatpush1.msra.mxu0 %v3666
    %3696 = vmatprep.subr.mxu0 0.0
    %3697 = vmatpush1.msra.mxu0 %v3667
    %3698 = vmatprep.subr.mxu0 0.0
    %3699 = vmatpush1.msra.mxu0 %v3668
    %3700 = vmatprep.subr.mxu0 0.0
    %3701 = vmatpush1.msra.mxu0 %v3669
    %3702 = vmatprep.subr.mxu0 0.0
    %3703 = vmatpush1.msra.mxu0 %v3670
    %3704 = vmatprep.subr.mxu0 0.0
    %3705 = vmatpush1.msra.mxu0 %v3671
    %3706 = vmatprep.subr.mxu0 0.0
    %3707 = vmatpush1.msra.mxu0 %v3672
    %3708 = vmatprep.subr.mxu0 0.0
    %3709 = vmatpush1.msra.mxu0 %v3673
    %3710 = vmatprep.subr.mxu0 0.0
    %3711 = vmatpush1.msra.mxu0 %v3674
    %3712 = vmatprep.subr.mxu0 0.0
    %3713 = vmatpush1.msra.mxu0 %v3675
    %3714 = vmatprep.subr.mxu0 0.0
    %3715 = vmatpush1.msra.mxu0 %v3676
    %3716 = vmatprep.subr.mxu0 0.0
    %3717 = vmatpush1.msra.mxu0 %v3677
    %3718 = vmatprep.subr.mxu0 0.0
    %3719 = vmatpush1.msra.mxu0 %v3678
    %3720 = vmatprep.subr.mxu0 0.0
    %3721 = vmatpush1.msra.mxu0 %v3679
    %3722 = vmatprep.subr.mxu0 0.0
    %3723 = vmatpush1.msra.mxu0 %v3680
    %3724 = vmatprep.subr.mxu0 0.0
    %3725 = vmatpush1.msra.mxu0 0.0
    %3726 = vmatprep.subr.mxu0 0.0
    %3727 = vmatpush1.msra.mxu0 0.0
    %3728 = vmatprep.subr.mxu0 0.0
    %3729 = vmatpush1.msra.mxu0 0.0
    %3730 = vmatprep.subr.mxu0 0.0
    %3731 = vmatpush1.msra.mxu0 0.0
    %3732 = vmatprep.subr.mxu0 0.0
    %3733 = vmatpush1.msra.mxu0 0.0
    %3734 = vmatprep.subr.mxu0 0.0
    %3735 = vmatpush1.msra.mxu0 0.0
    %3736 = vmatprep.subr.mxu0 0.0
    %3737 = vmatpush1.msra.mxu0 0.0
    %3738 = vmatprep.subr.mxu0 0.0
    %3739 = vmatpush1.msra.mxu0 0.0
    %3740 = vmatprep.subr.mxu0 0.0
    %3741 = vmatpush1.msra.mxu0 0.0
    %3742 = vmatprep.subr.mxu0 0.0
    %3743 = vmatpush1.msra.mxu0 0.0
    %3744 = vmatprep.subr.mxu0 0.0
    %3745 = vmatpush1.msra.mxu0 0.0
    %3746 = vmatprep.subr.mxu0 0.0
    %3747 = vmatpush1.msra.mxu0 0.0
    %3748 = vmatprep.mubr.f32.mxu0 %v3682
    %3749 = vmatmul.mubr.f32.gmra.mrb[0].mxu0 %v3656
    %v3750 = vpop.f32.mrb[0].mxu0
    %v3751 = vadd.f32 0.0, %v3750
    %v3752 = vpop.f32.mrb[0].mxu0
    %3753 = vdwg.mxu0
    %v3754 = vadd.f32 %v3583, %v3751
    %v3755 = vld [vmem:[%s9] sm:$0x1]
    %v3757 = vlaneseq
    %v3758 = vshrl.u32 %v3757, 7
    %v3759 = vsub.s32 0, %v3758
    %v3760 = vrot.slane %v3755, %v3759
    %v3762 = vadd.f32 %v3754, %v3760
    %v3763 = vtanh.pop %v3762
    %v3764 = vld [vmem:[%s10] sm:$0xff]
    %v3765 = vld [vmem:[%s10 + $0x8] sm:$0xff]
    %v3766 = vld [vmem:[%s10 + $0x10] sm:$0xff]
    %v3767 = vld [vmem:[%s10 + $0x18] sm:$0xff]
    %v3768 = vld [vmem:[%s10 + $0x20] sm:$0xff]
    %v3769 = vld [vmem:[%s10 + $0x28] sm:$0xff]
    %v3770 = vld [vmem:[%s10 + $0x30] sm:$0xff]
    %v3771 = vld [vmem:[%s10 + $0x38] sm:$0xff]
    %v3772 = vld [vmem:[%s10 + $0x40] sm:$0xff]
    %v3773 = vld [vmem:[%s10 + $0x48] sm:$0xff]
    %v3774 = vld [vmem:[%s10 + $0x50] sm:$0xff]
    %v3775 = vld [vmem:[%s10 + $0x58] sm:$0xff]
    %v3776 = vld [vmem:[%s10 + $0x60] sm:$0xff]
    %v3777 = vld [vmem:[%s10 + $0x68] sm:$0xff]
    %v3778 = vld [vmem:[%s10 + $0x70] sm:$0xff]
    %v3779 = vld [vmem:[%s11] sm:$0x1]
    %v3781 = vlaneseq
    %v3782 = vshrl.u32 %v3781, 7
    %v3783 = vsub.s32 0, %v3782
    %v3784 = vrot.slane %v3779, %v3783
    %vm3786 = vcmask 982016
    %v3788 = vsel %vm3786, %v3763, 0
    %3790 = vmatprep.subr.mxu0 0.0
    %3791 = vmatpush1.msra.mxu0 %v3764
    %3792 = vmatprep.subr.mxu0 0.0
    %3793 = vmatpush1.msra.mxu0 %v3765
    %3794 = vmatprep.subr.mxu0 0.0
    %3795 = vmatpush1.msra.mxu0 %v3766
    %3796 = vmatprep.subr.mxu0 0.0
    %3797 = vmatpush1.msra.mxu0 %v3767
    %3798 = vmatprep.subr.mxu0 0.0
    %3799 = vmatpush1.msra.mxu0 %v3768
    %3800 = vmatprep.subr.mxu0 0.0
    %3801 = vmatpush1.msra.mxu0 %v3769
    %3802 = vmatprep.subr.mxu0 0.0
    %3803 = vmatpush1.msra.mxu0 %v3770
    %3804 = vmatprep.subr.mxu0 0.0
    %3805 = vmatpush1.msra.mxu0 %v3771
    %3806 = vmatprep.subr.mxu0 0.0
    %3807 = vmatpush1.msra.mxu0 %v3772
    %3808 = vmatprep.subr.mxu0 0.0
    %3809 = vmatpush1.msra.mxu0 %v3773
    %3810 = vmatprep.subr.mxu0 0.0
    %3811 = vmatpush1.msra.mxu0 %v3774
    %3812 = vmatprep.subr.mxu0 0.0
    %3813 = vmatpush1.msra.mxu0 %v3775
    %3814 = vmatprep.subr.mxu0 0.0
    %3815 = vmatpush1.msra.mxu0 %v3776
    %3816 = vmatprep.subr.mxu0 0.0
    %3817 = vmatpush1.msra.mxu0 %v3777
    %3818 = vmatprep.subr.mxu0 0.0
    %3819 = vmatpush1.msra.mxu0 %v3778
    %3820 = vmatprep.subr.mxu0 0.0
    %3821 = vmatpush1.msra.mxu0 0.0
    %3822 = vmatprep.subr.mxu0 0.0
    %3823 = vmatpush1.msra.mxu0 0.0
    %3824 = vmatprep.subr.mxu0 0.0
    %3825 = vmatpush1.msra.mxu0 0.0
    %3826 = vmatprep.subr.mxu0 0.0
    %3827 = vmatpush1.msra.mxu0 0.0
    %3828 = vmatprep.subr.mxu0 0.0
    %3829 = vmatpush1.msra.mxu0 0.0
    %3830 = vmatprep.subr.mxu0 0.0
    %3831 = vmatpush1.msra.mxu0 0.0
    %3832 = vmatprep.subr.mxu0 0.0
    %3833 = vmatpush1.msra.mxu0 0.0
    %3834 = vmatprep.subr.mxu0 0.0
    %3835 = vmatpush1.msra.mxu0 0.0
    %3836 = vmatprep.subr.mxu0 0.0
    %3837 = vmatpush1.msra.mxu0 0.0
    %3838 = vmatprep.subr.mxu0 0.0
    %3839 = vmatpush1.msra.mxu0 0.0
    %3840 = vmatprep.subr.mxu0 0.0
    %3841 = vmatpush1.msra.mxu0 0.0
    %3842 = vmatprep.subr.mxu0 0.0
    %3843 = vmatpush1.msra.mxu0 0.0
    %3844 = vmatprep.subr.mxu0 0.0
    %3845 = vmatpush1.msra.mxu0 0.0
    %3846 = vmatprep.subr.mxu0 0.0
    %3847 = vmatpush1.msra.mxu0 0.0
    %3848 = vmatprep.subr.mxu0 0.0
    %3849 = vmatpush1.msra.mxu0 0.0
    %3850 = vmatprep.subr.mxu0 0.0
    %3851 = vmatpush1.msra.mxu0 0.0
    %3852 = vmatprep.subr.mxu0 0.0
    %3853 = vmatpush1.msra.mxu0 0.0
    %3854 = vmatprep.mubr.f32.mxu0 0.0
    %3855 = vmatmul.mubr.f32.gmra.mrb[0].mxu0 %v3788
    %v3856 = vpop.f32.mrb[0].mxu0
    %v3857 = vadd.f32 %v3784, %v3856
    %v3858 = vpop.f32.mrb[0].mxu0
    %3859 = vdwg.mxu0
    %v3860 = vtanh.pop %v3857
    %v3861 = vld [vmem:[%s12] sm:$0xff]
    %v3862 = vld [vmem:[%s12 + $0x8] sm:$0xff]
    %v3863 = vld [vmem:[%s12 + $0x10] sm:$0xff]
    %v3864 = vld [vmem:[%s12 + $0x18] sm:$0xff]
    %v3865 = vld [vmem:[%s12 + $0x20] sm:$0xff]
    %v3866 = vld [vmem:[%s12 + $0x28] sm:$0xff]
    %v3867 = vld [vmem:[%s12 + $0x30] sm:$0xff]
    %v3868 = vld [vmem:[%s12 + $0x38] sm:$0xff]
    %v3869 = vld [vmem:[%s12 + $0x40] sm:$0xff]
    %v3870 = vld [vmem:[%s12 + $0x48] sm:$0xff]
    %v3871 = vld [vmem:[%s12 + $0x50] sm:$0xf]
    %v3872 = vld [vmem:[%s13] sm:$0x1]
    %v3874 = vlaneseq
    %v3875 = vshrl.u32 %v3874, 7
    %v3876 = vsub.s32 0, %v3875
    %v3877 = vrot.slane %v3872, %v3876
    %v3880 = vsel %vm866, %v3860, 0
    %v3883 = vsel %vm679, %v3871, 0
    %3885 = vmatprep.subr.mxu0 0.0
    %3886 = vmatpush1.msra.mxu0 %v3861
    %3887 = vmatprep.subr.mxu0 0.0
    %3888 = vmatpush1.msra.mxu0 %v3862
    %3889 = vmatprep.subr.mxu0 0.0
    %3890 = vmatpush1.msra.mxu0 %v3863
    %3891 = vmatprep.subr.mxu0 0.0
    %3892 = vmatpush1.msra.mxu0 %v3864
    %3893 = vmatprep.subr.mxu0 0.0
    %3894 = vmatpush1.msra.mxu0 %v3865
    %3895 = vmatprep.subr.mxu0 0.0
    %3896 = vmatpush1.msra.mxu0 %v3866
    %3897 = vmatprep.subr.mxu0 0.0
    %3898 = vmatpush1.msra.mxu0 %v3867
    %3899 = vmatprep.subr.mxu0 0.0
    %3900 = vmatpush1.msra.mxu0 %v3868
    %3901 = vmatprep.subr.mxu0 0.0
    %3902 = vmatpush1.msra.mxu0 %v3869
    %3903 = vmatprep.subr.mxu0 0.0
    %3904 = vmatpush1.msra.mxu0 %v3870
    %3905 = vmatprep.subr.mxu0 0.0
    %3906 = vmatpush1.msra.mxu0 %v3883
    %3907 = vmatprep.subr.mxu0 0.0
    %3908 = vmatpush1.msra.mxu0 0.0
    %3909 = vmatprep.subr.mxu0 0.0
    %3910 = vmatpush1.msra.mxu0 0.0
    %3911 = vmatprep.subr.mxu0 0.0
    %3912 = vmatpush1.msra.mxu0 0.0
    %3913 = vmatprep.subr.mxu0 0.0
    %3914 = vmatpush1.msra.mxu0 0.0
    %3915 = vmatprep.subr.mxu0 0.0
    %3916 = vmatpush1.msra.mxu0 0.0
    %3917 = vmatprep.subr.mxu0 0.0
    %3918 = vmatpush1.msra.mxu0 0.0
    %3919 = vmatprep.subr.mxu0 0.0
    %3920 = vmatpush1.msra.mxu0 0.0
    %3921 = vmatprep.subr.mxu0 0.0
    %3922 = vmatpush1.msra.mxu0 0.0
    %3923 = vmatprep.subr.mxu0 0.0
    %3924 = vmatpush1.msra.mxu0 0.0
    %3925 = vmatprep.subr.mxu0 0.0
    %3926 = vmatpush1.msra.mxu0 0.0
    %3927 = vmatprep.subr.mxu0 0.0
    %3928 = vmatpush1.msra.mxu0 0.0
    %3929 = vmatprep.subr.mxu0 0.0
    %3930 = vmatpush1.msra.mxu0 0.0
    %3931 = vmatprep.subr.mxu0 0.0
    %3932 = vmatpush1.msra.mxu0 0.0
    %3933 = vmatprep.subr.mxu0 0.0
    %3934 = vmatpush1.msra.mxu0 0.0
    %3935 = vmatprep.subr.mxu0 0.0
    %3936 = vmatpush1.msra.mxu0 0.0
    %3937 = vmatprep.subr.mxu0 0.0
    %3938 = vmatpush1.msra.mxu0 0.0
    %3939 = vmatprep.subr.mxu0 0.0
    %3940 = vmatpush1.msra.mxu0 0.0
    %3941 = vmatprep.subr.mxu0 0.0
    %3942 = vmatpush1.msra.mxu0 0.0
    %3943 = vmatprep.subr.mxu0 0.0
    %3944 = vmatpush1.msra.mxu0 0.0
    %3945 = vmatprep.subr.mxu0 0.0
    %3946 = vmatpush1.msra.mxu0 0.0
    %3947 = vmatprep.subr.mxu0 0.0
    %3948 = vmatpush1.msra.mxu0 0.0
    %3949 = vmatprep.mubr.f32.mxu0 0.0
    %3950 = vmatmul.mubr.f32.gmra.mrb[0].mxu0 %v3880
    %v3951 = vpop.f32.mrb[0].mxu0
    %v3952 = vadd.f32 %v3877, %v3951
    %v3953 = vpop.f32.mrb[0].mxu0
    %3954 = vdwg.mxu0
    %vm3955 = vcmask 74752
    %v3956 = vsel %vm3955, %v3952, -inf
    %3957 = vmax.xlane.f32.xlu0 %v3956
    %v3958 = vpop.xlane.xlu0 %3957
    %v3959 = vsub.f32 %v3952, %v3958
    %v3960 = vmul.f32 %v3959, 1.442695
    %v3961 = vpow.pop %v3960
    %v3962 = vsel %vm3955, %v3961, 0.0
    %3963 = vadd.xlane.f32.xlu0 %v3962
    %v3964 = vpop.xlane.xlu0 %3963
    %v3965 = vlog2.pop %v3964
    %v3966 = vmul.f32 %v3965, 0.6931472
    %v3967 = vsub.f32 %v3959, %v3966
    %3968 = vst.msk [vmem:[#allocation4] sm:$0x3] %vm3955, %v3967
    // Predicated region
    $region58: #{lenet_forward.1} parent=1 // pred_check
      _
    $region59: #{lenet_forward.1} parent=1 // pred_check_branch
      %3970 = sbr.rel (0) target = $region61
    $region60: #{lenet_forward.1} parent=1 // pred_region
      %s3972 = ssub.s32 32, 32
      %3973 = vsyncadd [#allocation5], %s3972
      %s3975 = sshll.u32 [#allocation4], 4
      %s3976 = int_to_ptr.vmem [resolvable:$true] %s3975
      %3978 = dma.vmem_to_hbm [thread:$0]  %s3976, 32, %s14, [#allocation5]
    $region61: #{lenet_forward.1} parent=1 // pred_fallthru
      _
    // Predicated region
    $region62: #{lenet_forward.1} parent=1 // pred_check
      _
    $region63: #{lenet_forward.1} parent=1 // pred_check_branch
      %3980 = sbr.rel (0) target = $region65
    $region64: #{lenet_forward.1} parent=1 // pred_region
      %3981 = dma.done [#allocation5], 32
    $region65: #{lenet_forward.1} parent=1 // pred_fallthru
      _
    %3982 = vsyncpa [#allocation5], 1

</llo_original>
